<compile_context>
chip_gen: v7x
topology: tpu7x:2x2x1
jax: 0.10.0
libtpu: 0.0.40
codegen_flags: <defaults>
</compile_context>

<pallas_src>
import jax
import jax.numpy as jnp
from jax import lax
from jax.experimental import pallas as pl
from jax.experimental.pallas import tpu as pltpu


def _candidate_rhs(Hp, Wp, P):
    """Valid patch-rows-per-step: RH | Hp and the in/out blocks are (8, .)-tileable."""
    cands = []
    for rh in range(1, Hp + 1):
        if Hp % rh:
            continue
        if rh == Hp or ((rh * P) % 8 == 0 and (rh * Wp) % 8 == 0):
            cands.append(rh)
    return cands


def _vmem_bytes(RH, C, P, W, Wp, E, isz_im, isz_out, isz_c):
    """Rough per-step VMEM working set (double-buffered blocks + constants + scratch)."""
    RHP, CPP, M = RH * P, C * P * P, RH * Wp
    slab = 2 * C * RHP * W * isz_im                    # input image block (double buffered)
    outt = 2 * M * E * isz_out                         # output token block (double buffered)
    const = 2 * ((W * W + CPP * E) * isz_c + 4 * E)    # S, G, bias (x2 safety margin)
    scratch = CPP * M * isz_c                          # explicit patch-matrix scratch
    live = 2 * C * RHP * W * isz_c + 4 * M * E         # cast slab + de-interleaved slab + f32 acc
    return slab + outt + const + scratch + live


def patch_embedding(im, weight, bias, patch_size, *,
                    compute_dtype=jnp.bfloat16, rows_per_tile=512):
    """im: (B, C, H, W) NCHW. weight: (E, C, P, P), bias: (E,). Returns (B, N, E)."""
    B, C, H, W = im.shape
    P = int(patch_size)
    E = weight.shape[0]
    assert weight.shape == (E, C, P, P)
    assert bias.shape == (E,)
    assert H % P == 0 and W % P == 0
    Hp, Wp = H // P, W // P
    N = Hp * Wp
    CPP = C * P * P
    cdt = jnp.dtype(compute_dtype)
    prec = lax.Precision.HIGHEST if cdt == jnp.dtype(jnp.float32) else None

    # --- generation-aware VMEM budget (v7x has only 64 MiB physical VMEM) ---
    try:
        vmem_cap = int(pltpu.get_tpu_info().vmem_capacity_bytes)
    except Exception:
        vmem_cap = 64 * 2 ** 20
    budget = int(0.7 * vmem_cap)

    isz_im = jnp.dtype(im.dtype).itemsize
    isz_c = cdt.itemsize
    cands = _candidate_rhs(Hp, Wp, P)
    fit = [rh for rh in cands
           if rh * Wp <= rows_per_tile
           and 2 * _vmem_bytes(rh, C, P, W, Wp, E, isz_im, isz_im, isz_c) <= budget]
    RH = max(fit) if fit else min(cands)       # patch-rows per grid step
    RHP = RH * P                               # image rows per grid step
    n_r = Hp // RH
    M = RH * Wp                                # output tokens per grid step
    est = _vmem_bytes(RH, C, P, W, Wp, E, isz_im, isz_im, isz_c)
    vmem_limit = int(min(budget, max(2 * est, 32 * 2 ** 20)))

    # --- tiny host-built constant operands (DMA'd once; constant index_maps) ---
    # Lane de-interleave: (row @ S)[kw*Wp + wp] = row[wp*P + kw]; exact 0/1 matrix.
    w_idx = jnp.arange(W)
    S = jnp.zeros((W, W), cdt).at[w_idx, (w_idx % P) * Wp + (w_idx // P)].set(1)
    # Flattened conv weight: G[kw*C*P + c*P + kh, e] = weight[e, c, kh, kw].
    G = jnp.transpose(weight, (3, 1, 2, 0)).reshape(CPP, E).astype(cdt)
    b2 = bias.reshape(1, E).astype(jnp.float32)

    def kernel(x_ref, s_ref, g_ref, b_ref, o_ref, a_ref):
        # x_ref: (C, RH*P, W) raw NCHW slab for this (batch, patch-row tile).
        # 1) De-interleave lanes (wp, kw) -> (kw, wp): one small exact 0/1 matmul.
        x2 = x_ref[...].astype(cdt).reshape(C * RHP, W)     # free leading-dim merge
        d = jnp.dot(x2, s_ref[...], precision=prec, preferred_element_type=cdt)
        # d[c*RHP + rh*P + kh, kw*Wp + wp] == im[c, (r*RH + rh)*P + kh, wp*P + kw]

        # 2) Regroup into the lane-dense patch matrix with pure VMEM copies:
        #    a_ref[kw*C*P + c*P + kh, rh*Wp + wp] = d[c*RHP + rh*P + kh, kw*Wp + wp]
        for kw in range(P):
            for c in range(C):
                for rh in range(RH):
                    a_ref[(kw * C + c) * P:(kw * C + c + 1) * P,
                          rh * Wp:(rh + 1) * Wp] = \
                        d[c * RHP + rh * P:c * RHP + rh * P + P,
                          kw * Wp:(kw + 1) * Wp]

        # 3) Single fused conv GEMM (LHS consumed transposed, f32 accumulation),
        #    bias folded into the epilogue, one lane-dense (RH*Wp, E) store.
        acc = lax.dot_general(a_ref[...], g_ref[...],
                              dimension_numbers=(((0,), (0,)), ((), ())),
                              precision=prec,
                              preferred_element_type=jnp.float32)   # (RH*Wp, E)
        o_ref[...] = (acc + b_ref[...].astype(jnp.float32)).astype(o_ref.dtype)

    def make_call(single_buffer_consts):
        ckw = {"pipeline_mode": pl.Buffered(1)} if single_buffer_consts else {}
        grid_spec = pltpu.PrefetchScalarGridSpec(
            num_scalar_prefetch=0,
            grid=(B, n_r),
            in_specs=[
                # Raw NCHW image: RH patch-rows (= RH*P pixel rows) per step.
                pl.BlockSpec((pl.Squeezed(), C, RHP, W), lambda b, r: (b, 0, r, 0)),
                # Constant operands: resident across the grid (single-buffered).
                pl.BlockSpec((W, W), lambda b, r: (0, 0), **ckw),
                pl.BlockSpec((CPP, E), lambda b, r: (0, 0), **ckw),
                pl.BlockSpec((1, E), lambda b, r: (0, 0), **ckw),
            ],
            out_specs=pl.BlockSpec((pl.Squeezed(), M, E), lambda b, r: (b, r, 0)),
            scratch_shapes=[pltpu.VMEM((CPP, M), cdt)],
        )
        return pl.pallas_call(
            kernel,
            out_shape=jax.ShapeDtypeStruct((B, N, E), im.dtype),
            grid_spec=grid_spec,
            compiler_params=pltpu.CompilerParams(
                dimension_semantics=("parallel", "parallel"),
                vmem_limit_bytes=vmem_limit,
            ),
        )

    try:
        return make_call(True)(im, S, G, b2)
    except Exception:
        # Fallback if pipeline_mode=pl.Buffered(1) is not accepted by this jax version.
        return make_call(False)(im, S, G, b2)


if __name__ == "__main__":
    # Small shapes consistent with the module: in_chans=3, 32x32 image,
    # patch_size=4, embed_dim=128 (lane-dense output per perf review).
    B, C, H, W = 2, 3, 32, 32
    P, E = 4, 128

    key = jax.random.PRNGKey(0)
    k_im, k_w, k_b = jax.random.split(key, 3)
    im = jax.random.normal(k_im, (B, C, H, W), dtype=jnp.float32)
    weight = jax.random.normal(k_w, (E, C, P, P), dtype=jnp.float32) * 0.02
    bias = jax.random.normal(k_b, (E,), dtype=jnp.float32) * 0.02

    # Reference: same semantics as the PyTorch forward (proj -> flatten(2) -> transpose(1, 2)).
    ref = jax.lax.conv_general_dilated(
        im, weight, window_strides=(P, P), padding="VALID",
        dimension_numbers=("NCHW", "OIHW", "NCHW"),
        precision=jax.lax.Precision.HIGHEST)
    ref = ref + bias.reshape(1, E, 1, 1)
    ref = ref.reshape(B, E, -1).transpose(0, 2, 1)

    N = (H // P) * (W // P)

    # f32 path, forcing a multi-tile row grid (RH=4 -> grid (B, 2)).
    out_f32 = patch_embedding(im, weight, bias, P,
                              compute_dtype=jnp.float32, rows_per_tile=32)
    out_f32 = jax.block_until_ready(out_f32)
    assert out_f32.shape == (B, N, E)
    assert jnp.allclose(out_f32, ref, atol=1e-3, rtol=1e-3), \
        float(jnp.max(jnp.abs(out_f32 - ref)))

    # Default bf16 MXU path (f32 accumulation); accuracy bounded by bf16 input rounding.
    out_bf16 = patch_embedding(im, weight, bias, P)
    out_bf16 = jax.block_until_ready(out_bf16)
    assert out_bf16.shape == (B, N, E)
    assert jnp.allclose(out_bf16, ref, atol=2e-2, rtol=2e-2), \
        float(jnp.max(jnp.abs(out_bf16 - ref)))

    print("KERNEL_OK")
</pallas_src>

<mosaic_0001>
module attributes {stable_mosaic.version = 11 : i64} {
  func.func @kernel(%arg0: i32, %arg1: i32, %arg2: memref<1x3x16x32xf32, #tpu.memory_space<vmem>>, %arg3: memref<32x32xf32, #tpu.memory_space<vmem>>, %arg4: memref<48x128xf32, #tpu.memory_space<vmem>>, %arg5: memref<1x128xf32, #tpu.memory_space<vmem>>, %arg6: memref<1x32x128xf32, #tpu.memory_space<vmem>>, %arg7: memref<48x32xf32, #tpu.memory_space<vmem>>) attributes {dimension_semantics = [#tpu.dimension_semantics<parallel>, #tpu.dimension_semantics<parallel>], iteration_bounds = array<i64: 2, 2>, scalar_prefetch = 0 : i64, scratch_operands = 1 : i64, tpu.core_type = #tpu.core_type<tc>, window_params = [{transform_indices = @transform_0, window_bounds = array<i64: 1, 3, 16, 32>}, {pipeline_mode = #tpu.pipeline_mode<synchronous>, transform_indices = @transform_1, window_bounds = array<i64: 32, 32>}, {pipeline_mode = #tpu.pipeline_mode<synchronous>, transform_indices = @transform_2, window_bounds = array<i64: 48, 128>}, {pipeline_mode = #tpu.pipeline_mode<synchronous>, transform_indices = @transform_3, window_bounds = array<i64: 1, 128>}, {transform_indices = @transform_4, window_bounds = array<i64: 1, 32, 128>}]} {
    %c0 = arith.constant 0 : index
    %c0_0 = arith.constant 0 : index
    %c0_1 = arith.constant 0 : index
    %c0_2 = arith.constant 0 : index
    %0 = vector.load %arg2[%c0, %c0_0, %c0_1, %c0_2] : memref<1x3x16x32xf32, #tpu.memory_space<vmem>>, vector<1x3x16x32xf32>
    %1 = vector.shape_cast %0 : vector<1x3x16x32xf32> to vector<3x16x32xf32>
    %2 = vector.shape_cast %1 : vector<3x16x32xf32> to vector<48x32xf32>
    %c0_3 = arith.constant 0 : index
    %c0_4 = arith.constant 0 : index
    %3 = vector.load %arg3[%c0_3, %c0_4] : memref<32x32xf32, #tpu.memory_space<vmem>>, vector<32x32xf32>
    %cst = arith.constant dense<0.000000e+00> : vector<48x32xf32>
    %4 = tpu.matmul %2, %3, %cst {dimension_numbers = #tpu.dot_dimension_numbers<[1], [0], [0], [1], [0, 0, 1, 1], [], []>, precision = #tpu.contract_precision<fp32>} : vector<48x32xf32>, vector<32x32xf32>, vector<48x32xf32> -> vector<48x32xf32>
    %5 = vector.extract_strided_slice %4 {offsets = [0, 0], sizes = [4, 8], strides = [1, 1]} : vector<48x32xf32> to vector<4x8xf32>
    %c0_5 = arith.constant 0 : index
    %c0_6 = arith.constant 0 : index
    %6 = vector.load %arg7[%c0_5, %c0_6] : memref<48x32xf32, #tpu.memory_space<vmem>>, vector<4x8xf32>
    tpu.vector_store %arg7[%c0_5, %c0_6], %5 {strides = array<i32>} : memref<48x32xf32, #tpu.memory_space<vmem>>, vector<4x8xf32>,
    %7 = vector.extract_strided_slice %4 {offsets = [4, 0], sizes = [4, 8], strides = [1, 1]} : vector<48x32xf32> to vector<4x8xf32>
    %c0_7 = arith.constant 0 : index
    %c8 = arith.constant 8 : index
    %8 = vector.load %arg7[%c0_7, %c8] : memref<48x32xf32, #tpu.memory_space<vmem>>, vector<4x8xf32>
    tpu.vector_store %arg7[%c0_7, %c8], %7 {strides = array<i32>} : memref<48x32xf32, #tpu.memory_space<vmem>>, vector<4x8xf32>,
    %9 = vector.extract_strided_slice %4 {offsets = [8, 0], sizes = [4, 8], strides = [1, 1]} : vector<48x32xf32> to vector<4x8xf32>
    %c0_8 = arith.constant 0 : index
    %c16 = arith.constant 16 : index
    %10 = vector.load %arg7[%c0_8, %c16] : memref<48x32xf32, #tpu.memory_space<vmem>>, vector<4x8xf32>
    tpu.vector_store %arg7[%c0_8, %c16], %9 {strides = array<i32>} : memref<48x32xf32, #tpu.memory_space<vmem>>, vector<4x8xf32>,
    %11 = vector.extract_strided_slice %4 {offsets = [12, 0], sizes = [4, 8], strides = [1, 1]} : vector<48x32xf32> to vector<4x8xf32>
    %c0_9 = arith.constant 0 : index
    %c24 = arith.constant 24 : index
    %12 = vector.load %arg7[%c0_9, %c24] : memref<48x32xf32, #tpu.memory_space<vmem>>, vector<4x8xf32>
    tpu.vector_store %arg7[%c0_9, %c24], %11 {strides = array<i32>} : memref<48x32xf32, #tpu.memory_space<vmem>>, vector<4x8xf32>,
    %13 = vector.extract_strided_slice %4 {offsets = [16, 0], sizes = [4, 8], strides = [1, 1]} : vector<48x32xf32> to vector<4x8xf32>
    %c4 = arith.constant 4 : index
    %c0_10 = arith.constant 0 : index
    %14 = vector.load %arg7[%c4, %c0_10] : memref<48x32xf32, #tpu.memory_space<vmem>>, vector<4x8xf32>
    tpu.vector_store %arg7[%c4, %c0_10], %13 {strides = array<i32>} : memref<48x32xf32, #tpu.memory_space<vmem>>, vector<4x8xf32>,
    %15 = vector.extract_strided_slice %4 {offsets = [20, 0], sizes = [4, 8], strides = [1, 1]} : vector<48x32xf32> to vector<4x8xf32>
    %c4_11 = arith.constant 4 : index
    %c8_12 = arith.constant 8 : index
    %16 = vector.load %arg7[%c4_11, %c8_12] : memref<48x32xf32, #tpu.memory_space<vmem>>, vector<4x8xf32>
    tpu.vector_store %arg7[%c4_11, %c8_12], %15 {strides = array<i32>} : memref<48x32xf32, #tpu.memory_space<vmem>>, vector<4x8xf32>,
    %17 = vector.extract_strided_slice %4 {offsets = [24, 0], sizes = [4, 8], strides = [1, 1]} : vector<48x32xf32> to vector<4x8xf32>
    %c4_13 = arith.constant 4 : index
    %c16_14 = arith.constant 16 : index
    %18 = vector.load %arg7[%c4_13, %c16_14] : memref<48x32xf32, #tpu.memory_space<vmem>>, vector<4x8xf32>
    tpu.vector_store %arg7[%c4_13, %c16_14], %17 {strides = array<i32>} : memref<48x32xf32, #tpu.memory_space<vmem>>, vector<4x8xf32>,
    %19 = vector.extract_strided_slice %4 {offsets = [28, 0], sizes = [4, 8], strides = [1, 1]} : vector<48x32xf32> to vector<4x8xf32>
    %c4_15 = arith.constant 4 : index
    %c24_16 = arith.constant 24 : index
    %20 = vector.load %arg7[%c4_15, %c24_16] : memref<48x32xf32, #tpu.memory_space<vmem>>, vector<4x8xf32>
    tpu.vector_store %arg7[%c4_15, %c24_16], %19 {strides = array<i32>} : memref<48x32xf32, #tpu.memory_space<vmem>>, vector<4x8xf32>,
    %21 = vector.extract_strided_slice %4 {offsets = [32, 0], sizes = [4, 8], strides = [1, 1]} : vector<48x32xf32> to vector<4x8xf32>
    %c8_17 = arith.constant 8 : index
    %c0_18 = arith.constant 0 : index
    %22 = vector.load %arg7[%c8_17, %c0_18] : memref<48x32xf32, #tpu.memory_space<vmem>>, vector<4x8xf32>
    tpu.vector_store %arg7[%c8_17, %c0_18], %21 {strides = array<i32>} : memref<48x32xf32, #tpu.memory_space<vmem>>, vector<4x8xf32>,
    %23 = vector.extract_strided_slice %4 {offsets = [36, 0], sizes = [4, 8], strides = [1, 1]} : vector<48x32xf32> to vector<4x8xf32>
    %c8_19 = arith.constant 8 : index
    %c8_20 = arith.constant 8 : index
    %24 = vector.load %arg7[%c8_19, %c8_20] : memref<48x32xf32, #tpu.memory_space<vmem>>, vector<4x8xf32>
    tpu.vector_store %arg7[%c8_19, %c8_20], %23 {strides = array<i32>} : memref<48x32xf32, #tpu.memory_space<vmem>>, vector<4x8xf32>,
    %25 = vector.extract_strided_slice %4 {offsets = [40, 0], sizes = [4, 8], strides = [1, 1]} : vector<48x32xf32> to vector<4x8xf32>
    %c8_21 = arith.constant 8 : index
    %c16_22 = arith.constant 16 : index
    %26 = vector.load %arg7[%c8_21, %c16_22] : memref<48x32xf32, #tpu.memory_space<vmem>>, vector<4x8xf32>
    tpu.vector_store %arg7[%c8_21, %c16_22], %25 {strides = array<i32>} : memref<48x32xf32, #tpu.memory_space<vmem>>, vector<4x8xf32>,
    %27 = vector.extract_strided_slice %4 {offsets = [44, 0], sizes = [4, 8], strides = [1, 1]} : vector<48x32xf32> to vector<4x8xf32>
    %c8_23 = arith.constant 8 : index
    %c24_24 = arith.constant 24 : index
    %28 = vector.load %arg7[%c8_23, %c24_24] : memref<48x32xf32, #tpu.memory_space<vmem>>, vector<4x8xf32>
    tpu.vector_store %arg7[%c8_23, %c24_24], %27 {strides = array<i32>} : memref<48x32xf32, #tpu.memory_space<vmem>>, vector<4x8xf32>,
    %29 = vector.extract_strided_slice %4 {offsets = [0, 8], sizes = [4, 8], strides = [1, 1]} : vector<48x32xf32> to vector<4x8xf32>
    %c12 = arith.constant 12 : index
    %c0_25 = arith.constant 0 : index
    %30 = vector.load %arg7[%c12, %c0_25] : memref<48x32xf32, #tpu.memory_space<vmem>>, vector<4x8xf32>
    tpu.vector_store %arg7[%c12, %c0_25], %29 {strides = array<i32>} : memref<48x32xf32, #tpu.memory_space<vmem>>, vector<4x8xf32>,
    %31 = vector.extract_strided_slice %4 {offsets = [4, 8], sizes = [4, 8], strides = [1, 1]} : vector<48x32xf32> to vector<4x8xf32>
    %c12_26 = arith.constant 12 : index
    %c8_27 = arith.constant 8 : index
    %32 = vector.load %arg7[%c12_26, %c8_27] : memref<48x32xf32, #tpu.memory_space<vmem>>, vector<4x8xf32>
    tpu.vector_store %arg7[%c12_26, %c8_27], %31 {strides = array<i32>} : memref<48x32xf32, #tpu.memory_space<vmem>>, vector<4x8xf32>,
    %33 = vector.extract_strided_slice %4 {offsets = [8, 8], sizes = [4, 8], strides = [1, 1]} : vector<48x32xf32> to vector<4x8xf32>
    %c12_28 = arith.constant 12 : index
    %c16_29 = arith.constant 16 : index
    %34 = vector.load %arg7[%c12_28, %c16_29] : memref<48x32xf32, #tpu.memory_space<vmem>>, vector<4x8xf32>
    tpu.vector_store %arg7[%c12_28, %c16_29], %33 {strides = array<i32>} : memref<48x32xf32, #tpu.memory_space<vmem>>, vector<4x8xf32>,
    %35 = vector.extract_strided_slice %4 {offsets = [12, 8], sizes = [4, 8], strides = [1, 1]} : vector<48x32xf32> to vector<4x8xf32>
    %c12_30 = arith.constant 12 : index
    %c24_31 = arith.constant 24 : index
    %36 = vector.load %arg7[%c12_30, %c24_31] : memref<48x32xf32, #tpu.memory_space<vmem>>, vector<4x8xf32>
    tpu.vector_store %arg7[%c12_30, %c24_31], %35 {strides = array<i32>} : memref<48x32xf32, #tpu.memory_space<vmem>>, vector<4x8xf32>,
    %37 = vector.extract_strided_slice %4 {offsets = [16, 8], sizes = [4, 8], strides = [1, 1]} : vector<48x32xf32> to vector<4x8xf32>
    %c16_32 = arith.constant 16 : index
    %c0_33 = arith.constant 0 : index
    %38 = vector.load %arg7[%c16_32, %c0_33] : memref<48x32xf32, #tpu.memory_space<vmem>>, vector<4x8xf32>
    tpu.vector_store %arg7[%c16_32, %c0_33], %37 {strides = array<i32>} : memref<48x32xf32, #tpu.memory_space<vmem>>, vector<4x8xf32>,
    %39 = vector.extract_strided_slice %4 {offsets = [20, 8], sizes = [4, 8], strides = [1, 1]} : vector<48x32xf32> to vector<4x8xf32>
    %c16_34 = arith.constant 16 : index
    %c8_35 = arith.constant 8 : index
    %40 = vector.load %arg7[%c16_34, %c8_35] : memref<48x32xf32, #tpu.memory_space<vmem>>, vector<4x8xf32>
    tpu.vector_store %arg7[%c16_34, %c8_35], %39 {strides = array<i32>} : memref<48x32xf32, #tpu.memory_space<vmem>>, vector<4x8xf32>,
    %41 = vector.extract_strided_slice %4 {offsets = [24, 8], sizes = [4, 8], strides = [1, 1]} : vector<48x32xf32> to vector<4x8xf32>
    %c16_36 = arith.constant 16 : index
    %c16_37 = arith.constant 16 : index
    %42 = vector.load %arg7[%c16_36, %c16_37] : memref<48x32xf32, #tpu.memory_space<vmem>>, vector<4x8xf32>
    tpu.vector_store %arg7[%c16_36, %c16_37], %41 {strides = array<i32>} : memref<48x32xf32, #tpu.memory_space<vmem>>, vector<4x8xf32>,
    %43 = vector.extract_strided_slice %4 {offsets = [28, 8], sizes = [4, 8], strides = [1, 1]} : vector<48x32xf32> to vector<4x8xf32>
    %c16_38 = arith.constant 16 : index
    %c24_39 = arith.constant 24 : index
    %44 = vector.load %arg7[%c16_38, %c24_39] : memref<48x32xf32, #tpu.memory_space<vmem>>, vector<4x8xf32>
    tpu.vector_store %arg7[%c16_38, %c24_39], %43 {strides = array<i32>} : memref<48x32xf32, #tpu.memory_space<vmem>>, vector<4x8xf32>,
    %45 = vector.extract_strided_slice %4 {offsets = [32, 8], sizes = [4, 8], strides = [1, 1]} : vector<48x32xf32> to vector<4x8xf32>
    %c20 = arith.constant 20 : index
    %c0_40 = arith.constant 0 : index
    %46 = vector.load %arg7[%c20, %c0_40] : memref<48x32xf32, #tpu.memory_space<vmem>>, vector<4x8xf32>
    tpu.vector_store %arg7[%c20, %c0_40], %45 {strides = array<i32>} : memref<48x32xf32, #tpu.memory_space<vmem>>, vector<4x8xf32>,
    %47 = vector.extract_strided_slice %4 {offsets = [36, 8], sizes = [4, 8], strides = [1, 1]} : vector<48x32xf32> to vector<4x8xf32>
    %c20_41 = arith.constant 20 : index
    %c8_42 = arith.constant 8 : index
    %48 = vector.load %arg7[%c20_41, %c8_42] : memref<48x32xf32, #tpu.memory_space<vmem>>, vector<4x8xf32>
    tpu.vector_store %arg7[%c20_41, %c8_42], %47 {strides = array<i32>} : memref<48x32xf32, #tpu.memory_space<vmem>>, vector<4x8xf32>,
    %49 = vector.extract_strided_slice %4 {offsets = [40, 8], sizes = [4, 8], strides = [1, 1]} : vector<48x32xf32> to vector<4x8xf32>
    %c20_43 = arith.constant 20 : index
    %c16_44 = arith.constant 16 : index
    %50 = vector.load %arg7[%c20_43, %c16_44] : memref<48x32xf32, #tpu.memory_space<vmem>>, vector<4x8xf32>
    tpu.vector_store %arg7[%c20_43, %c16_44], %49 {strides = array<i32>} : memref<48x32xf32, #tpu.memory_space<vmem>>, vector<4x8xf32>,
    %51 = vector.extract_strided_slice %4 {offsets = [44, 8], sizes = [4, 8], strides = [1, 1]} : vector<48x32xf32> to vector<4x8xf32>
    %c20_45 = arith.constant 20 : index
    %c24_46 = arith.constant 24 : index
    %52 = vector.load %arg7[%c20_45, %c24_46] : memref<48x32xf32, #tpu.memory_space<vmem>>, vector<4x8xf32>
    tpu.vector_store %arg7[%c20_45, %c24_46], %51 {strides = array<i32>} : memref<48x32xf32, #tpu.memory_space<vmem>>, vector<4x8xf32>,
    %53 = vector.extract_strided_slice %4 {offsets = [0, 16], sizes = [4, 8], strides = [1, 1]} : vector<48x32xf32> to vector<4x8xf32>
    %c24_47 = arith.constant 24 : index
    %c0_48 = arith.constant 0 : index
    %54 = vector.load %arg7[%c24_47, %c0_48] : memref<48x32xf32, #tpu.memory_space<vmem>>, vector<4x8xf32>
    tpu.vector_store %arg7[%c24_47, %c0_48], %53 {strides = array<i32>} : memref<48x32xf32, #tpu.memory_space<vmem>>, vector<4x8xf32>,
    %55 = vector.extract_strided_slice %4 {offsets = [4, 16], sizes = [4, 8], strides = [1, 1]} : vector<48x32xf32> to vector<4x8xf32>
    %c24_49 = arith.constant 24 : index
    %c8_50 = arith.constant 8 : index
    %56 = vector.load %arg7[%c24_49, %c8_50] : memref<48x32xf32, #tpu.memory_space<vmem>>, vector<4x8xf32>
    tpu.vector_store %arg7[%c24_49, %c8_50], %55 {strides = array<i32>} : memref<48x32xf32, #tpu.memory_space<vmem>>, vector<4x8xf32>,
    %57 = vector.extract_strided_slice %4 {offsets = [8, 16], sizes = [4, 8], strides = [1, 1]} : vector<48x32xf32> to vector<4x8xf32>
    %c24_51 = arith.constant 24 : index
    %c16_52 = arith.constant 16 : index
    %58 = vector.load %arg7[%c24_51, %c16_52] : memref<48x32xf32, #tpu.memory_space<vmem>>, vector<4x8xf32>
    tpu.vector_store %arg7[%c24_51, %c16_52], %57 {strides = array<i32>} : memref<48x32xf32, #tpu.memory_space<vmem>>, vector<4x8xf32>,
    %59 = vector.extract_strided_slice %4 {offsets = [12, 16], sizes = [4, 8], strides = [1, 1]} : vector<48x32xf32> to vector<4x8xf32>
    %c24_53 = arith.constant 24 : index
    %c24_54 = arith.constant 24 : index
    %60 = vector.load %arg7[%c24_53, %c24_54] : memref<48x32xf32, #tpu.memory_space<vmem>>, vector<4x8xf32>
    tpu.vector_store %arg7[%c24_53, %c24_54], %59 {strides = array<i32>} : memref<48x32xf32, #tpu.memory_space<vmem>>, vector<4x8xf32>,
    %61 = vector.extract_strided_slice %4 {offsets = [16, 16], sizes = [4, 8], strides = [1, 1]} : vector<48x32xf32> to vector<4x8xf32>
    %c28 = arith.constant 28 : index
    %c0_55 = arith.constant 0 : index
    %62 = vector.load %arg7[%c28, %c0_55] : memref<48x32xf32, #tpu.memory_space<vmem>>, vector<4x8xf32>
    tpu.vector_store %arg7[%c28, %c0_55], %61 {strides = array<i32>} : memref<48x32xf32, #tpu.memory_space<vmem>>, vector<4x8xf32>,
    %63 = vector.extract_strided_slice %4 {offsets = [20, 16], sizes = [4, 8], strides = [1, 1]} : vector<48x32xf32> to vector<4x8xf32>
    %c28_56 = arith.constant 28 : index
    %c8_57 = arith.constant 8 : index
    %64 = vector.load %arg7[%c28_56, %c8_57] : memref<48x32xf32, #tpu.memory_space<vmem>>, vector<4x8xf32>
    tpu.vector_store %arg7[%c28_56, %c8_57], %63 {strides = array<i32>} : memref<48x32xf32, #tpu.memory_space<vmem>>, vector<4x8xf32>,
    %65 = vector.extract_strided_slice %4 {offsets = [24, 16], sizes = [4, 8], strides = [1, 1]} : vector<48x32xf32> to vector<4x8xf32>
    %c28_58 = arith.constant 28 : index
    %c16_59 = arith.constant 16 : index
    %66 = vector.load %arg7[%c28_58, %c16_59] : memref<48x32xf32, #tpu.memory_space<vmem>>, vector<4x8xf32>
    tpu.vector_store %arg7[%c28_58, %c16_59], %65 {strides = array<i32>} : memref<48x32xf32, #tpu.memory_space<vmem>>, vector<4x8xf32>,
    %67 = vector.extract_strided_slice %4 {offsets = [28, 16], sizes = [4, 8], strides = [1, 1]} : vector<48x32xf32> to vector<4x8xf32>
    %c28_60 = arith.constant 28 : index
    %c24_61 = arith.constant 24 : index
    %68 = vector.load %arg7[%c28_60, %c24_61] : memref<48x32xf32, #tpu.memory_space<vmem>>, vector<4x8xf32>
    tpu.vector_store %arg7[%c28_60, %c24_61], %67 {strides = array<i32>} : memref<48x32xf32, #tpu.memory_space<vmem>>, vector<4x8xf32>,
    %69 = vector.extract_strided_slice %4 {offsets = [32, 16], sizes = [4, 8], strides = [1, 1]} : vector<48x32xf32> to vector<4x8xf32>
    %c32 = arith.constant 32 : index
    %c0_62 = arith.constant 0 : index
    %70 = vector.load %arg7[%c32, %c0_62] : memref<48x32xf32, #tpu.memory_space<vmem>>, vector<4x8xf32>
    tpu.vector_store %arg7[%c32, %c0_62], %69 {strides = array<i32>} : memref<48x32xf32, #tpu.memory_space<vmem>>, vector<4x8xf32>,
    %71 = vector.extract_strided_slice %4 {offsets = [36, 16], sizes = [4, 8], strides = [1, 1]} : vector<48x32xf32> to vector<4x8xf32>
    %c32_63 = arith.constant 32 : index
    %c8_64 = arith.constant 8 : index
    %72 = vector.load %arg7[%c32_63, %c8_64] : memref<48x32xf32, #tpu.memory_space<vmem>>, vector<4x8xf32>
    tpu.vector_store %arg7[%c32_63, %c8_64], %71 {strides = array<i32>} : memref<48x32xf32, #tpu.memory_space<vmem>>, vector<4x8xf32>,
    %73 = vector.extract_strided_slice %4 {offsets = [40, 16], sizes = [4, 8], strides = [1, 1]} : vector<48x32xf32> to vector<4x8xf32>
    %c32_65 = arith.constant 32 : index
    %c16_66 = arith.constant 16 : index
    %74 = vector.load %arg7[%c32_65, %c16_66] : memref<48x32xf32, #tpu.memory_space<vmem>>, vector<4x8xf32>
    tpu.vector_store %arg7[%c32_65, %c16_66], %73 {strides = array<i32>} : memref<48x32xf32, #tpu.memory_space<vmem>>, vector<4x8xf32>,
    %75 = vector.extract_strided_slice %4 {offsets = [44, 16], sizes = [4, 8], strides = [1, 1]} : vector<48x32xf32> to vector<4x8xf32>
    %c32_67 = arith.constant 32 : index
    %c24_68 = arith.constant 24 : index
    %76 = vector.load %arg7[%c32_67, %c24_68] : memref<48x32xf32, #tpu.memory_space<vmem>>, vector<4x8xf32>
    tpu.vector_store %arg7[%c32_67, %c24_68], %75 {strides = array<i32>} : memref<48x32xf32, #tpu.memory_space<vmem>>, vector<4x8xf32>,
    %77 = vector.extract_strided_slice %4 {offsets = [0, 24], sizes = [4, 8], strides = [1, 1]} : vector<48x32xf32> to vector<4x8xf32>
    %c36 = arith.constant 36 : index
    %c0_69 = arith.constant 0 : index
    %78 = vector.load %arg7[%c36, %c0_69] : memref<48x32xf32, #tpu.memory_space<vmem>>, vector<4x8xf32>
    tpu.vector_store %arg7[%c36, %c0_69], %77 {strides = array<i32>} : memref<48x32xf32, #tpu.memory_space<vmem>>, vector<4x8xf32>,
    %79 = vector.extract_strided_slice %4 {offsets = [4, 24], sizes = [4, 8], strides = [1, 1]} : vector<48x32xf32> to vector<4x8xf32>
    %c36_70 = arith.constant 36 : index
    %c8_71 = arith.constant 8 : index
    %80 = vector.load %arg7[%c36_70, %c8_71] : memref<48x32xf32, #tpu.memory_space<vmem>>, vector<4x8xf32>
    tpu.vector_store %arg7[%c36_70, %c8_71], %79 {strides = array<i32>} : memref<48x32xf32, #tpu.memory_space<vmem>>, vector<4x8xf32>,
    %81 = vector.extract_strided_slice %4 {offsets = [8, 24], sizes = [4, 8], strides = [1, 1]} : vector<48x32xf32> to vector<4x8xf32>
    %c36_72 = arith.constant 36 : index
    %c16_73 = arith.constant 16 : index
    %82 = vector.load %arg7[%c36_72, %c16_73] : memref<48x32xf32, #tpu.memory_space<vmem>>, vector<4x8xf32>
    tpu.vector_store %arg7[%c36_72, %c16_73], %81 {strides = array<i32>} : memref<48x32xf32, #tpu.memory_space<vmem>>, vector<4x8xf32>,
    %83 = vector.extract_strided_slice %4 {offsets = [12, 24], sizes = [4, 8], strides = [1, 1]} : vector<48x32xf32> to vector<4x8xf32>
    %c36_74 = arith.constant 36 : index
    %c24_75 = arith.constant 24 : index
    %84 = vector.load %arg7[%c36_74, %c24_75] : memref<48x32xf32, #tpu.memory_space<vmem>>, vector<4x8xf32>
    tpu.vector_store %arg7[%c36_74, %c24_75], %83 {strides = array<i32>} : memref<48x32xf32, #tpu.memory_space<vmem>>, vector<4x8xf32>,
    %85 = vector.extract_strided_slice %4 {offsets = [16, 24], sizes = [4, 8], strides = [1, 1]} : vector<48x32xf32> to vector<4x8xf32>
    %c40 = arith.constant 40 : index
    %c0_76 = arith.constant 0 : index
    %86 = vector.load %arg7[%c40, %c0_76] : memref<48x32xf32, #tpu.memory_space<vmem>>, vector<4x8xf32>
    tpu.vector_store %arg7[%c40, %c0_76], %85 {strides = array<i32>} : memref<48x32xf32, #tpu.memory_space<vmem>>, vector<4x8xf32>,
    %87 = vector.extract_strided_slice %4 {offsets = [20, 24], sizes = [4, 8], strides = [1, 1]} : vector<48x32xf32> to vector<4x8xf32>
    %c40_77 = arith.constant 40 : index
    %c8_78 = arith.constant 8 : index
    %88 = vector.load %arg7[%c40_77, %c8_78] : memref<48x32xf32, #tpu.memory_space<vmem>>, vector<4x8xf32>
    tpu.vector_store %arg7[%c40_77, %c8_78], %87 {strides = array<i32>} : memref<48x32xf32, #tpu.memory_space<vmem>>, vector<4x8xf32>,
    %89 = vector.extract_strided_slice %4 {offsets = [24, 24], sizes = [4, 8], strides = [1, 1]} : vector<48x32xf32> to vector<4x8xf32>
    %c40_79 = arith.constant 40 : index
    %c16_80 = arith.constant 16 : index
    %90 = vector.load %arg7[%c40_79, %c16_80] : memref<48x32xf32, #tpu.memory_space<vmem>>, vector<4x8xf32>
    tpu.vector_store %arg7[%c40_79, %c16_80], %89 {strides = array<i32>} : memref<48x32xf32, #tpu.memory_space<vmem>>, vector<4x8xf32>,
    %91 = vector.extract_strided_slice %4 {offsets = [28, 24], sizes = [4, 8], strides = [1, 1]} : vector<48x32xf32> to vector<4x8xf32>
    %c40_81 = arith.constant 40 : index
    %c24_82 = arith.constant 24 : index
    %92 = vector.load %arg7[%c40_81, %c24_82] : memref<48x32xf32, #tpu.memory_space<vmem>>, vector<4x8xf32>
    tpu.vector_store %arg7[%c40_81, %c24_82], %91 {strides = array<i32>} : memref<48x32xf32, #tpu.memory_space<vmem>>, vector<4x8xf32>,
    %93 = vector.extract_strided_slice %4 {offsets = [32, 24], sizes = [4, 8], strides = [1, 1]} : vector<48x32xf32> to vector<4x8xf32>
    %c44 = arith.constant 44 : index
    %c0_83 = arith.constant 0 : index
    %94 = vector.load %arg7[%c44, %c0_83] : memref<48x32xf32, #tpu.memory_space<vmem>>, vector<4x8xf32>
    tpu.vector_store %arg7[%c44, %c0_83], %93 {strides = array<i32>} : memref<48x32xf32, #tpu.memory_space<vmem>>, vector<4x8xf32>,
    %95 = vector.extract_strided_slice %4 {offsets = [36, 24], sizes = [4, 8], strides = [1, 1]} : vector<48x32xf32> to vector<4x8xf32>
    %c44_84 = arith.constant 44 : index
    %c8_85 = arith.constant 8 : index
    %96 = vector.load %arg7[%c44_84, %c8_85] : memref<48x32xf32, #tpu.memory_space<vmem>>, vector<4x8xf32>
    tpu.vector_store %arg7[%c44_84, %c8_85], %95 {strides = array<i32>} : memref<48x32xf32, #tpu.memory_space<vmem>>, vector<4x8xf32>,
    %97 = vector.extract_strided_slice %4 {offsets = [40, 24], sizes = [4, 8], strides = [1, 1]} : vector<48x32xf32> to vector<4x8xf32>
    %c44_86 = arith.constant 44 : index
    %c16_87 = arith.constant 16 : index
    %98 = vector.load %arg7[%c44_86, %c16_87] : memref<48x32xf32, #tpu.memory_space<vmem>>, vector<4x8xf32>
    tpu.vector_store %arg7[%c44_86, %c16_87], %97 {strides = array<i32>} : memref<48x32xf32, #tpu.memory_space<vmem>>, vector<4x8xf32>,
    %99 = vector.extract_strided_slice %4 {offsets = [44, 24], sizes = [4, 8], strides = [1, 1]} : vector<48x32xf32> to vector<4x8xf32>
    %c44_88 = arith.constant 44 : index
    %c24_89 = arith.constant 24 : index
    %100 = vector.load %arg7[%c44_88, %c24_89] : memref<48x32xf32, #tpu.memory_space<vmem>>, vector<4x8xf32>
    tpu.vector_store %arg7[%c44_88, %c24_89], %99 {strides = array<i32>} : memref<48x32xf32, #tpu.memory_space<vmem>>, vector<4x8xf32>,
    %c0_90 = arith.constant 0 : index
    %c0_91 = arith.constant 0 : index
    %101 = vector.load %arg7[%c0_90, %c0_91] : memref<48x32xf32, #tpu.memory_space<vmem>>, vector<48x32xf32>
    %c0_92 = arith.constant 0 : index
    %c0_93 = arith.constant 0 : index
    %102 = vector.load %arg4[%c0_92, %c0_93] : memref<48x128xf32, #tpu.memory_space<vmem>>, vector<48x128xf32>
    %cst_94 = arith.constant dense<0.000000e+00> : vector<32x128xf32>
    %103 = tpu.matmul %101, %102, %cst_94 {dimension_numbers = #tpu.dot_dimension_numbers<[0], [0], [1], [1], [0, 1, 1, 1], [], []>, precision = #tpu.contract_precision<fp32>} : vector<48x32xf32>, vector<48x128xf32>, vector<32x128xf32> -> vector<32x128xf32>
    %c0_95 = arith.constant 0 : index
    %c0_96 = arith.constant 0 : index
    %104 = vector.load %arg5[%c0_95, %c0_96] : memref<1x128xf32, #tpu.memory_space<vmem>>, vector<1x128xf32>
    %105 = vector.broadcast %104 : vector<1x128xf32> to vector<32x128xf32>
    %106 = arith.addf %103, %105 : vector<32x128xf32>
    %c0_97 = arith.constant 0 : index
    %c0_98 = arith.constant 0 : index
    %c0_99 = arith.constant 0 : index
    %107 = vector.load %arg6[%c0_97, %c0_98, %c0_99] : memref<1x32x128xf32, #tpu.memory_space<vmem>>, vector<1x32x128xf32>
    %108 = vector.shape_cast %107 : vector<1x32x128xf32> to vector<32x128xf32>
    %109 = vector.shape_cast %106 : vector<32x128xf32> to vector<1x32x128xf32>
    tpu.vector_store %arg6[%c0_97, %c0_98, %c0_99], %109 {strides = array<i32>} : memref<1x32x128xf32, #tpu.memory_space<vmem>>, vector<1x32x128xf32>,
    return
  }
  func.func @transform_0(%arg0: i32, %arg1: i32) -> (i32, i32, i32, i32) {
    %c0_i32 = arith.constant 0 : i32
    %c0_i32_0 = arith.constant 0 : i32
    %c0_i32_1 = arith.constant 0 : i32
    return %arg0, %c0_i32, %arg1, %c0_i32_0 : i32, i32, i32, i32
  }
  func.func @transform_1(%arg0: i32, %arg1: i32) -> (i32, i32) {
    %c0_i32 = arith.constant 0 : i32
    %c0_i32_0 = arith.constant 0 : i32
    %c0_i32_1 = arith.constant 0 : i32
    return %c0_i32, %c0_i32_0 : i32, i32
  }
  func.func @transform_2(%arg0: i32, %arg1: i32) -> (i32, i32) {
    %c0_i32 = arith.constant 0 : i32
    %c0_i32_0 = arith.constant 0 : i32
    %c0_i32_1 = arith.constant 0 : i32
    return %c0_i32, %c0_i32_0 : i32, i32
  }
  func.func @transform_3(%arg0: i32, %arg1: i32) -> (i32, i32) {
    %c0_i32 = arith.constant 0 : i32
    %c0_i32_0 = arith.constant 0 : i32
    %c0_i32_1 = arith.constant 0 : i32
    return %c0_i32, %c0_i32_0 : i32, i32
  }
  func.func @transform_4(%arg0: i32, %arg1: i32) -> (i32, i32, i32) {
    %c0_i32 = arith.constant 0 : i32
    %c0_i32_0 = arith.constant 0 : i32
    return %arg0, %arg1, %c0_i32 : i32, i32, i32
  }
}

module attributes {stable_mosaic.version = 11 : i64} {
  func.func @kernel(%arg0: i32, %arg1: i32, %arg2: memref<1x3x16x32xf32, #tpu.memory_space<vmem>>, %arg3: memref<32x32xf32, #tpu.memory_space<vmem>>, %arg4: memref<48x128xf32, #tpu.memory_space<vmem>>, %arg5: memref<1x128xf32, #tpu.memory_space<vmem>>, %arg6: memref<1x32x128xf32, #tpu.memory_space<vmem>>, %arg7: memref<48x32xf32, #tpu.memory_space<vmem>>) attributes {dimension_semantics = [#tpu.dimension_semantics<parallel>, #tpu.dimension_semantics<parallel>], iteration_bounds = array<i64: 2, 2>, scalar_prefetch = 0 : i64, scratch_operands = 1 : i64, tpu.core_type = #tpu.core_type<tc>, window_params = [{transform_indices = @transform_0, window_bounds = array<i64: 1, 3, 16, 32>}, {pipeline_mode = #tpu.pipeline_mode<synchronous>, transform_indices = @transform_1, window_bounds = array<i64: 32, 32>}, {pipeline_mode = #tpu.pipeline_mode<synchronous>, transform_indices = @transform_2, window_bounds = array<i64: 48, 128>}, {pipeline_mode = #tpu.pipeline_mode<synchronous>, transform_indices = @transform_3, window_bounds = array<i64: 1, 128>}, {transform_indices = @transform_4, window_bounds = array<i64: 1, 32, 128>}]} {
    %c0 = arith.constant 0 : index
    %c0_0 = arith.constant 0 : index
    %c0_1 = arith.constant 0 : index
    %c0_2 = arith.constant 0 : index
    %0 = vector.load %arg2[%c0, %c0_0, %c0_1, %c0_2] : memref<1x3x16x32xf32, #tpu.memory_space<vmem>>, vector<1x3x16x32xf32>
    %1 = vector.shape_cast %0 : vector<1x3x16x32xf32> to vector<3x16x32xf32>
    %2 = vector.shape_cast %1 : vector<3x16x32xf32> to vector<48x32xf32>
    %c0_3 = arith.constant 0 : index
    %c0_4 = arith.constant 0 : index
    %3 = vector.load %arg3[%c0_3, %c0_4] : memref<32x32xf32, #tpu.memory_space<vmem>>, vector<32x32xf32>
    %cst = arith.constant dense<0.000000e+00> : vector<48x32xf32>
    %4 = tpu.matmul %2, %3, %cst {dimension_numbers = #tpu.dot_dimension_numbers<[1], [0], [0], [1], [0, 0, 1, 1], [], []>, precision = #tpu.contract_precision<fp32>} : vector<48x32xf32>, vector<32x32xf32>, vector<48x32xf32> -> vector<48x32xf32>
    %5 = vector.extract_strided_slice %4 {offsets = [0, 0], sizes = [4, 8], strides = [1, 1]} : vector<48x32xf32> to vector<4x8xf32>
    %c0_5 = arith.constant 0 : index
    %c0_6 = arith.constant 0 : index
    %6 = vector.load %arg7[%c0_5, %c0_6] : memref<48x32xf32, #tpu.memory_space<vmem>>, vector<4x8xf32>
    tpu.vector_store %arg7[%c0_5, %c0_6], %5 {strides = array<i32>} : memref<48x32xf32, #tpu.memory_space<vmem>>, vector<4x8xf32>,
    %7 = vector.extract_strided_slice %4 {offsets = [4, 0], sizes = [4, 8], strides = [1, 1]} : vector<48x32xf32> to vector<4x8xf32>
    %c0_7 = arith.constant 0 : index
    %c8 = arith.constant 8 : index
    %8 = vector.load %arg7[%c0_7, %c8] : memref<48x32xf32, #tpu.memory_space<vmem>>, vector<4x8xf32>
    tpu.vector_store %arg7[%c0_7, %c8], %7 {strides = array<i32>} : memref<48x32xf32, #tpu.memory_space<vmem>>, vector<4x8xf32>,
    %9 = vector.extract_strided_slice %4 {offsets = [8, 0], sizes = [4, 8], strides = [1, 1]} : vector<48x32xf32> to vector<4x8xf32>
    %c0_8 = arith.constant 0 : index
    %c16 = arith.constant 16 : index
    %10 = vector.load %arg7[%c0_8, %c16] : memref<48x32xf32, #tpu.memory_space<vmem>>, vector<4x8xf32>
    tpu.vector_store %arg7[%c0_8, %c16], %9 {strides = array<i32>} : memref<48x32xf32, #tpu.memory_space<vmem>>, vector<4x8xf32>,
    %11 = vector.extract_strided_slice %4 {offsets = [12, 0], sizes = [4, 8], strides = [1, 1]} : vector<48x32xf32> to vector<4x8xf32>
    %c0_9 = arith.constant 0 : index
    %c24 = arith.constant 24 : index
    %12 = vector.load %arg7[%c0_9, %c24] : memref<48x32xf32, #tpu.memory_space<vmem>>, vector<4x8xf32>
    tpu.vector_store %arg7[%c0_9, %c24], %11 {strides = array<i32>} : memref<48x32xf32, #tpu.memory_space<vmem>>, vector<4x8xf32>,
    %13 = vector.extract_strided_slice %4 {offsets = [16, 0], sizes = [4, 8], strides = [1, 1]} : vector<48x32xf32> to vector<4x8xf32>
    %c4 = arith.constant 4 : index
    %c0_10 = arith.constant 0 : index
    %14 = vector.load %arg7[%c4, %c0_10] : memref<48x32xf32, #tpu.memory_space<vmem>>, vector<4x8xf32>
    tpu.vector_store %arg7[%c4, %c0_10], %13 {strides = array<i32>} : memref<48x32xf32, #tpu.memory_space<vmem>>, vector<4x8xf32>,
    %15 = vector.extract_strided_slice %4 {offsets = [20, 0], sizes = [4, 8], strides = [1, 1]} : vector<48x32xf32> to vector<4x8xf32>
    %c4_11 = arith.constant 4 : index
    %c8_12 = arith.constant 8 : index
    %16 = vector.load %arg7[%c4_11, %c8_12] : memref<48x32xf32, #tpu.memory_space<vmem>>, vector<4x8xf32>
    tpu.vector_store %arg7[%c4_11, %c8_12], %15 {strides = array<i32>} : memref<48x32xf32, #tpu.memory_space<vmem>>, vector<4x8xf32>,
    %17 = vector.extract_strided_slice %4 {offsets = [24, 0], sizes = [4, 8], strides = [1, 1]} : vector<48x32xf32> to vector<4x8xf32>
    %c4_13 = arith.constant 4 : index
    %c16_14 = arith.constant 16 : index
    %18 = vector.load %arg7[%c4_13, %c16_14] : memref<48x32xf32, #tpu.memory_space<vmem>>, vector<4x8xf32>
    tpu.vector_store %arg7[%c4_13, %c16_14], %17 {strides = array<i32>} : memref<48x32xf32, #tpu.memory_space<vmem>>, vector<4x8xf32>,
    %19 = vector.extract_strided_slice %4 {offsets = [28, 0], sizes = [4, 8], strides = [1, 1]} : vector<48x32xf32> to vector<4x8xf32>
    %c4_15 = arith.constant 4 : index
    %c24_16 = arith.constant 24 : index
    %20 = vector.load %arg7[%c4_15, %c24_16] : memref<48x32xf32, #tpu.memory_space<vmem>>, vector<4x8xf32>
    tpu.vector_store %arg7[%c4_15, %c24_16], %19 {strides = array<i32>} : memref<48x32xf32, #tpu.memory_space<vmem>>, vector<4x8xf32>,
    %21 = vector.extract_strided_slice %4 {offsets = [32, 0], sizes = [4, 8], strides = [1, 1]} : vector<48x32xf32> to vector<4x8xf32>
    %c8_17 = arith.constant 8 : index
    %c0_18 = arith.constant 0 : index
    %22 = vector.load %arg7[%c8_17, %c0_18] : memref<48x32xf32, #tpu.memory_space<vmem>>, vector<4x8xf32>
    tpu.vector_store %arg7[%c8_17, %c0_18], %21 {strides = array<i32>} : memref<48x32xf32, #tpu.memory_space<vmem>>, vector<4x8xf32>,
    %23 = vector.extract_strided_slice %4 {offsets = [36, 0], sizes = [4, 8], strides = [1, 1]} : vector<48x32xf32> to vector<4x8xf32>
    %c8_19 = arith.constant 8 : index
    %c8_20 = arith.constant 8 : index
    %24 = vector.load %arg7[%c8_19, %c8_20] : memref<48x32xf32, #tpu.memory_space<vmem>>, vector<4x8xf32>
    tpu.vector_store %arg7[%c8_19, %c8_20], %23 {strides = array<i32>} : memref<48x32xf32, #tpu.memory_space<vmem>>, vector<4x8xf32>,
    %25 = vector.extract_strided_slice %4 {offsets = [40, 0], sizes = [4, 8], strides = [1, 1]} : vector<48x32xf32> to vector<4x8xf32>
    %c8_21 = arith.constant 8 : index
    %c16_22 = arith.constant 16 : index
    %26 = vector.load %arg7[%c8_21, %c16_22] : memref<48x32xf32, #tpu.memory_space<vmem>>, vector<4x8xf32>
    tpu.vector_store %arg7[%c8_21, %c16_22], %25 {strides = array<i32>} : memref<48x32xf32, #tpu.memory_space<vmem>>, vector<4x8xf32>,
    %27 = vector.extract_strided_slice %4 {offsets = [44, 0], sizes = [4, 8], strides = [1, 1]} : vector<48x32xf32> to vector<4x8xf32>
    %c8_23 = arith.constant 8 : index
    %c24_24 = arith.constant 24 : index
    %28 = vector.load %arg7[%c8_23, %c24_24] : memref<48x32xf32, #tpu.memory_space<vmem>>, vector<4x8xf32>
    tpu.vector_store %arg7[%c8_23, %c24_24], %27 {strides = array<i32>} : memref<48x32xf32, #tpu.memory_space<vmem>>, vector<4x8xf32>,
    %29 = vector.extract_strided_slice %4 {offsets = [0, 8], sizes = [4, 8], strides = [1, 1]} : vector<48x32xf32> to vector<4x8xf32>
    %c12 = arith.constant 12 : index
    %c0_25 = arith.constant 0 : index
    %30 = vector.load %arg7[%c12, %c0_25] : memref<48x32xf32, #tpu.memory_space<vmem>>, vector<4x8xf32>
    tpu.vector_store %arg7[%c12, %c0_25], %29 {strides = array<i32>} : memref<48x32xf32, #tpu.memory_space<vmem>>, vector<4x8xf32>,
    %31 = vector.extract_strided_slice %4 {offsets = [4, 8], sizes = [4, 8], strides = [1, 1]} : vector<48x32xf32> to vector<4x8xf32>
    %c12_26 = arith.constant 12 : index
    %c8_27 = arith.constant 8 : index
    %32 = vector.load %arg7[%c12_26, %c8_27] : memref<48x32xf32, #tpu.memory_space<vmem>>, vector<4x8xf32>
    tpu.vector_store %arg7[%c12_26, %c8_27], %31 {strides = array<i32>} : memref<48x32xf32, #tpu.memory_space<vmem>>, vector<4x8xf32>,
    %33 = vector.extract_strided_slice %4 {offsets = [8, 8], sizes = [4, 8], strides = [1, 1]} : vector<48x32xf32> to vector<4x8xf32>
    %c12_28 = arith.constant 12 : index
    %c16_29 = arith.constant 16 : index
    %34 = vector.load %arg7[%c12_28, %c16_29] : memref<48x32xf32, #tpu.memory_space<vmem>>, vector<4x8xf32>
    tpu.vector_store %arg7[%c12_28, %c16_29], %33 {strides = array<i32>} : memref<48x32xf32, #tpu.memory_space<vmem>>, vector<4x8xf32>,
    %35 = vector.extract_strided_slice %4 {offsets = [12, 8], sizes = [4, 8], strides = [1, 1]} : vector<48x32xf32> to vector<4x8xf32>
    %c12_30 = arith.constant 12 : index
    %c24_31 = arith.constant 24 : index
    %36 = vector.load %arg7[%c12_30, %c24_31] : memref<48x32xf32, #tpu.memory_space<vmem>>, vector<4x8xf32>
    tpu.vector_store %arg7[%c12_30, %c24_31], %35 {strides = array<i32>} : memref<48x32xf32, #tpu.memory_space<vmem>>, vector<4x8xf32>,
    %37 = vector.extract_strided_slice %4 {offsets = [16, 8], sizes = [4, 8], strides = [1, 1]} : vector<48x32xf32> to vector<4x8xf32>
    %c16_32 = arith.constant 16 : index
    %c0_33 = arith.constant 0 : index
    %38 = vector.load %arg7[%c16_32, %c0_33] : memref<48x32xf32, #tpu.memory_space<vmem>>, vector<4x8xf32>
    tpu.vector_store %arg7[%c16_32, %c0_33], %37 {strides = array<i32>} : memref<48x32xf32, #tpu.memory_space<vmem>>, vector<4x8xf32>,
    %39 = vector.extract_strided_slice %4 {offsets = [20, 8], sizes = [4, 8], strides = [1, 1]} : vector<48x32xf32> to vector<4x8xf32>
    %c16_34 = arith.constant 16 : index
    %c8_35 = arith.constant 8 : index
    %40 = vector.load %arg7[%c16_34, %c8_35] : memref<48x32xf32, #tpu.memory_space<vmem>>, vector<4x8xf32>
    tpu.vector_store %arg7[%c16_34, %c8_35], %39 {strides = array<i32>} : memref<48x32xf32, #tpu.memory_space<vmem>>, vector<4x8xf32>,
    %41 = vector.extract_strided_slice %4 {offsets = [24, 8], sizes = [4, 8], strides = [1, 1]} : vector<48x32xf32> to vector<4x8xf32>
    %c16_36 = arith.constant 16 : index
    %c16_37 = arith.constant 16 : index
    %42 = vector.load %arg7[%c16_36, %c16_37] : memref<48x32xf32, #tpu.memory_space<vmem>>, vector<4x8xf32>
    tpu.vector_store %arg7[%c16_36, %c16_37], %41 {strides = array<i32>} : memref<48x32xf32, #tpu.memory_space<vmem>>, vector<4x8xf32>,
    %43 = vector.extract_strided_slice %4 {offsets = [28, 8], sizes = [4, 8], strides = [1, 1]} : vector<48x32xf32> to vector<4x8xf32>
    %c16_38 = arith.constant 16 : index
    %c24_39 = arith.constant 24 : index
    %44 = vector.load %arg7[%c16_38, %c24_39] : memref<48x32xf32, #tpu.memory_space<vmem>>, vector<4x8xf32>
    tpu.vector_store %arg7[%c16_38, %c24_39], %43 {strides = array<i32>} : memref<48x32xf32, #tpu.memory_space<vmem>>, vector<4x8xf32>,
    %45 = vector.extract_strided_slice %4 {offsets = [32, 8], sizes = [4, 8], strides = [1, 1]} : vector<48x32xf32> to vector<4x8xf32>
    %c20 = arith.constant 20 : index
    %c0_40 = arith.constant 0 : index
    %46 = vector.load %arg7[%c20, %c0_40] : memref<48x32xf32, #tpu.memory_space<vmem>>, vector<4x8xf32>
    tpu.vector_store %arg7[%c20, %c0_40], %45 {strides = array<i32>} : memref<48x32xf32, #tpu.memory_space<vmem>>, vector<4x8xf32>,
    %47 = vector.extract_strided_slice %4 {offsets = [36, 8], sizes = [4, 8], strides = [1, 1]} : vector<48x32xf32> to vector<4x8xf32>
    %c20_41 = arith.constant 20 : index
    %c8_42 = arith.constant 8 : index
    %48 = vector.load %arg7[%c20_41, %c8_42] : memref<48x32xf32, #tpu.memory_space<vmem>>, vector<4x8xf32>
    tpu.vector_store %arg7[%c20_41, %c8_42], %47 {strides = array<i32>} : memref<48x32xf32, #tpu.memory_space<vmem>>, vector<4x8xf32>,
    %49 = vector.extract_strided_slice %4 {offsets = [40, 8], sizes = [4, 8], strides = [1, 1]} : vector<48x32xf32> to vector<4x8xf32>
    %c20_43 = arith.constant 20 : index
    %c16_44 = arith.constant 16 : index
    %50 = vector.load %arg7[%c20_43, %c16_44] : memref<48x32xf32, #tpu.memory_space<vmem>>, vector<4x8xf32>
    tpu.vector_store %arg7[%c20_43, %c16_44], %49 {strides = array<i32>} : memref<48x32xf32, #tpu.memory_space<vmem>>, vector<4x8xf32>,
    %51 = vector.extract_strided_slice %4 {offsets = [44, 8], sizes = [4, 8], strides = [1, 1]} : vector<48x32xf32> to vector<4x8xf32>
    %c20_45 = arith.constant 20 : index
    %c24_46 = arith.constant 24 : index
    %52 = vector.load %arg7[%c20_45, %c24_46] : memref<48x32xf32, #tpu.memory_space<vmem>>, vector<4x8xf32>
    tpu.vector_store %arg7[%c20_45, %c24_46], %51 {strides = array<i32>} : memref<48x32xf32, #tpu.memory_space<vmem>>, vector<4x8xf32>,
    %53 = vector.extract_strided_slice %4 {offsets = [0, 16], sizes = [4, 8], strides = [1, 1]} : vector<48x32xf32> to vector<4x8xf32>
    %c24_47 = arith.constant 24 : index
    %c0_48 = arith.constant 0 : index
    %54 = vector.load %arg7[%c24_47, %c0_48] : memref<48x32xf32, #tpu.memory_space<vmem>>, vector<4x8xf32>
    tpu.vector_store %arg7[%c24_47, %c0_48], %53 {strides = array<i32>} : memref<48x32xf32, #tpu.memory_space<vmem>>, vector<4x8xf32>,
    %55 = vector.extract_strided_slice %4 {offsets = [4, 16], sizes = [4, 8], strides = [1, 1]} : vector<48x32xf32> to vector<4x8xf32>
    %c24_49 = arith.constant 24 : index
    %c8_50 = arith.constant 8 : index
    %56 = vector.load %arg7[%c24_49, %c8_50] : memref<48x32xf32, #tpu.memory_space<vmem>>, vector<4x8xf32>
    tpu.vector_store %arg7[%c24_49, %c8_50], %55 {strides = array<i32>} : memref<48x32xf32, #tpu.memory_space<vmem>>, vector<4x8xf32>,
    %57 = vector.extract_strided_slice %4 {offsets = [8, 16], sizes = [4, 8], strides = [1, 1]} : vector<48x32xf32> to vector<4x8xf32>
    %c24_51 = arith.constant 24 : index
    %c16_52 = arith.constant 16 : index
    %58 = vector.load %arg7[%c24_51, %c16_52] : memref<48x32xf32, #tpu.memory_space<vmem>>, vector<4x8xf32>
    tpu.vector_store %arg7[%c24_51, %c16_52], %57 {strides = array<i32>} : memref<48x32xf32, #tpu.memory_space<vmem>>, vector<4x8xf32>,
    %59 = vector.extract_strided_slice %4 {offsets = [12, 16], sizes = [4, 8], strides = [1, 1]} : vector<48x32xf32> to vector<4x8xf32>
    %c24_53 = arith.constant 24 : index
    %c24_54 = arith.constant 24 : index
    %60 = vector.load %arg7[%c24_53, %c24_54] : memref<48x32xf32, #tpu.memory_space<vmem>>, vector<4x8xf32>
    tpu.vector_store %arg7[%c24_53, %c24_54], %59 {strides = array<i32>} : memref<48x32xf32, #tpu.memory_space<vmem>>, vector<4x8xf32>,
    %61 = vector.extract_strided_slice %4 {offsets = [16, 16], sizes = [4, 8], strides = [1, 1]} : vector<48x32xf32> to vector<4x8xf32>
    %c28 = arith.constant 28 : index
    %c0_55 = arith.constant 0 : index
    %62 = vector.load %arg7[%c28, %c0_55] : memref<48x32xf32, #tpu.memory_space<vmem>>, vector<4x8xf32>
    tpu.vector_store %arg7[%c28, %c0_55], %61 {strides = array<i32>} : memref<48x32xf32, #tpu.memory_space<vmem>>, vector<4x8xf32>,
    %63 = vector.extract_strided_slice %4 {offsets = [20, 16], sizes = [4, 8], strides = [1, 1]} : vector<48x32xf32> to vector<4x8xf32>
    %c28_56 = arith.constant 28 : index
    %c8_57 = arith.constant 8 : index
    %64 = vector.load %arg7[%c28_56, %c8_57] : memref<48x32xf32, #tpu.memory_space<vmem>>, vector<4x8xf32>
    tpu.vector_store %arg7[%c28_56, %c8_57], %63 {strides = array<i32>} : memref<48x32xf32, #tpu.memory_space<vmem>>, vector<4x8xf32>,
    %65 = vector.extract_strided_slice %4 {offsets = [24, 16], sizes = [4, 8], strides = [1, 1]} : vector<48x32xf32> to vector<4x8xf32>
    %c28_58 = arith.constant 28 : index
    %c16_59 = arith.constant 16 : index
    %66 = vector.load %arg7[%c28_58, %c16_59] : memref<48x32xf32, #tpu.memory_space<vmem>>, vector<4x8xf32>
    tpu.vector_store %arg7[%c28_58, %c16_59], %65 {strides = array<i32>} : memref<48x32xf32, #tpu.memory_space<vmem>>, vector<4x8xf32>,
    %67 = vector.extract_strided_slice %4 {offsets = [28, 16], sizes = [4, 8], strides = [1, 1]} : vector<48x32xf32> to vector<4x8xf32>
    %c28_60 = arith.constant 28 : index
    %c24_61 = arith.constant 24 : index
    %68 = vector.load %arg7[%c28_60, %c24_61] : memref<48x32xf32, #tpu.memory_space<vmem>>, vector<4x8xf32>
    tpu.vector_store %arg7[%c28_60, %c24_61], %67 {strides = array<i32>} : memref<48x32xf32, #tpu.memory_space<vmem>>, vector<4x8xf32>,
    %69 = vector.extract_strided_slice %4 {offsets = [32, 16], sizes = [4, 8], strides = [1, 1]} : vector<48x32xf32> to vector<4x8xf32>
    %c32 = arith.constant 32 : index
    %c0_62 = arith.constant 0 : index
    %70 = vector.load %arg7[%c32, %c0_62] : memref<48x32xf32, #tpu.memory_space<vmem>>, vector<4x8xf32>
    tpu.vector_store %arg7[%c32, %c0_62], %69 {strides = array<i32>} : memref<48x32xf32, #tpu.memory_space<vmem>>, vector<4x8xf32>,
    %71 = vector.extract_strided_slice %4 {offsets = [36, 16], sizes = [4, 8], strides = [1, 1]} : vector<48x32xf32> to vector<4x8xf32>
    %c32_63 = arith.constant 32 : index
    %c8_64 = arith.constant 8 : index
    %72 = vector.load %arg7[%c32_63, %c8_64] : memref<48x32xf32, #tpu.memory_space<vmem>>, vector<4x8xf32>
    tpu.vector_store %arg7[%c32_63, %c8_64], %71 {strides = array<i32>} : memref<48x32xf32, #tpu.memory_space<vmem>>, vector<4x8xf32>,
    %73 = vector.extract_strided_slice %4 {offsets = [40, 16], sizes = [4, 8], strides = [1, 1]} : vector<48x32xf32> to vector<4x8xf32>
    %c32_65 = arith.constant 32 : index
    %c16_66 = arith.constant 16 : index
    %74 = vector.load %arg7[%c32_65, %c16_66] : memref<48x32xf32, #tpu.memory_space<vmem>>, vector<4x8xf32>
    tpu.vector_store %arg7[%c32_65, %c16_66], %73 {strides = array<i32>} : memref<48x32xf32, #tpu.memory_space<vmem>>, vector<4x8xf32>,
    %75 = vector.extract_strided_slice %4 {offsets = [44, 16], sizes = [4, 8], strides = [1, 1]} : vector<48x32xf32> to vector<4x8xf32>
    %c32_67 = arith.constant 32 : index
    %c24_68 = arith.constant 24 : index
    %76 = vector.load %arg7[%c32_67, %c24_68] : memref<48x32xf32, #tpu.memory_space<vmem>>, vector<4x8xf32>
    tpu.vector_store %arg7[%c32_67, %c24_68], %75 {strides = array<i32>} : memref<48x32xf32, #tpu.memory_space<vmem>>, vector<4x8xf32>,
    %77 = vector.extract_strided_slice %4 {offsets = [0, 24], sizes = [4, 8], strides = [1, 1]} : vector<48x32xf32> to vector<4x8xf32>
    %c36 = arith.constant 36 : index
    %c0_69 = arith.constant 0 : index
    %78 = vector.load %arg7[%c36, %c0_69] : memref<48x32xf32, #tpu.memory_space<vmem>>, vector<4x8xf32>
    tpu.vector_store %arg7[%c36, %c0_69], %77 {strides = array<i32>} : memref<48x32xf32, #tpu.memory_space<vmem>>, vector<4x8xf32>,
    %79 = vector.extract_strided_slice %4 {offsets = [4, 24], sizes = [4, 8], strides = [1, 1]} : vector<48x32xf32> to vector<4x8xf32>
    %c36_70 = arith.constant 36 : index
    %c8_71 = arith.constant 8 : index
    %80 = vector.load %arg7[%c36_70, %c8_71] : memref<48x32xf32, #tpu.memory_space<vmem>>, vector<4x8xf32>
    tpu.vector_store %arg7[%c36_70, %c8_71], %79 {strides = array<i32>} : memref<48x32xf32, #tpu.memory_space<vmem>>, vector<4x8xf32>,
    %81 = vector.extract_strided_slice %4 {offsets = [8, 24], sizes = [4, 8], strides = [1, 1]} : vector<48x32xf32> to vector<4x8xf32>
    %c36_72 = arith.constant 36 : index
    %c16_73 = arith.constant 16 : index
    %82 = vector.load %arg7[%c36_72, %c16_73] : memref<48x32xf32, #tpu.memory_space<vmem>>, vector<4x8xf32>
    tpu.vector_store %arg7[%c36_72, %c16_73], %81 {strides = array<i32>} : memref<48x32xf32, #tpu.memory_space<vmem>>, vector<4x8xf32>,
    %83 = vector.extract_strided_slice %4 {offsets = [12, 24], sizes = [4, 8], strides = [1, 1]} : vector<48x32xf32> to vector<4x8xf32>
    %c36_74 = arith.constant 36 : index
    %c24_75 = arith.constant 24 : index
    %84 = vector.load %arg7[%c36_74, %c24_75] : memref<48x32xf32, #tpu.memory_space<vmem>>, vector<4x8xf32>
    tpu.vector_store %arg7[%c36_74, %c24_75], %83 {strides = array<i32>} : memref<48x32xf32, #tpu.memory_space<vmem>>, vector<4x8xf32>,
    %85 = vector.extract_strided_slice %4 {offsets = [16, 24], sizes = [4, 8], strides = [1, 1]} : vector<48x32xf32> to vector<4x8xf32>
    %c40 = arith.constant 40 : index
    %c0_76 = arith.constant 0 : index
    %86 = vector.load %arg7[%c40, %c0_76] : memref<48x32xf32, #tpu.memory_space<vmem>>, vector<4x8xf32>
    tpu.vector_store %arg7[%c40, %c0_76], %85 {strides = array<i32>} : memref<48x32xf32, #tpu.memory_space<vmem>>, vector<4x8xf32>,
    %87 = vector.extract_strided_slice %4 {offsets = [20, 24], sizes = [4, 8], strides = [1, 1]} : vector<48x32xf32> to vector<4x8xf32>
    %c40_77 = arith.constant 40 : index
    %c8_78 = arith.constant 8 : index
    %88 = vector.load %arg7[%c40_77, %c8_78] : memref<48x32xf32, #tpu.memory_space<vmem>>, vector<4x8xf32>
    tpu.vector_store %arg7[%c40_77, %c8_78], %87 {strides = array<i32>} : memref<48x32xf32, #tpu.memory_space<vmem>>, vector<4x8xf32>,
    %89 = vector.extract_strided_slice %4 {offsets = [24, 24], sizes = [4, 8], strides = [1, 1]} : vector<48x32xf32> to vector<4x8xf32>
    %c40_79 = arith.constant 40 : index
    %c16_80 = arith.constant 16 : index
    %90 = vector.load %arg7[%c40_79, %c16_80] : memref<48x32xf32, #tpu.memory_space<vmem>>, vector<4x8xf32>
    tpu.vector_store %arg7[%c40_79, %c16_80], %89 {strides = array<i32>} : memref<48x32xf32, #tpu.memory_space<vmem>>, vector<4x8xf32>,
    %91 = vector.extract_strided_slice %4 {offsets = [28, 24], sizes = [4, 8], strides = [1, 1]} : vector<48x32xf32> to vector<4x8xf32>
    %c40_81 = arith.constant 40 : index
    %c24_82 = arith.constant 24 : index
    %92 = vector.load %arg7[%c40_81, %c24_82] : memref<48x32xf32, #tpu.memory_space<vmem>>, vector<4x8xf32>
    tpu.vector_store %arg7[%c40_81, %c24_82], %91 {strides = array<i32>} : memref<48x32xf32, #tpu.memory_space<vmem>>, vector<4x8xf32>,
    %93 = vector.extract_strided_slice %4 {offsets = [32, 24], sizes = [4, 8], strides = [1, 1]} : vector<48x32xf32> to vector<4x8xf32>
    %c44 = arith.constant 44 : index
    %c0_83 = arith.constant 0 : index
    %94 = vector.load %arg7[%c44, %c0_83] : memref<48x32xf32, #tpu.memory_space<vmem>>, vector<4x8xf32>
    tpu.vector_store %arg7[%c44, %c0_83], %93 {strides = array<i32>} : memref<48x32xf32, #tpu.memory_space<vmem>>, vector<4x8xf32>,
    %95 = vector.extract_strided_slice %4 {offsets = [36, 24], sizes = [4, 8], strides = [1, 1]} : vector<48x32xf32> to vector<4x8xf32>
    %c44_84 = arith.constant 44 : index
    %c8_85 = arith.constant 8 : index
    %96 = vector.load %arg7[%c44_84, %c8_85] : memref<48x32xf32, #tpu.memory_space<vmem>>, vector<4x8xf32>
    tpu.vector_store %arg7[%c44_84, %c8_85], %95 {strides = array<i32>} : memref<48x32xf32, #tpu.memory_space<vmem>>, vector<4x8xf32>,
    %97 = vector.extract_strided_slice %4 {offsets = [40, 24], sizes = [4, 8], strides = [1, 1]} : vector<48x32xf32> to vector<4x8xf32>
    %c44_86 = arith.constant 44 : index
    %c16_87 = arith.constant 16 : index
    %98 = vector.load %arg7[%c44_86, %c16_87] : memref<48x32xf32, #tpu.memory_space<vmem>>, vector<4x8xf32>
    tpu.vector_store %arg7[%c44_86, %c16_87], %97 {strides = array<i32>} : memref<48x32xf32, #tpu.memory_space<vmem>>, vector<4x8xf32>,
    %99 = vector.extract_strided_slice %4 {offsets = [44, 24], sizes = [4, 8], strides = [1, 1]} : vector<48x32xf32> to vector<4x8xf32>
    %c44_88 = arith.constant 44 : index
    %c24_89 = arith.constant 24 : index
    %100 = vector.load %arg7[%c44_88, %c24_89] : memref<48x32xf32, #tpu.memory_space<vmem>>, vector<4x8xf32>
    tpu.vector_store %arg7[%c44_88, %c24_89], %99 {strides = array<i32>} : memref<48x32xf32, #tpu.memory_space<vmem>>, vector<4x8xf32>,
    %c0_90 = arith.constant 0 : index
    %c0_91 = arith.constant 0 : index
    %101 = vector.load %arg7[%c0_90, %c0_91] : memref<48x32xf32, #tpu.memory_space<vmem>>, vector<48x32xf32>
    %c0_92 = arith.constant 0 : index
    %c0_93 = arith.constant 0 : index
    %102 = vector.load %arg4[%c0_92, %c0_93] : memref<48x128xf32, #tpu.memory_space<vmem>>, vector<48x128xf32>
    %cst_94 = arith.constant dense<0.000000e+00> : vector<32x128xf32>
    %103 = tpu.matmul %101, %102, %cst_94 {dimension_numbers = #tpu.dot_dimension_numbers<[0], [0], [1], [1], [0, 1, 1, 1], [], []>, precision = #tpu.contract_precision<fp32>} : vector<48x32xf32>, vector<48x128xf32>, vector<32x128xf32> -> vector<32x128xf32>
    %c0_95 = arith.constant 0 : index
    %c0_96 = arith.constant 0 : index
    %104 = vector.load %arg5[%c0_95, %c0_96] : memref<1x128xf32, #tpu.memory_space<vmem>>, vector<1x128xf32>
    %105 = vector.broadcast %104 : vector<1x128xf32> to vector<32x128xf32>
    %106 = arith.addf %103, %105 : vector<32x128xf32>
    %c0_97 = arith.constant 0 : index
    %c0_98 = arith.constant 0 : index
    %c0_99 = arith.constant 0 : index
    %107 = vector.load %arg6[%c0_97, %c0_98, %c0_99] : memref<1x32x128xf32, #tpu.memory_space<vmem>>, vector<1x32x128xf32>
    %108 = vector.shape_cast %107 : vector<1x32x128xf32> to vector<32x128xf32>
    %109 = vector.shape_cast %106 : vector<32x128xf32> to vector<1x32x128xf32>
    tpu.vector_store %arg6[%c0_97, %c0_98, %c0_99], %109 {strides = array<i32>} : memref<1x32x128xf32, #tpu.memory_space<vmem>>, vector<1x32x128xf32>,
    return
  }
  func.func @transform_0(%arg0: i32, %arg1: i32) -> (i32, i32, i32, i32) {
    %c0_i32 = arith.constant 0 : i32
    %c0_i32_0 = arith.constant 0 : i32
    %c0_i32_1 = arith.constant 0 : i32
    return %arg0, %c0_i32, %arg1, %c0_i32_0 : i32, i32, i32, i32
  }
  func.func @transform_1(%arg0: i32, %arg1: i32) -> (i32, i32) {
    %c0_i32 = arith.constant 0 : i32
    %c0_i32_0 = arith.constant 0 : i32
    %c0_i32_1 = arith.constant 0 : i32
    return %c0_i32, %c0_i32_0 : i32, i32
  }
  func.func @transform_2(%arg0: i32, %arg1: i32) -> (i32, i32) {
    %c0_i32 = arith.constant 0 : i32
    %c0_i32_0 = arith.constant 0 : i32
    %c0_i32_1 = arith.constant 0 : i32
    return %c0_i32, %c0_i32_0 : i32, i32
  }
  func.func @transform_3(%arg0: i32, %arg1: i32) -> (i32, i32) {
    %c0_i32 = arith.constant 0 : i32
    %c0_i32_0 = arith.constant 0 : i32
    %c0_i32_1 = arith.constant 0 : i32
    return %c0_i32, %c0_i32_0 : i32, i32
  }
  func.func @transform_4(%arg0: i32, %arg1: i32) -> (i32, i32, i32) {
    %c0_i32 = arith.constant 0 : i32
    %c0_i32_0 = arith.constant 0 : i32
    return %arg0, %arg1, %c0_i32 : i32, i32, i32
  }
}

</mosaic_0001>

<llo_original>
// kernel: tpu_custom_call.1
$region0: #{tpu_custom_call.1}
  #allocation0 [shape = 'u32[]', space=smem, size = 0x4, offset = 0x4, fixed_abs, tag = 'smem constant byte address 0x4 - core index']
  #allocation1 [shape = 'u32[144,128]{1,0:T(1,128)}', space=vmem, size = 0x12000, scoped, tag = 'internal scratch']
  #allocation2 [shape = 'f32[48,32]{1,0:T(8,128)}', space=vmem, size = 0x6000, scoped, tag = 'scratch operand']
  #allocation10 [shape = 's32[]', space=sflag, size = 0x4, offset = 0, fixed_abs, tag = 'sflag constant byte address 0x0 - dummy sync flag']
  %s0 = inlined_call_operand.hbm [shape: f32[2,3,32,32], index: 0, kind: input, shape index: {}]
  %s1 = inlined_call_operand.hbm [shape: f32[32,32], index: 1, kind: input, shape index: {}]
  %s2 = inlined_call_operand.hbm [shape: f32[48,128], index: 2, kind: input, shape index: {}]
  %s3 = inlined_call_operand.vmem [shape: f32[1,128], index: 3, kind: input, shape index: {}]
  %s4 = inlined_call_operand.hbm [shape: f32[2,64,128], index: 4, kind: output, shape index: {}]
  %s5 = sld [smem:[#allocation0]]
  $region61: #{tpu_custom_call.1} parent=0
    _
  %s7 = ssub.s32 1, %s5
  %s8 = scalar_select 0, %s7, %s5
  $region1: #{tpu_custom_call.1} parent=0
    #allocation3 [shape = 'u8[49152]{0}', space=vmem, size = 0xc000, scoped, tag = 'input window, operand 0']
    #allocation4 [shape = 's32[2]{0}', space=sflag, size = 0x8, scoped, tag = 'scoped memory for tpu_custom_call.1']
    #allocation5 [shape = 's32[2]{0}', space=sflag, size = 0x8, scoped, tag = 'scoped memory for tpu_custom_call.1']
    #allocation6 [shape = 'u8[16384]{0}', space=vmem, size = 0x4000, scoped, tag = 'input window, operand 1, single buffered']
    #allocation7 [shape = 's32[1]{0}', space=sflag, size = 0x4, scoped, tag = 'scoped memory for tpu_custom_call.1']
    #allocation8 [shape = 'u8[24576]{0}', space=vmem, size = 0x6000, scoped, tag = 'input window, operand 2, single buffered']
    #allocation9 [shape = 'u8[32768]{0}', space=vmem, size = 0x8000, scoped, tag = 'output window, operand 0']
    %9 = vsyncpa [#allocation4], 0
    %s10 = scalar_lea.sflag [#allocation4], 1
    %11 = vsyncpa %s10, 0
    %12 = vsyncpa [#allocation7], 0
    %13 = vsyncpa [#allocation5], 0
    %s14 = scalar_lea.sflag [#allocation5], 1
    %15 = vsyncpa %s14, 0
    loop: start=0, step=1, limit=6
    $region2: #{tpu_custom_call.1} parent=1 // loop_pre_header
      _
    $region3: #{tpu_custom_call.1} parent=1 // loop_header
      %s17 = sphi 0, %s21
      %p18 = scmp.ge.s32.totalorder %s17, 6
      %s24 = sphi 0, %s36
      %s25 = sphi 0, %s32
      %s26 = sphi 0, %s24
      %s27 = sphi 0, %s25
      %s28 = sphi 0, %s26
      %s29 = sphi 0, %s27
      %s41 = sphi 0, %s43
      %s44 = sphi 0, %s41
      %s45 = sphi 0, %s44
      %s61 = sphi 0, %s45
      %s65 = sphi 0, %s65
      %s67 = sphi 0, %s65
      %s68 = sphi 0, %s67
      %s82 = sphi 0, %s68
      %s86 = sphi 0, %s86
      %s88 = sphi 0, %s86
      %s89 = sphi 0, %s88
      %s103 = sphi 0, %s89
      %s107 = sphi 0, %s107
      %s109 = sphi 0, %s107
      %s110 = sphi 0, %s109
      %s124 = sphi 0, %s110
      %s132 = sphi 0, %s134
      %s135 = sphi 0, %s132
      %s136 = sphi 0, %s135
      %s152 = sphi 0, %s136
    $region4: #{tpu_custom_call.1} parent=1 // loop_header_branch
      %20 = sbr.rel (%p18) target = $region8
    $region5: #{tpu_custom_call.1} parent=1 // loop_body
      %s22 = ssub.s32 %s17, 1
      %s23 = ssub.s32 %s17, 2
      %s30 = sadd.s32 1, %s25
      %p31 = scmp.ge.s32.totalorder %s30, 2
      %s32 = scalar_select %p31, 0, %s30
      %s33 = sadd.s32 1, %s24
      %s34 = scalar_select %p31, %s33, %s24
      %p35 = scmp.ge.s32.totalorder %s34, 2
      %s36 = scalar_select %p35, 0, %s34
      %s37 = ssub.s32 %s24, %s36
      %s38 = ssub.s32 %s25, %s32
      %s39 = sor.u32 %s37, %s38
      %p40 = scmp.eq.s32.totalorder %s39, 0
      %s42 = sadd.s32 %s41, 1
      %s43 = scalar_select %p40, %s41, %s42
      %p46 = pneg %p40
      %p47 = scmp.eq.s32.totalorder %s17, 3
      %p48 = por %p46, %p47
      %p49 = scmp.ne.s32.totalorder %s41, %s44
      %p50 = scmp.eq.s32.totalorder %s17, 0
      %p51 = por %p49, %p50
      %p52 = scmp.ne.s32.totalorder %s41, %s44
      %p53 = scmp.eq.s32.totalorder %s22, 3
      %p54 = por %p52, %p53
      %p55 = scmp.ne.s32.totalorder %s44, %s45
      %p56 = scmp.eq.s32.totalorder %s22, 0
      %p57 = por %p55, %p56
      %p58 = scmp.ne.s32.totalorder %s44, %s45
      %p59 = scmp.eq.s32.totalorder %s23, 3
      %p60 = por %p58, %p59
      %p62 = scmp.ne.s32.totalorder %s45, %s61
      %p63 = scmp.eq.s32.totalorder %s23, 0
      %p64 = por %p62, %p63
      %s66 = sadd.s32 %s65, 1
      %p69 = scmp.eq.s32.totalorder %s17, 3
      %p70 = scmp.ne.s32.totalorder %s65, %s67
      %p71 = scmp.eq.s32.totalorder %s17, 0
      %p72 = por %p70, %p71
      %p73 = scmp.ne.s32.totalorder %s65, %s67
      %p74 = scmp.eq.s32.totalorder %s22, 3
      %p75 = por %p73, %p74
      %p76 = scmp.ne.s32.totalorder %s67, %s68
      %p77 = scmp.eq.s32.totalorder %s22, 0
      %p78 = por %p76, %p77
      %p79 = scmp.ne.s32.totalorder %s67, %s68
      %p80 = scmp.eq.s32.totalorder %s23, 3
      %p81 = por %p79, %p80
      %p83 = scmp.ne.s32.totalorder %s68, %s82
      %p84 = scmp.eq.s32.totalorder %s23, 0
      %p85 = por %p83, %p84
      %s87 = sadd.s32 %s86, 1
      %p90 = scmp.eq.s32.totalorder %s17, 3
      %p91 = scmp.ne.s32.totalorder %s86, %s88
      %p92 = scmp.eq.s32.totalorder %s17, 0
      %p93 = por %p91, %p92
      %p94 = scmp.ne.s32.totalorder %s86, %s88
      %p95 = scmp.eq.s32.totalorder %s22, 3
      %p96 = por %p94, %p95
      %p97 = scmp.ne.s32.totalorder %s88, %s89
      %p98 = scmp.eq.s32.totalorder %s22, 0
      %p99 = por %p97, %p98
      %p100 = scmp.ne.s32.totalorder %s88, %s89
      %p101 = scmp.eq.s32.totalorder %s23, 3
      %p102 = por %p100, %p101
      %p104 = scmp.ne.s32.totalorder %s89, %s103
      %p105 = scmp.eq.s32.totalorder %s23, 0
      %p106 = por %p104, %p105
      %s108 = sadd.s32 %s107, 1
      %p111 = scmp.eq.s32.totalorder %s17, 3
      %p112 = scmp.ne.s32.totalorder %s107, %s109
      %p113 = scmp.eq.s32.totalorder %s17, 0
      %p114 = por %p112, %p113
      %p115 = scmp.ne.s32.totalorder %s107, %s109
      %p116 = scmp.eq.s32.totalorder %s22, 3
      %p117 = por %p115, %p116
      %p118 = scmp.ne.s32.totalorder %s109, %s110
      %p119 = scmp.eq.s32.totalorder %s22, 0
      %p120 = por %p118, %p119
      %p121 = scmp.ne.s32.totalorder %s109, %s110
      %p122 = scmp.eq.s32.totalorder %s23, 3
      %p123 = por %p121, %p122
      %p125 = scmp.ne.s32.totalorder %s110, %s124
      %p126 = scmp.eq.s32.totalorder %s23, 0
      %p127 = por %p125, %p126
      %s128 = ssub.s32 %s24, %s36
      %s129 = ssub.s32 %s25, %s32
      %s130 = sor.u32 %s128, %s129
      %p131 = scmp.eq.s32.totalorder %s130, 0
      %s133 = sadd.s32 %s132, 1
      %s134 = scalar_select %p131, %s132, %s133
      %p137 = pneg %p131
      %p138 = scmp.eq.s32.totalorder %s17, 3
      %p139 = por %p137, %p138
      %p140 = scmp.ne.s32.totalorder %s132, %s135
      %p141 = scmp.eq.s32.totalorder %s17, 0
      %p142 = por %p140, %p141
      %p143 = scmp.ne.s32.totalorder %s132, %s135
      %p144 = scmp.eq.s32.totalorder %s22, 3
      %p145 = por %p143, %p144
      %p146 = scmp.ne.s32.totalorder %s135, %s136
      %p147 = scmp.eq.s32.totalorder %s22, 0
      %p148 = por %p146, %p147
      %p149 = scmp.ne.s32.totalorder %s135, %s136
      %p150 = scmp.eq.s32.totalorder %s23, 3
      %p151 = por %p149, %p150
      %p153 = scmp.ne.s32.totalorder %s136, %s152
      %p154 = scmp.eq.s32.totalorder %s23, 0
      %p155 = por %p153, %p154
      %p156 = scmp.le.s32.totalorder 1, %s17
      %p157 = scmp.lt.s32.totalorder %s17, 5
      %p158 = pnand %p156, %p157
      %p159 = pneg %p158
      // Predicated region
      $region9: #{tpu_custom_call.1} parent=5 // pred_check
        _
      $region10: #{tpu_custom_call.1} parent=5 // pred_check_branch
        %161 = sbr.rel (%p158) target = $region12
      $region11: #{tpu_custom_call.1} parent=5 // pred_region
        %s162 = ssub.s32 %s17, 1
        // Predicated region
        $region13: #{tpu_custom_call.1} parent=11 // pred_check
          %p163 = pneg %p78
        $region14: #{tpu_custom_call.1} parent=11 // pred_check_branch
          %165 = sbr.rel (%p163) target = $region16
        $region15: #{tpu_custom_call.1} parent=11 // pred_region
          %s167 = ssub.s32 512, 512
          %168 = vsyncadd [#allocation7], %s167
          %s169 = sshll.u32 [#allocation6], 4
          %s170 = int_to_ptr.vmem [resolvable:$true] %s169
          %175 = dma.hbm_to_vmem [thread:$0]  %s1, 512, %s170, [#allocation7], 128, 128, 8
        $region16: #{tpu_custom_call.1} parent=11 // pred_fallthru
          _
        // Predicated region
        $region17: #{tpu_custom_call.1} parent=11 // pred_check
          %p176 = pneg %p99
        $region18: #{tpu_custom_call.1} parent=11 // pred_check_branch
          %178 = sbr.rel (%p176) target = $region20
        $region19: #{tpu_custom_call.1} parent=11 // pred_region
          %s180 = ssub.s32 768, 768
          %181 = vsyncadd [#allocation7], %s180
          %s182 = sshll.u32 [#allocation8], 4
          %s183 = int_to_ptr.vmem [resolvable:$true] %s182
          %188 = dma.hbm_to_vmem [thread:$0]  %s2, 768, %s183, [#allocation7], 128, 128, 8
        $region20: #{tpu_custom_call.1} parent=11 // pred_fallthru
          _
        // Predicated region
        $region21: #{tpu_custom_call.1} parent=11 // pred_check
          %p189 = pneg %p120
        $region22: #{tpu_custom_call.1} parent=11 // pred_check_branch
          %191 = sbr.rel (%p189) target = $region24
        $region23: #{tpu_custom_call.1} parent=11 // pred_region
          _
        $region24: #{tpu_custom_call.1} parent=11 // pred_fallthru
          _
      $region12: #{tpu_custom_call.1} parent=5 // pred_fallthru
        _
      %p192 = scmp.lt.s32.totalorder %s17, 4
      // Predicated region
      $region25: #{tpu_custom_call.1} parent=5 // pred_check
        %p193 = pneg %p192
      $region26: #{tpu_custom_call.1} parent=5 // pred_check_branch
        %195 = sbr.rel (%p193) target = $region28
      $region27: #{tpu_custom_call.1} parent=5 // pred_region
        // Predicated region
        $region29: #{tpu_custom_call.1} parent=27 // pred_check
          %p196 = pneg %p51
        $region30: #{tpu_custom_call.1} parent=27 // pred_check_branch
          %198 = sbr.rel (%p196) target = $region32
        $region31: #{tpu_custom_call.1} parent=27 // pred_region
          #allocation11 [shape = 'u32[6]{0}', space=smem, size = 0x18, scoped, tag = 'DMA stride descriptor']
          %s199 = sand.u32 %s41, 1
          %s200 = scalar_lea.sflag [#allocation4], %s199
          %s201 = sand.u32 %s41, 1
          %s202 = smul.addr %s201, 48
          %s203 = scalar_lea.vmem [#allocation3], %s202
          %s204 = smul.u32 2, %s25
          %s206 = ssub.s32 768, 768
          %207 = vsyncadd %s200, %s206
          %s208 = smul.addr %s24, 12
          %s209 = sadd.s32 %s204, %s208
          %s210 = smul.addr %s209, 128
          %s211 = scalar_lea.hbm %s0, %s210
          %s213 = sshll.u32 1, 14
          %s214 = sxor.u32 4294967295, %s213
          %s216 = sld [smem:[#allocation0]]
          %s217 = sadd.s32 2, %s216
          %s219 = sshll.u32 7, 26
          %s220 = sxor.u32 4294967295, %s219
          %s221 = sand.u32 0, %s220
          %s222 = sshll.u32 %s217, 26
          %s223 = sor.u32 %s221, %s222
          %s224 = sshll.u32 %s203, 4
          %s225 = int_to_ptr.vmem [resolvable:$true] %s224
          %231 = sst [smem:[#allocation11]] 512
          %s232 = scalar_lea.smem [#allocation11], 1
          %233 = sst [smem:[%s232]] 256
          %s234 = scalar_lea.smem [#allocation11], 2
          %235 = sst [smem:[%s234]] 2
          %s236 = scalar_lea.smem [#allocation11], 3
          %237 = sst [smem:[%s236]] 128
          %s238 = scalar_lea.smem [#allocation11], 4
          %239 = sst [smem:[%s238]] 128
          %s240 = scalar_lea.smem [#allocation11], 5
          %241 = sst [smem:[%s240]] 8
          %243 = dma.general %s211, 768, %s225, %s200, [#allocation10], [#allocation11], %s223, 0
        $region32: #{tpu_custom_call.1} parent=27 // pred_fallthru
          _
      $region28: #{tpu_custom_call.1} parent=5 // pred_fallthru
        _
      %p244 = scmp.le.s32.totalorder 1, %s17
      %p245 = scmp.lt.s32.totalorder %s17, 5
      %p246 = pnand %p244, %p245
      %p247 = pneg %p246
      // Predicated region
      $region33: #{tpu_custom_call.1} parent=5 // pred_check
        _
      $region34: #{tpu_custom_call.1} parent=5 // pred_check_branch
        %249 = sbr.rel (%p246) target = $region36
      $region35: #{tpu_custom_call.1} parent=5 // pred_region
        %s250 = ssub.s32 %s17, 1
        %s251 = sand.u32 %s44, 1
        %s252 = scalar_lea.sflag [#allocation4], %s251
        %s253 = sand.u32 %s44, 1
        %s254 = smul.addr %s253, 48
        %s255 = scalar_lea.vmem [#allocation3], %s254
        // Predicated region
        $region37: #{tpu_custom_call.1} parent=35 // pred_check
          %p256 = pneg %p57
        $region38: #{tpu_custom_call.1} parent=35 // pred_check_branch
          %258 = sbr.rel (%p256) target = $region40
        $region39: #{tpu_custom_call.1} parent=35 // pred_region
          %259 = dma.done %s252, 768
        $region40: #{tpu_custom_call.1} parent=35 // pred_fallthru
          _
        // Predicated region
        $region41: #{tpu_custom_call.1} parent=35 // pred_check
          %p260 = pneg %p78
        $region42: #{tpu_custom_call.1} parent=35 // pred_check_branch
          %262 = sbr.rel (%p260) target = $region44
        $region43: #{tpu_custom_call.1} parent=35 // pred_region
          %263 = dma.done [#allocation7], 512
        $region44: #{tpu_custom_call.1} parent=35 // pred_fallthru
          _
        // Predicated region
        $region45: #{tpu_custom_call.1} parent=35 // pred_check
          %p264 = pneg %p99
        $region46: #{tpu_custom_call.1} parent=35 // pred_check_branch
          %266 = sbr.rel (%p264) target = $region48
        $region47: #{tpu_custom_call.1} parent=35 // pred_region
          %267 = dma.done [#allocation7], 768
        $region48: #{tpu_custom_call.1} parent=35 // pred_fallthru
          _
        %s268 = sand.u32 %s44, 1
        %s269 = scalar_lea.sflag [#allocation4], %s268
        %s270 = sand.u32 %s44, 1
        %s271 = smul.addr %s270, 48
        %s272 = scalar_lea.vmem [#allocation3], %s271
        %p273 = pneg %p57
        %p274 = pneg %p54
        %p275 = pneg %p78
        %p276 = pneg %p75
        %p277 = pneg %p99
        %p278 = pneg %p96
        %p279 = pneg %p120
        %p280 = pneg %p117
        %p281 = pneg %p148
        %p282 = pneg %p145
        %s283 = sand.u32 %s135, 1
        %s284 = scalar_lea.sflag [#allocation5], %s283
        %s285 = sand.u32 %s135, 1
        %s286 = smul.addr %s285, 32
        %s287 = scalar_lea.vmem [#allocation9], %s286
        %s288 = smul.u32 2, %s27
        %s289 = smul.u32 4, %s27
        %v290 = vld [vmem:[%s255] sm:$0xff]
        %v291 = vld [vmem:[%s255 + $0x8] sm:$0xff]
        %v292 = vld [vmem:[%s255 + $0x10] sm:$0xff]
        %v293 = vld [vmem:[%s255 + $0x18] sm:$0xff]
        %v294 = vld [vmem:[%s255 + $0x20] sm:$0xff]
        %v295 = vld [vmem:[%s255 + $0x28] sm:$0xff]
        %v296 = vld [vmem:[#allocation6] sm:$0xff]
        %v297 = vld [vmem:[#allocation6 + $0x8] sm:$0xff]
        %v298 = vld [vmem:[#allocation6 + $0x10] sm:$0xff]
        %v299 = vld [vmem:[#allocation6 + $0x18] sm:$0xff]
        %vm300 = vcmask 261120
        %v302 = vsel %vm300, %v290, 0
        %v305 = vsel %vm300, %v291, 0
        %v308 = vsel %vm300, %v292, 0
        %v311 = vsel %vm300, %v293, 0
        %v314 = vsel %vm300, %v294, 0
        %v317 = vsel %vm300, %v295, 0
        %319 = vmatprep.subr.mxu0 0.0
        %v320 = vand.u32 %v296, 4294901760
        %321 = vmatpush1.msra.mxu0 %v320
        %322 = vmatprep.subr.mxu0 0.0
        %v323 = vand.u32 %v297, 4294901760
        %324 = vmatpush1.msra.mxu0 %v323
        %325 = vmatprep.subr.mxu0 0.0
        %v326 = vand.u32 %v298, 4294901760
        %327 = vmatpush1.msra.mxu0 %v326
        %328 = vmatprep.subr.mxu0 0.0
        %v329 = vand.u32 %v299, 4294901760
        %330 = vmatpush1.msra.mxu0 %v329
        %331 = vmatprep.subr.mxu0 0.0
        %332 = vmatpush1.msra.mxu0 0.0
        %333 = vmatprep.subr.mxu0 0.0
        %334 = vmatpush1.msra.mxu0 0.0
        %335 = vmatprep.subr.mxu0 0.0
        %336 = vmatpush1.msra.mxu0 0.0
        %337 = vmatprep.subr.mxu0 0.0
        %338 = vmatpush1.msra.mxu0 0.0
        %339 = vmatprep.subr.mxu0 0.0
        %340 = vmatpush1.msra.mxu0 0.0
        %341 = vmatprep.subr.mxu0 0.0
        %342 = vmatpush1.msra.mxu0 0.0
        %343 = vmatprep.subr.mxu0 0.0
        %344 = vmatpush1.msra.mxu0 0.0
        %345 = vmatprep.subr.mxu0 0.0
        %346 = vmatpush1.msra.mxu0 0.0
        %347 = vmatprep.subr.mxu0 0.0
        %348 = vmatpush1.msra.mxu0 0.0
        %349 = vmatprep.subr.mxu0 0.0
        %350 = vmatpush1.msra.mxu0 0.0
        %351 = vmatprep.subr.mxu0 0.0
        %352 = vmatpush1.msra.mxu0 0.0
        %353 = vmatprep.subr.mxu0 0.0
        %354 = vmatpush1.msra.mxu0 0.0
        %355 = vmatprep.subr.mxu0 0.0
        %356 = vmatpush1.msra.mxu0 0.0
        %357 = vmatprep.subr.mxu0 0.0
        %358 = vmatpush1.msra.mxu0 0.0
        %359 = vmatprep.subr.mxu0 0.0
        %360 = vmatpush1.msra.mxu0 0.0
        %361 = vmatprep.subr.mxu0 0.0
        %362 = vmatpush1.msra.mxu0 0.0
        %363 = vmatprep.subr.mxu0 0.0
        %364 = vmatpush1.msra.mxu0 0.0
        %365 = vmatprep.subr.mxu0 0.0
        %366 = vmatpush1.msra.mxu0 0.0
        %367 = vmatprep.subr.mxu0 0.0
        %368 = vmatpush1.msra.mxu0 0.0
        %369 = vmatprep.subr.mxu0 0.0
        %370 = vmatpush1.msra.mxu0 0.0
        %371 = vmatprep.subr.mxu0 0.0
        %372 = vmatpush1.msra.mxu0 0.0
        %373 = vmatprep.subr.mxu0 0.0
        %374 = vmatpush1.msra.mxu0 0.0
        %375 = vmatprep.subr.mxu0 0.0
        %376 = vmatpush1.msra.mxu0 0.0
        %377 = vmatprep.subr.mxu0 0.0
        %378 = vmatpush1.msra.mxu0 0.0
        %379 = vmatprep.subr.mxu0 0.0
        %380 = vmatpush1.msra.mxu0 0.0
        %381 = vmatprep.subr.mxu0 0.0
        %382 = vmatpush1.msra.mxu0 0.0
        %383 = vmatprep.subr.mxu0 0.0
        %384 = vmatpush1.msra.mxu0 0.0
        %385 = vmatprep.subr.mxu0 0.0
        %386 = vmatpush1.msra.mxu0 0.0
        %387 = vmatprep.mubr.f32.mxu0 0.0
        %v388 = vand.u32 %v302, 4294901760
        %v389 = vsub.f32 %v302, %v388
        %v390 = vand.u32 %v389, 4294901760
        %v391 = vsub.f32 %v389, %v390
        %v392 = vand.u32 %v391, 4294901760
        %393 = vmatmul.mubr.f32.gmra.mrb[0].mxu0 %v392
        %v394 = vpop.f32.mrb[0].mxu0
        %v395 = vadd.f32 0.0, %v394
        %v396 = vpop.f32.mrb[0].mxu0
        %397 = vmatprep.mubr.f32.mxu0 0.0
        %v398 = vand.u32 %v305, 4294901760
        %v399 = vsub.f32 %v305, %v398
        %v400 = vand.u32 %v399, 4294901760
        %v401 = vsub.f32 %v399, %v400
        %v402 = vand.u32 %v401, 4294901760
        %403 = vmatmul.mubr.f32.gmra.mrb[0].mxu0 %v402
        %v404 = vpop.f32.mrb[0].mxu0
        %v405 = vadd.f32 0.0, %v404
        %v406 = vpop.f32.mrb[0].mxu0
        %407 = vmatprep.mubr.f32.mxu0 0.0
        %v408 = vand.u32 %v308, 4294901760
        %v409 = vsub.f32 %v308, %v408
        %v410 = vand.u32 %v409, 4294901760
        %v411 = vsub.f32 %v409, %v410
        %v412 = vand.u32 %v411, 4294901760
        %413 = vmatmul.mubr.f32.gmra.mrb[0].mxu0 %v412
        %v414 = vpop.f32.mrb[0].mxu0
        %v415 = vadd.f32 0.0, %v414
        %v416 = vpop.f32.mrb[0].mxu0
        %417 = vmatprep.mubr.f32.mxu0 0.0
        %v418 = vand.u32 %v311, 4294901760
        %v419 = vsub.f32 %v311, %v418
        %v420 = vand.u32 %v419, 4294901760
        %v421 = vsub.f32 %v419, %v420
        %v422 = vand.u32 %v421, 4294901760
        %423 = vmatmul.mubr.f32.gmra.mrb[0].mxu0 %v422
        %v424 = vpop.f32.mrb[0].mxu0
        %v425 = vadd.f32 0.0, %v424
        %v426 = vpop.f32.mrb[0].mxu0
        %427 = vmatprep.mubr.f32.mxu0 0.0
        %v428 = vand.u32 %v314, 4294901760
        %v429 = vsub.f32 %v314, %v428
        %v430 = vand.u32 %v429, 4294901760
        %v431 = vsub.f32 %v429, %v430
        %v432 = vand.u32 %v431, 4294901760
        %433 = vmatmul.mubr.f32.gmra.mrb[0].mxu0 %v432
        %v434 = vpop.f32.mrb[0].mxu0
        %v435 = vadd.f32 0.0, %v434
        %v436 = vpop.f32.mrb[0].mxu0
        %437 = vmatprep.mubr.f32.mxu0 0.0
        %v438 = vand.u32 %v317, 4294901760
        %v439 = vsub.f32 %v317, %v438
        %v440 = vand.u32 %v439, 4294901760
        %v441 = vsub.f32 %v439, %v440
        %v442 = vand.u32 %v441, 4294901760
        %443 = vmatmul.mubr.f32.gmra.mrb[0].mxu0 %v442
        %v444 = vpop.f32.mrb[0].mxu0
        %v445 = vadd.f32 0.0, %v444
        %v446 = vpop.f32.mrb[0].mxu0
        %447 = vdwg.mxu0
        %448 = vmatprep.subr.mxu0 0.0
        %v449 = vand.u32 %v296, 4294901760
        %v450 = vsub.f32 %v296, %v449
        %v451 = vand.u32 %v450, 4294901760
        %v452 = vsub.f32 %v450, %v451
        %v453 = vand.u32 %v452, 4294901760
        %454 = vmatpush1.msra.mxu0 %v453
        %455 = vmatprep.subr.mxu0 0.0
        %v456 = vand.u32 %v297, 4294901760
        %v457 = vsub.f32 %v297, %v456
        %v458 = vand.u32 %v457, 4294901760
        %v459 = vsub.f32 %v457, %v458
        %v460 = vand.u32 %v459, 4294901760
        %461 = vmatpush1.msra.mxu0 %v460
        %462 = vmatprep.subr.mxu0 0.0
        %v463 = vand.u32 %v298, 4294901760
        %v464 = vsub.f32 %v298, %v463
        %v465 = vand.u32 %v464, 4294901760
        %v466 = vsub.f32 %v464, %v465
        %v467 = vand.u32 %v466, 4294901760
        %468 = vmatpush1.msra.mxu0 %v467
        %469 = vmatprep.subr.mxu0 0.0
        %v470 = vand.u32 %v299, 4294901760
        %v471 = vsub.f32 %v299, %v470
        %v472 = vand.u32 %v471, 4294901760
        %v473 = vsub.f32 %v471, %v472
        %v474 = vand.u32 %v473, 4294901760
        %475 = vmatpush1.msra.mxu0 %v474
        %476 = vmatprep.subr.mxu0 0.0
        %477 = vmatpush1.msra.mxu0 0.0
        %478 = vmatprep.subr.mxu0 0.0
        %479 = vmatpush1.msra.mxu0 0.0
        %480 = vmatprep.subr.mxu0 0.0
        %481 = vmatpush1.msra.mxu0 0.0
        %482 = vmatprep.subr.mxu0 0.0
        %483 = vmatpush1.msra.mxu0 0.0
        %484 = vmatprep.subr.mxu0 0.0
        %485 = vmatpush1.msra.mxu0 0.0
        %486 = vmatprep.subr.mxu0 0.0
        %487 = vmatpush1.msra.mxu0 0.0
        %488 = vmatprep.subr.mxu0 0.0
        %489 = vmatpush1.msra.mxu0 0.0
        %490 = vmatprep.subr.mxu0 0.0
        %491 = vmatpush1.msra.mxu0 0.0
        %492 = vmatprep.subr.mxu0 0.0
        %493 = vmatpush1.msra.mxu0 0.0
        %494 = vmatprep.subr.mxu0 0.0
        %495 = vmatpush1.msra.mxu0 0.0
        %496 = vmatprep.subr.mxu0 0.0
        %497 = vmatpush1.msra.mxu0 0.0
        %498 = vmatprep.subr.mxu0 0.0
        %499 = vmatpush1.msra.mxu0 0.0
        %500 = vmatprep.subr.mxu0 0.0
        %501 = vmatpush1.msra.mxu0 0.0
        %502 = vmatprep.subr.mxu0 0.0
        %503 = vmatpush1.msra.mxu0 0.0
        %504 = vmatprep.subr.mxu0 0.0
        %505 = vmatpush1.msra.mxu0 0.0
        %506 = vmatprep.subr.mxu0 0.0
        %507 = vmatpush1.msra.mxu0 0.0
        %508 = vmatprep.subr.mxu0 0.0
        %509 = vmatpush1.msra.mxu0 0.0
        %510 = vmatprep.subr.mxu0 0.0
        %511 = vmatpush1.msra.mxu0 0.0
        %512 = vmatprep.subr.mxu0 0.0
        %513 = vmatpush1.msra.mxu0 0.0
        %514 = vmatprep.subr.mxu0 0.0
        %515 = vmatpush1.msra.mxu0 0.0
        %516 = vmatprep.subr.mxu0 0.0
        %517 = vmatpush1.msra.mxu0 0.0
        %518 = vmatprep.subr.mxu0 0.0
        %519 = vmatpush1.msra.mxu0 0.0
        %520 = vmatprep.subr.mxu0 0.0
        %521 = vmatpush1.msra.mxu0 0.0
        %522 = vmatprep.subr.mxu0 0.0
        %523 = vmatpush1.msra.mxu0 0.0
        %524 = vmatprep.subr.mxu0 0.0
        %525 = vmatpush1.msra.mxu0 0.0
        %526 = vmatprep.subr.mxu0 0.0
        %527 = vmatpush1.msra.mxu0 0.0
        %528 = vmatprep.subr.mxu0 0.0
        %529 = vmatpush1.msra.mxu0 0.0
        %530 = vmatprep.subr.mxu0 0.0
        %531 = vmatpush1.msra.mxu0 0.0
        %532 = vmatprep.mubr.f32.mxu0 0.0
        %v533 = vand.u32 %v302, 4294901760
        %534 = vmatmul.mubr.f32.gmra.mrb[0].mxu0 %v533
        %v535 = vpop.f32.mrb[0].mxu0
        %v536 = vadd.f32 %v395, %v535
        %v537 = vpop.f32.mrb[0].mxu0
        %538 = vmatprep.mubr.f32.mxu0 0.0
        %v539 = vand.u32 %v305, 4294901760
        %540 = vmatmul.mubr.f32.gmra.mrb[0].mxu0 %v539
        %v541 = vpop.f32.mrb[0].mxu0
        %v542 = vadd.f32 %v405, %v541
        %v543 = vpop.f32.mrb[0].mxu0
        %544 = vmatprep.mubr.f32.mxu0 0.0
        %v545 = vand.u32 %v308, 4294901760
        %546 = vmatmul.mubr.f32.gmra.mrb[0].mxu0 %v545
        %v547 = vpop.f32.mrb[0].mxu0
        %v548 = vadd.f32 %v415, %v547
        %v549 = vpop.f32.mrb[0].mxu0
        %550 = vmatprep.mubr.f32.mxu0 0.0
        %v551 = vand.u32 %v311, 4294901760
        %552 = vmatmul.mubr.f32.gmra.mrb[0].mxu0 %v551
        %v553 = vpop.f32.mrb[0].mxu0
        %v554 = vadd.f32 %v425, %v553
        %v555 = vpop.f32.mrb[0].mxu0
        %556 = vmatprep.mubr.f32.mxu0 0.0
        %v557 = vand.u32 %v314, 4294901760
        %558 = vmatmul.mubr.f32.gmra.mrb[0].mxu0 %v557
        %v559 = vpop.f32.mrb[0].mxu0
        %v560 = vadd.f32 %v435, %v559
        %v561 = vpop.f32.mrb[0].mxu0
        %562 = vmatprep.mubr.f32.mxu0 0.0
        %v563 = vand.u32 %v317, 4294901760
        %564 = vmatmul.mubr.f32.gmra.mrb[0].mxu0 %v563
        %v565 = vpop.f32.mrb[0].mxu0
        %v566 = vadd.f32 %v445, %v565
        %v567 = vpop.f32.mrb[0].mxu0
        %568 = vdwg.mxu0
        %569 = vmatprep.subr.mxu0 0.0
        %v570 = vand.u32 %v296, 4294901760
        %v571 = vsub.f32 %v296, %v570
        %572 = vmatpush1.msra.mxu0 %v571
        %573 = vmatprep.subr.mxu0 0.0
        %v574 = vand.u32 %v297, 4294901760
        %v575 = vsub.f32 %v297, %v574
        %576 = vmatpush1.msra.mxu0 %v575
        %577 = vmatprep.subr.mxu0 0.0
        %v578 = vand.u32 %v298, 4294901760
        %v579 = vsub.f32 %v298, %v578
        %580 = vmatpush1.msra.mxu0 %v579
        %581 = vmatprep.subr.mxu0 0.0
        %v582 = vand.u32 %v299, 4294901760
        %v583 = vsub.f32 %v299, %v582
        %584 = vmatpush1.msra.mxu0 %v583
        %585 = vmatprep.subr.mxu0 0.0
        %586 = vmatpush1.msra.mxu0 0.0
        %587 = vmatprep.subr.mxu0 0.0
        %588 = vmatpush1.msra.mxu0 0.0
        %589 = vmatprep.subr.mxu0 0.0
        %590 = vmatpush1.msra.mxu0 0.0
        %591 = vmatprep.subr.mxu0 0.0
        %592 = vmatpush1.msra.mxu0 0.0
        %593 = vmatprep.subr.mxu0 0.0
        %594 = vmatpush1.msra.mxu0 0.0
        %595 = vmatprep.subr.mxu0 0.0
        %596 = vmatpush1.msra.mxu0 0.0
        %597 = vmatprep.subr.mxu0 0.0
        %598 = vmatpush1.msra.mxu0 0.0
        %599 = vmatprep.subr.mxu0 0.0
        %600 = vmatpush1.msra.mxu0 0.0
        %601 = vmatprep.subr.mxu0 0.0
        %602 = vmatpush1.msra.mxu0 0.0
        %603 = vmatprep.subr.mxu0 0.0
        %604 = vmatpush1.msra.mxu0 0.0
        %605 = vmatprep.subr.mxu0 0.0
        %606 = vmatpush1.msra.mxu0 0.0
        %607 = vmatprep.subr.mxu0 0.0
        %608 = vmatpush1.msra.mxu0 0.0
        %609 = vmatprep.subr.mxu0 0.0
        %610 = vmatpush1.msra.mxu0 0.0
        %611 = vmatprep.subr.mxu0 0.0
        %612 = vmatpush1.msra.mxu0 0.0
        %613 = vmatprep.subr.mxu0 0.0
        %614 = vmatpush1.msra.mxu0 0.0
        %615 = vmatprep.subr.mxu0 0.0
        %616 = vmatpush1.msra.mxu0 0.0
        %617 = vmatprep.subr.mxu0 0.0
        %618 = vmatpush1.msra.mxu0 0.0
        %619 = vmatprep.subr.mxu0 0.0
        %620 = vmatpush1.msra.mxu0 0.0
        %621 = vmatprep.subr.mxu0 0.0
        %622 = vmatpush1.msra.mxu0 0.0
        %623 = vmatprep.subr.mxu0 0.0
        %624 = vmatpush1.msra.mxu0 0.0
        %625 = vmatprep.subr.mxu0 0.0
        %626 = vmatpush1.msra.mxu0 0.0
        %627 = vmatprep.subr.mxu0 0.0
        %628 = vmatpush1.msra.mxu0 0.0
        %629 = vmatprep.subr.mxu0 0.0
        %630 = vmatpush1.msra.mxu0 0.0
        %631 = vmatprep.subr.mxu0 0.0
        %632 = vmatpush1.msra.mxu0 0.0
        %633 = vmatprep.subr.mxu0 0.0
        %634 = vmatpush1.msra.mxu0 0.0
        %635 = vmatprep.subr.mxu0 0.0
        %636 = vmatpush1.msra.mxu0 0.0
        %637 = vmatprep.subr.mxu0 0.0
        %638 = vmatpush1.msra.mxu0 0.0
        %639 = vmatprep.subr.mxu0 0.0
        %640 = vmatpush1.msra.mxu0 0.0
        %641 = vmatprep.mubr.f32.mxu0 0.0
        %v642 = vand.u32 %v302, 4294901760
        %v643 = vsub.f32 %v302, %v642
        %644 = vmatmul.mubr.f32.gmra.mrb[0].mxu0 %v643
        %v645 = vpop.f32.mrb[0].mxu0
        %v646 = vadd.f32 %v536, %v645
        %v647 = vpop.f32.mrb[0].mxu0
        %648 = vmatprep.mubr.f32.mxu0 0.0
        %v649 = vand.u32 %v305, 4294901760
        %v650 = vsub.f32 %v305, %v649
        %651 = vmatmul.mubr.f32.gmra.mrb[0].mxu0 %v650
        %v652 = vpop.f32.mrb[0].mxu0
        %v653 = vadd.f32 %v542, %v652
        %v654 = vpop.f32.mrb[0].mxu0
        %655 = vmatprep.mubr.f32.mxu0 0.0
        %v656 = vand.u32 %v308, 4294901760
        %v657 = vsub.f32 %v308, %v656
        %658 = vmatmul.mubr.f32.gmra.mrb[0].mxu0 %v657
        %v659 = vpop.f32.mrb[0].mxu0
        %v660 = vadd.f32 %v548, %v659
        %v661 = vpop.f32.mrb[0].mxu0
        %662 = vmatprep.mubr.f32.mxu0 0.0
        %v663 = vand.u32 %v311, 4294901760
        %v664 = vsub.f32 %v311, %v663
        %665 = vmatmul.mubr.f32.gmra.mrb[0].mxu0 %v664
        %v666 = vpop.f32.mrb[0].mxu0
        %v667 = vadd.f32 %v554, %v666
        %v668 = vpop.f32.mrb[0].mxu0
        %669 = vmatprep.mubr.f32.mxu0 0.0
        %v670 = vand.u32 %v314, 4294901760
        %v671 = vsub.f32 %v314, %v670
        %672 = vmatmul.mubr.f32.gmra.mrb[0].mxu0 %v671
        %v673 = vpop.f32.mrb[0].mxu0
        %v674 = vadd.f32 %v560, %v673
        %v675 = vpop.f32.mrb[0].mxu0
        %676 = vmatprep.mubr.f32.mxu0 0.0
        %v677 = vand.u32 %v317, 4294901760
        %v678 = vsub.f32 %v317, %v677
        %679 = vmatmul.mubr.f32.gmra.mrb[0].mxu0 %v678
        %v680 = vpop.f32.mrb[0].mxu0
        %v681 = vadd.f32 %v566, %v680
        %v682 = vpop.f32.mrb[0].mxu0
        %683 = vdwg.mxu0
        %684 = vmatprep.subr.mxu0 0.0
        %v685 = vand.u32 %v296, 4294901760
        %686 = vmatpush1.msra.mxu0 %v685
        %687 = vmatprep.subr.mxu0 0.0
        %v688 = vand.u32 %v297, 4294901760
        %689 = vmatpush1.msra.mxu0 %v688
        %690 = vmatprep.subr.mxu0 0.0
        %v691 = vand.u32 %v298, 4294901760
        %692 = vmatpush1.msra.mxu0 %v691
        %693 = vmatprep.subr.mxu0 0.0
        %v694 = vand.u32 %v299, 4294901760
        %695 = vmatpush1.msra.mxu0 %v694
        %696 = vmatprep.subr.mxu0 0.0
        %697 = vmatpush1.msra.mxu0 0.0
        %698 = vmatprep.subr.mxu0 0.0
        %699 = vmatpush1.msra.mxu0 0.0
        %700 = vmatprep.subr.mxu0 0.0
        %701 = vmatpush1.msra.mxu0 0.0
        %702 = vmatprep.subr.mxu0 0.0
        %703 = vmatpush1.msra.mxu0 0.0
        %704 = vmatprep.subr.mxu0 0.0
        %705 = vmatpush1.msra.mxu0 0.0
        %706 = vmatprep.subr.mxu0 0.0
        %707 = vmatpush1.msra.mxu0 0.0
        %708 = vmatprep.subr.mxu0 0.0
        %709 = vmatpush1.msra.mxu0 0.0
        %710 = vmatprep.subr.mxu0 0.0
        %711 = vmatpush1.msra.mxu0 0.0
        %712 = vmatprep.subr.mxu0 0.0
        %713 = vmatpush1.msra.mxu0 0.0
        %714 = vmatprep.subr.mxu0 0.0
        %715 = vmatpush1.msra.mxu0 0.0
        %716 = vmatprep.subr.mxu0 0.0
        %717 = vmatpush1.msra.mxu0 0.0
        %718 = vmatprep.subr.mxu0 0.0
        %719 = vmatpush1.msra.mxu0 0.0
        %720 = vmatprep.subr.mxu0 0.0
        %721 = vmatpush1.msra.mxu0 0.0
        %722 = vmatprep.subr.mxu0 0.0
        %723 = vmatpush1.msra.mxu0 0.0
        %724 = vmatprep.subr.mxu0 0.0
        %725 = vmatpush1.msra.mxu0 0.0
        %726 = vmatprep.subr.mxu0 0.0
        %727 = vmatpush1.msra.mxu0 0.0
        %728 = vmatprep.subr.mxu0 0.0
        %729 = vmatpush1.msra.mxu0 0.0
        %730 = vmatprep.subr.mxu0 0.0
        %731 = vmatpush1.msra.mxu0 0.0
        %732 = vmatprep.subr.mxu0 0.0
        %733 = vmatpush1.msra.mxu0 0.0
        %734 = vmatprep.subr.mxu0 0.0
        %735 = vmatpush1.msra.mxu0 0.0
        %736 = vmatprep.subr.mxu0 0.0
        %737 = vmatpush1.msra.mxu0 0.0
        %738 = vmatprep.subr.mxu0 0.0
        %739 = vmatpush1.msra.mxu0 0.0
        %740 = vmatprep.subr.mxu0 0.0
        %741 = vmatpush1.msra.mxu0 0.0
        %742 = vmatprep.subr.mxu0 0.0
        %743 = vmatpush1.msra.mxu0 0.0
        %744 = vmatprep.subr.mxu0 0.0
        %745 = vmatpush1.msra.mxu0 0.0
        %746 = vmatprep.subr.mxu0 0.0
        %747 = vmatpush1.msra.mxu0 0.0
        %748 = vmatprep.subr.mxu0 0.0
        %749 = vmatpush1.msra.mxu0 0.0
        %750 = vmatprep.subr.mxu0 0.0
        %751 = vmatpush1.msra.mxu0 0.0
        %752 = vmatprep.mubr.f32.mxu0 0.0
        %v753 = vand.u32 %v302, 4294901760
        %v754 = vsub.f32 %v302, %v753
        %v755 = vand.u32 %v754, 4294901760
        %756 = vmatmul.mubr.f32.gmra.mrb[0].mxu0 %v755
        %v757 = vpop.f32.mrb[0].mxu0
        %v758 = vadd.f32 %v646, %v757
        %v759 = vpop.f32.mrb[0].mxu0
        %760 = vmatprep.mubr.f32.mxu0 0.0
        %v761 = vand.u32 %v305, 4294901760
        %v762 = vsub.f32 %v305, %v761
        %v763 = vand.u32 %v762, 4294901760
        %764 = vmatmul.mubr.f32.gmra.mrb[0].mxu0 %v763
        %v765 = vpop.f32.mrb[0].mxu0
        %v766 = vadd.f32 %v653, %v765
        %v767 = vpop.f32.mrb[0].mxu0
        %768 = vmatprep.mubr.f32.mxu0 0.0
        %v769 = vand.u32 %v308, 4294901760
        %v770 = vsub.f32 %v308, %v769
        %v771 = vand.u32 %v770, 4294901760
        %772 = vmatmul.mubr.f32.gmra.mrb[0].mxu0 %v771
        %v773 = vpop.f32.mrb[0].mxu0
        %v774 = vadd.f32 %v660, %v773
        %v775 = vpop.f32.mrb[0].mxu0
        %776 = vmatprep.mubr.f32.mxu0 0.0
        %v777 = vand.u32 %v311, 4294901760
        %v778 = vsub.f32 %v311, %v777
        %v779 = vand.u32 %v778, 4294901760
        %780 = vmatmul.mubr.f32.gmra.mrb[0].mxu0 %v779
        %v781 = vpop.f32.mrb[0].mxu0
        %v782 = vadd.f32 %v667, %v781
        %v783 = vpop.f32.mrb[0].mxu0
        %784 = vmatprep.mubr.f32.mxu0 0.0
        %v785 = vand.u32 %v314, 4294901760
        %v786 = vsub.f32 %v314, %v785
        %v787 = vand.u32 %v786, 4294901760
        %788 = vmatmul.mubr.f32.gmra.mrb[0].mxu0 %v787
        %v789 = vpop.f32.mrb[0].mxu0
        %v790 = vadd.f32 %v674, %v789
        %v791 = vpop.f32.mrb[0].mxu0
        %792 = vmatprep.mubr.f32.mxu0 0.0
        %v793 = vand.u32 %v317, 4294901760
        %v794 = vsub.f32 %v317, %v793
        %v795 = vand.u32 %v794, 4294901760
        %796 = vmatmul.mubr.f32.gmra.mrb[0].mxu0 %v795
        %v797 = vpop.f32.mrb[0].mxu0
        %v798 = vadd.f32 %v681, %v797
        %v799 = vpop.f32.mrb[0].mxu0
        %800 = vdwg.mxu0
        %801 = vmatprep.subr.mxu0 0.0
        %v802 = vand.u32 %v296, 4294901760
        %v803 = vsub.f32 %v296, %v802
        %v804 = vand.u32 %v803, 4294901760
        %805 = vmatpush1.msra.mxu0 %v804
        %806 = vmatprep.subr.mxu0 0.0
        %v807 = vand.u32 %v297, 4294901760
        %v808 = vsub.f32 %v297, %v807
        %v809 = vand.u32 %v808, 4294901760
        %810 = vmatpush1.msra.mxu0 %v809
        %811 = vmatprep.subr.mxu0 0.0
        %v812 = vand.u32 %v298, 4294901760
        %v813 = vsub.f32 %v298, %v812
        %v814 = vand.u32 %v813, 4294901760
        %815 = vmatpush1.msra.mxu0 %v814
        %816 = vmatprep.subr.mxu0 0.0
        %v817 = vand.u32 %v299, 4294901760
        %v818 = vsub.f32 %v299, %v817
        %v819 = vand.u32 %v818, 4294901760
        %820 = vmatpush1.msra.mxu0 %v819
        %821 = vmatprep.subr.mxu0 0.0
        %822 = vmatpush1.msra.mxu0 0.0
        %823 = vmatprep.subr.mxu0 0.0
        %824 = vmatpush1.msra.mxu0 0.0
        %825 = vmatprep.subr.mxu0 0.0
        %826 = vmatpush1.msra.mxu0 0.0
        %827 = vmatprep.subr.mxu0 0.0
        %828 = vmatpush1.msra.mxu0 0.0
        %829 = vmatprep.subr.mxu0 0.0
        %830 = vmatpush1.msra.mxu0 0.0
        %831 = vmatprep.subr.mxu0 0.0
        %832 = vmatpush1.msra.mxu0 0.0
        %833 = vmatprep.subr.mxu0 0.0
        %834 = vmatpush1.msra.mxu0 0.0
        %835 = vmatprep.subr.mxu0 0.0
        %836 = vmatpush1.msra.mxu0 0.0
        %837 = vmatprep.subr.mxu0 0.0
        %838 = vmatpush1.msra.mxu0 0.0
        %839 = vmatprep.subr.mxu0 0.0
        %840 = vmatpush1.msra.mxu0 0.0
        %841 = vmatprep.subr.mxu0 0.0
        %842 = vmatpush1.msra.mxu0 0.0
        %843 = vmatprep.subr.mxu0 0.0
        %844 = vmatpush1.msra.mxu0 0.0
        %845 = vmatprep.subr.mxu0 0.0
        %846 = vmatpush1.msra.mxu0 0.0
        %847 = vmatprep.subr.mxu0 0.0
        %848 = vmatpush1.msra.mxu0 0.0
        %849 = vmatprep.subr.mxu0 0.0
        %850 = vmatpush1.msra.mxu0 0.0
        %851 = vmatprep.subr.mxu0 0.0
        %852 = vmatpush1.msra.mxu0 0.0
        %853 = vmatprep.subr.mxu0 0.0
        %854 = vmatpush1.msra.mxu0 0.0
        %855 = vmatprep.subr.mxu0 0.0
        %856 = vmatpush1.msra.mxu0 0.0
        %857 = vmatprep.subr.mxu0 0.0
        %858 = vmatpush1.msra.mxu0 0.0
        %859 = vmatprep.subr.mxu0 0.0
        %860 = vmatpush1.msra.mxu0 0.0
        %861 = vmatprep.subr.mxu0 0.0
        %862 = vmatpush1.msra.mxu0 0.0
        %863 = vmatprep.subr.mxu0 0.0
        %864 = vmatpush1.msra.mxu0 0.0
        %865 = vmatprep.subr.mxu0 0.0
        %866 = vmatpush1.msra.mxu0 0.0
        %867 = vmatprep.subr.mxu0 0.0
        %868 = vmatpush1.msra.mxu0 0.0
        %869 = vmatprep.subr.mxu0 0.0
        %870 = vmatpush1.msra.mxu0 0.0
        %871 = vmatprep.subr.mxu0 0.0
        %872 = vmatpush1.msra.mxu0 0.0
        %873 = vmatprep.subr.mxu0 0.0
        %874 = vmatpush1.msra.mxu0 0.0
        %875 = vmatprep.subr.mxu0 0.0
        %876 = vmatpush1.msra.mxu0 0.0
        %877 = vmatprep.mubr.f32.mxu0 0.0
        %v878 = vand.u32 %v302, 4294901760
        %879 = vmatmul.mubr.f32.gmra.mrb[0].mxu0 %v878
        %v880 = vpop.f32.mrb[0].mxu0
        %v881 = vadd.f32 %v758, %v880
        %v882 = vpop.f32.mrb[0].mxu0
        %883 = vmatprep.mubr.f32.mxu0 0.0
        %v884 = vand.u32 %v305, 4294901760
        %885 = vmatmul.mubr.f32.gmra.mrb[0].mxu0 %v884
        %v886 = vpop.f32.mrb[0].mxu0
        %v887 = vadd.f32 %v766, %v886
        %v888 = vpop.f32.mrb[0].mxu0
        %889 = vmatprep.mubr.f32.mxu0 0.0
        %v890 = vand.u32 %v308, 4294901760
        %891 = vmatmul.mubr.f32.gmra.mrb[0].mxu0 %v890
        %v892 = vpop.f32.mrb[0].mxu0
        %v893 = vadd.f32 %v774, %v892
        %v894 = vpop.f32.mrb[0].mxu0
        %895 = vmatprep.mubr.f32.mxu0 0.0
        %v896 = vand.u32 %v311, 4294901760
        %897 = vmatmul.mubr.f32.gmra.mrb[0].mxu0 %v896
        %v898 = vpop.f32.mrb[0].mxu0
        %v899 = vadd.f32 %v782, %v898
        %v900 = vpop.f32.mrb[0].mxu0
        %901 = vmatprep.mubr.f32.mxu0 0.0
        %v902 = vand.u32 %v314, 4294901760
        %903 = vmatmul.mubr.f32.gmra.mrb[0].mxu0 %v902
        %v904 = vpop.f32.mrb[0].mxu0
        %v905 = vadd.f32 %v790, %v904
        %v906 = vpop.f32.mrb[0].mxu0
        %907 = vmatprep.mubr.f32.mxu0 0.0
        %v908 = vand.u32 %v317, 4294901760
        %909 = vmatmul.mubr.f32.gmra.mrb[0].mxu0 %v908
        %v910 = vpop.f32.mrb[0].mxu0
        %v911 = vadd.f32 %v798, %v910
        %v912 = vpop.f32.mrb[0].mxu0
        %913 = vdwg.mxu0
        %914 = vmatprep.subr.mxu0 0.0
        %v915 = vand.u32 %v296, 4294901760
        %916 = vmatpush1.msra.mxu0 %v915
        %917 = vmatprep.subr.mxu0 0.0
        %v918 = vand.u32 %v297, 4294901760
        %919 = vmatpush1.msra.mxu0 %v918
        %920 = vmatprep.subr.mxu0 0.0
        %v921 = vand.u32 %v298, 4294901760
        %922 = vmatpush1.msra.mxu0 %v921
        %923 = vmatprep.subr.mxu0 0.0
        %v924 = vand.u32 %v299, 4294901760
        %925 = vmatpush1.msra.mxu0 %v924
        %926 = vmatprep.subr.mxu0 0.0
        %927 = vmatpush1.msra.mxu0 0.0
        %928 = vmatprep.subr.mxu0 0.0
        %929 = vmatpush1.msra.mxu0 0.0
        %930 = vmatprep.subr.mxu0 0.0
        %931 = vmatpush1.msra.mxu0 0.0
        %932 = vmatprep.subr.mxu0 0.0
        %933 = vmatpush1.msra.mxu0 0.0
        %934 = vmatprep.subr.mxu0 0.0
        %935 = vmatpush1.msra.mxu0 0.0
        %936 = vmatprep.subr.mxu0 0.0
        %937 = vmatpush1.msra.mxu0 0.0
        %938 = vmatprep.subr.mxu0 0.0
        %939 = vmatpush1.msra.mxu0 0.0
        %940 = vmatprep.subr.mxu0 0.0
        %941 = vmatpush1.msra.mxu0 0.0
        %942 = vmatprep.subr.mxu0 0.0
        %943 = vmatpush1.msra.mxu0 0.0
        %944 = vmatprep.subr.mxu0 0.0
        %945 = vmatpush1.msra.mxu0 0.0
        %946 = vmatprep.subr.mxu0 0.0
        %947 = vmatpush1.msra.mxu0 0.0
        %948 = vmatprep.subr.mxu0 0.0
        %949 = vmatpush1.msra.mxu0 0.0
        %950 = vmatprep.subr.mxu0 0.0
        %951 = vmatpush1.msra.mxu0 0.0
        %952 = vmatprep.subr.mxu0 0.0
        %953 = vmatpush1.msra.mxu0 0.0
        %954 = vmatprep.subr.mxu0 0.0
        %955 = vmatpush1.msra.mxu0 0.0
        %956 = vmatprep.subr.mxu0 0.0
        %957 = vmatpush1.msra.mxu0 0.0
        %958 = vmatprep.subr.mxu0 0.0
        %959 = vmatpush1.msra.mxu0 0.0
        %960 = vmatprep.subr.mxu0 0.0
        %961 = vmatpush1.msra.mxu0 0.0
        %962 = vmatprep.subr.mxu0 0.0
        %963 = vmatpush1.msra.mxu0 0.0
        %964 = vmatprep.subr.mxu0 0.0
        %965 = vmatpush1.msra.mxu0 0.0
        %966 = vmatprep.subr.mxu0 0.0
        %967 = vmatpush1.msra.mxu0 0.0
        %968 = vmatprep.subr.mxu0 0.0
        %969 = vmatpush1.msra.mxu0 0.0
        %970 = vmatprep.subr.mxu0 0.0
        %971 = vmatpush1.msra.mxu0 0.0
        %972 = vmatprep.subr.mxu0 0.0
        %973 = vmatpush1.msra.mxu0 0.0
        %974 = vmatprep.subr.mxu0 0.0
        %975 = vmatpush1.msra.mxu0 0.0
        %976 = vmatprep.subr.mxu0 0.0
        %977 = vmatpush1.msra.mxu0 0.0
        %978 = vmatprep.subr.mxu0 0.0
        %979 = vmatpush1.msra.mxu0 0.0
        %980 = vmatprep.subr.mxu0 0.0
        %981 = vmatpush1.msra.mxu0 0.0
        %982 = vmatprep.mubr.f32.mxu0 0.0
        %v983 = vand.u32 %v302, 4294901760
        %984 = vmatmul.mubr.f32.gmra.mrb[0].mxu0 %v983
        %v985 = vpop.f32.mrb[0].mxu0
        %v986 = vadd.f32 %v881, %v985
        %v987 = vpop.f32.mrb[0].mxu0
        %988 = vmatprep.mubr.f32.mxu0 0.0
        %v989 = vand.u32 %v305, 4294901760
        %990 = vmatmul.mubr.f32.gmra.mrb[0].mxu0 %v989
        %v991 = vpop.f32.mrb[0].mxu0
        %v992 = vadd.f32 %v887, %v991
        %v993 = vpop.f32.mrb[0].mxu0
        %994 = vmatprep.mubr.f32.mxu0 0.0
        %v995 = vand.u32 %v308, 4294901760
        %996 = vmatmul.mubr.f32.gmra.mrb[0].mxu0 %v995
        %v997 = vpop.f32.mrb[0].mxu0
        %v998 = vadd.f32 %v893, %v997
        %v999 = vpop.f32.mrb[0].mxu0
        %1000 = vmatprep.mubr.f32.mxu0 0.0
        %v1001 = vand.u32 %v311, 4294901760
        %1002 = vmatmul.mubr.f32.gmra.mrb[0].mxu0 %v1001
        %v1003 = vpop.f32.mrb[0].mxu0
        %v1004 = vadd.f32 %v899, %v1003
        %v1005 = vpop.f32.mrb[0].mxu0
        %1006 = vmatprep.mubr.f32.mxu0 0.0
        %v1007 = vand.u32 %v314, 4294901760
        %1008 = vmatmul.mubr.f32.gmra.mrb[0].mxu0 %v1007
        %v1009 = vpop.f32.mrb[0].mxu0
        %v1010 = vadd.f32 %v905, %v1009
        %v1011 = vpop.f32.mrb[0].mxu0
        %1012 = vmatprep.mubr.f32.mxu0 0.0
        %v1013 = vand.u32 %v317, 4294901760
        %1014 = vmatmul.mubr.f32.gmra.mrb[0].mxu0 %v1013
        %v1015 = vpop.f32.mrb[0].mxu0
        %v1016 = vadd.f32 %v911, %v1015
        %v1017 = vpop.f32.mrb[0].mxu0
        %1018 = vdwg.mxu0
        %vm1019 = vcmask 60416
        %1020 = vst.msk [vmem:[#allocation2] sm:$0xf] %vm1019, %v986
        %1022 = vrot.lane.b32.xlu0 %v986, 8
        %v1023 = vpop.permute.xlu0 %1022
        %vm1025 = vcmask 130116
        %1026 = vst.msk [vmem:[#allocation2 - $0x4] sm:$0xf0] %vm1025, %v1023
        %1028 = vrot.lane.b32.xlu0 %v992, 16
        %v1029 = vpop.permute.xlu0 %1028
        %vm1031 = vcmask 191616
        %1032 = vst.msk [vmem:[#allocation2] sm:$0xf] %vm1031, %v1029
        %1033 = vrot.lane.b32.xlu0 %v992, 24
        %v1034 = vpop.permute.xlu0 %1033
        %vm1036 = vcmask 261316
        %1037 = vst.msk [vmem:[#allocation2 - $0x4] sm:$0xf0] %vm1036, %v1034
        %1038 = vst.msk [vmem:[#allocation2 + $0x4] sm:$0xf] %vm1019, %v998
        %1040 = vrot.lane.b32.xlu0 %v998, 8
        %v1041 = vpop.permute.xlu0 %1040
        %1043 = vst.msk [vmem:[#allocation2] sm:$0xf0] %vm1025, %v1041
        %1045 = vrot.lane.b32.xlu0 %v1004, 16
        %v1046 = vpop.permute.xlu0 %1045
        %1048 = vst.msk [vmem:[#allocation2 + $0x4] sm:$0xf] %vm1031, %v1046
        %1049 = vrot.lane.b32.xlu0 %v1004, 24
        %v1050 = vpop.permute.xlu0 %1049
        %1052 = vst.msk [vmem:[#allocation2] sm:$0xf0] %vm1036, %v1050
        %1053 = vst.msk [vmem:[#allocation2 + $0x8] sm:$0xf] %vm1019, %v1010
        %1055 = vrot.lane.b32.xlu0 %v1010, 8
        %v1056 = vpop.permute.xlu0 %1055
        %1058 = vst.msk [vmem:[#allocation2 + $0x4] sm:$0xf0] %vm1025, %v1056
        %1060 = vrot.lane.b32.xlu0 %v1016, 16
        %v1061 = vpop.permute.xlu0 %1060
        %1063 = vst.msk [vmem:[#allocation2 + $0x8] sm:$0xf] %vm1031, %v1061
        %1064 = vrot.lane.b32.xlu0 %v1016, 24
        %v1065 = vpop.permute.xlu0 %1064
        %1067 = vst.msk [vmem:[#allocation2 + $0x4] sm:$0xf0] %vm1036, %v1065
        %1068 = vrot.lane.b32.xlu0 %v986, 120
        %v1069 = vpop.permute.xlu0 %1068
        %1071 = vst.msk [vmem:[#allocation2 + $0xc] sm:$0xf] %vm1019, %v1069
        %1072 = vst.msk [vmem:[#allocation2 + $0x8] sm:$0xf0] %vm1025, %v986
        %1073 = vrot.lane.b32.xlu0 %v992, 8
        %v1074 = vpop.permute.xlu0 %1073
        %1076 = vst.msk [vmem:[#allocation2 + $0xc] sm:$0xf] %vm1031, %v1074
        %1077 = vst.msk [vmem:[#allocation2 + $0x8] sm:$0xf0] %vm1036, %v1029
        %1078 = vrot.lane.b32.xlu0 %v998, 120
        %v1079 = vpop.permute.xlu0 %1078
        %1081 = vst.msk [vmem:[#allocation2 + $0x10] sm:$0xf] %vm1019, %v1079
        %1082 = vst.msk [vmem:[#allocation2 + $0xc] sm:$0xf0] %vm1025, %v998
        %1083 = vrot.lane.b32.xlu0 %v1004, 8
        %v1084 = vpop.permute.xlu0 %1083
        %1086 = vst.msk [vmem:[#allocation2 + $0x10] sm:$0xf] %vm1031, %v1084
        %1087 = vst.msk [vmem:[#allocation2 + $0xc] sm:$0xf0] %vm1036, %v1046
        %1088 = vrot.lane.b32.xlu0 %v1010, 120
        %v1089 = vpop.permute.xlu0 %1088
        %1091 = vst.msk [vmem:[#allocation2 + $0x14] sm:$0xf] %vm1019, %v1089
        %1092 = vst.msk [vmem:[#allocation2 + $0x10] sm:$0xf0] %vm1025, %v1010
        %1093 = vrot.lane.b32.xlu0 %v1016, 8
        %v1094 = vpop.permute.xlu0 %1093
        %1096 = vst.msk [vmem:[#allocation2 + $0x14] sm:$0xf] %vm1031, %v1094
        %1097 = vst.msk [vmem:[#allocation2 + $0x10] sm:$0xf0] %vm1036, %v1061
        %1098 = vrot.lane.b32.xlu0 %v986, 112
        %v1099 = vpop.permute.xlu0 %1098
        %1101 = vst.msk [vmem:[#allocation2 + $0x18] sm:$0xf] %vm1019, %v1099
        %1102 = vst.msk [vmem:[#allocation2 + $0x14] sm:$0xf0] %vm1025, %v1069
        %1103 = vst.msk [vmem:[#allocation2 + $0x18] sm:$0xf] %vm1031, %v992
        %1104 = vst.msk [vmem:[#allocation2 + $0x14] sm:$0xf0] %vm1036, %v1074
        %1105 = vrot.lane.b32.xlu0 %v998, 112
        %v1106 = vpop.permute.xlu0 %1105
        %1108 = vst.msk [vmem:[#allocation2 + $0x1c] sm:$0xf] %vm1019, %v1106
        %1109 = vst.msk [vmem:[#allocation2 + $0x18] sm:$0xf0] %vm1025, %v1079
        %1110 = vst.msk [vmem:[#allocation2 + $0x1c] sm:$0xf] %vm1031, %v1004
        %1111 = vst.msk [vmem:[#allocation2 + $0x18] sm:$0xf0] %vm1036, %v1084
        %1112 = vrot.lane.b32.xlu0 %v1010, 112
        %v1113 = vpop.permute.xlu0 %1112
        %1115 = vst.msk [vmem:[#allocation2 + $0x20] sm:$0xf] %vm1019, %v1113
        %1116 = vst.msk [vmem:[#allocation2 + $0x1c] sm:$0xf0] %vm1025, %v1089
        %1117 = vst.msk [vmem:[#allocation2 + $0x20] sm:$0xf] %vm1031, %v1016
        %1118 = vst.msk [vmem:[#allocation2 + $0x1c] sm:$0xf0] %vm1036, %v1094
        %1119 = vrot.lane.b32.xlu0 %v986, 104
        %v1120 = vpop.permute.xlu0 %1119
        %1122 = vst.msk [vmem:[#allocation2 + $0x24] sm:$0xf] %vm1019, %v1120
        %1123 = vst.msk [vmem:[#allocation2 + $0x20] sm:$0xf0] %vm1025, %v1099
        %1124 = vrot.lane.b32.xlu0 %v992, 120
        %v1125 = vpop.permute.xlu0 %1124
        %1127 = vst.msk [vmem:[#allocation2 + $0x24] sm:$0xf] %vm1031, %v1125
        %1128 = vst.msk [vmem:[#allocation2 + $0x20] sm:$0xf0] %vm1036, %v992
        %1129 = vrot.lane.b32.xlu0 %v998, 104
        %v1130 = vpop.permute.xlu0 %1129
        %1132 = vst.msk [vmem:[#allocation2 + $0x28] sm:$0xf] %vm1019, %v1130
        %1133 = vst.msk [vmem:[#allocation2 + $0x24] sm:$0xf0] %vm1025, %v1106
        %1134 = vrot.lane.b32.xlu0 %v1004, 120
        %v1135 = vpop.permute.xlu0 %1134
        %1137 = vst.msk [vmem:[#allocation2 + $0x28] sm:$0xf] %vm1031, %v1135
        %1138 = vst.msk [vmem:[#allocation2 + $0x24] sm:$0xf0] %vm1036, %v1004
        %1139 = vrot.lane.b32.xlu0 %v1010, 104
        %v1140 = vpop.permute.xlu0 %1139
        %1142 = vst.msk [vmem:[#allocation2 + $0x2c] sm:$0xf] %vm1019, %v1140
        %1143 = vst.msk [vmem:[#allocation2 + $0x28] sm:$0xf0] %vm1025, %v1113
        %1144 = vrot.lane.b32.xlu0 %v1016, 120
        %v1145 = vpop.permute.xlu0 %1144
        %1147 = vst.msk [vmem:[#allocation2 + $0x2c] sm:$0xf] %vm1031, %v1145
        %1148 = vst.msk [vmem:[#allocation2 + $0x28] sm:$0xf0] %vm1036, %v1016
        %v1149 = vld [vmem:[#allocation2] sm:$0xff]
        %v1150 = vld [vmem:[#allocation2 + $0x8] sm:$0xff]
        %v1151 = vld [vmem:[#allocation2 + $0x10] sm:$0xff]
        %v1152 = vld [vmem:[#allocation2 + $0x18] sm:$0xff]
        %v1153 = vld [vmem:[#allocation2 + $0x20] sm:$0xff]
        %v1154 = vld [vmem:[#allocation2 + $0x28] sm:$0xff]
        %v1155 = vld [vmem:[#allocation8] sm:$0xff]
        %v1156 = vld [vmem:[#allocation8 + $0x8] sm:$0xff]
        %v1157 = vld [vmem:[#allocation8 + $0x10] sm:$0xff]
        %v1158 = vld [vmem:[#allocation8 + $0x18] sm:$0xff]
        %v1159 = vld [vmem:[#allocation8 + $0x20] sm:$0xff]
        %v1160 = vld [vmem:[#allocation8 + $0x28] sm:$0xff]
        %v1161 = vld [vmem:[%s3] sm:$0x1]
        %v1163 = vlaneseq
        %v1164 = vshrl.u32 %v1163, 7
        %v1165 = vsub.s32 0, %v1164
        %v1166 = vrot.slane %v1161, %v1165
        %1168 = vxpose.xlu0.b32.start [1/16] %v1149, 128
        %1169 = vxpose.xlu0.b32.cont [2/16] %v1150, 128
        %1170 = vxpose.xlu0.b32.cont [3/16] %v1151, 128
        %1171 = vxpose.xlu0.b32.cont [4/16] %v1152, 128
        %1172 = vxpose.xlu0.b32.cont [5/16] %v1153, 128
        %1173 = vxpose.xlu0.b32.cont [6/16] %v1154, 128
        %1174 = vxpose.xlu0.b32.cont [7/16] 0.0, 128
        %1175 = vxpose.xlu0.b32.cont [8/16] 0.0, 128
        %1176 = vxpose.xlu0.b32.cont [9/16] 0.0, 128
        %1177 = vxpose.xlu0.b32.cont [10/16] 0.0, 128
        %1178 = vxpose.xlu0.b32.cont [11/16] 0.0, 128
        %1179 = vxpose.xlu0.b32.cont [12/16] 0.0, 128
        %1180 = vxpose.xlu0.b32.cont [13/16] 0.0, 128
        %1181 = vxpose.xlu0.b32.cont [14/16] 0.0, 128
        %1182 = vxpose.xlu0.b32.cont [15/16] 0.0, 128
        %1183 = vxpose.xlu0.b32.end [16/16] 0.0, 128
        %v1184 = vpop.trf.xlu0
        %v1185 = vpop.trf.xlu0
        %v1186 = vpop.trf.xlu0
        %v1187 = vpop.trf.xlu0
        %v1188 = vpop.trf.xlu0
        %v1189 = vpop.trf.xlu0
        %v1190 = vpop.trf.xlu0
        %v1191 = vpop.trf.xlu0
        %v1192 = vpop.trf.xlu0
        %v1193 = vpop.trf.xlu0
        %v1194 = vpop.trf.xlu0
        %v1195 = vpop.trf.xlu0
        %v1196 = vpop.trf.xlu0
        %v1197 = vpop.trf.xlu0
        %v1198 = vpop.trf.xlu0
        %v1199 = vpop.trf.xlu0
        %vm1200 = vcmask 392192
        %v1202 = vsel %vm1200, %v1184, 0
        %v1205 = vsel %vm1200, %v1185, 0
        %v1208 = vsel %vm1200, %v1186, 0
        %v1211 = vsel %vm1200, %v1187, 0
        %1213 = vmatprep.subr.mxu0 0.0
        %v1214 = vand.u32 %v1155, 4294901760
        %1215 = vmatpush1.msra.mxu0 %v1214
        %1216 = vmatprep.subr.mxu0 0.0
        %v1217 = vand.u32 %v1156, 4294901760
        %1218 = vmatpush1.msra.mxu0 %v1217
        %1219 = vmatprep.subr.mxu0 0.0
        %v1220 = vand.u32 %v1157, 4294901760
        %1221 = vmatpush1.msra.mxu0 %v1220
        %1222 = vmatprep.subr.mxu0 0.0
        %v1223 = vand.u32 %v1158, 4294901760
        %1224 = vmatpush1.msra.mxu0 %v1223
        %1225 = vmatprep.subr.mxu0 0.0
        %v1226 = vand.u32 %v1159, 4294901760
        %1227 = vmatpush1.msra.mxu0 %v1226
        %1228 = vmatprep.subr.mxu0 0.0
        %v1229 = vand.u32 %v1160, 4294901760
        %1230 = vmatpush1.msra.mxu0 %v1229
        %1231 = vmatprep.subr.mxu0 0.0
        %1232 = vmatpush1.msra.mxu0 0.0
        %1233 = vmatprep.subr.mxu0 0.0
        %1234 = vmatpush1.msra.mxu0 0.0
        %1235 = vmatprep.subr.mxu0 0.0
        %1236 = vmatpush1.msra.mxu0 0.0
        %1237 = vmatprep.subr.mxu0 0.0
        %1238 = vmatpush1.msra.mxu0 0.0
        %1239 = vmatprep.subr.mxu0 0.0
        %1240 = vmatpush1.msra.mxu0 0.0
        %1241 = vmatprep.subr.mxu0 0.0
        %1242 = vmatpush1.msra.mxu0 0.0
        %1243 = vmatprep.subr.mxu0 0.0
        %1244 = vmatpush1.msra.mxu0 0.0
        %1245 = vmatprep.subr.mxu0 0.0
        %1246 = vmatpush1.msra.mxu0 0.0
        %1247 = vmatprep.subr.mxu0 0.0
        %1248 = vmatpush1.msra.mxu0 0.0
        %1249 = vmatprep.subr.mxu0 0.0
        %1250 = vmatpush1.msra.mxu0 0.0
        %1251 = vmatprep.subr.mxu0 0.0
        %1252 = vmatpush1.msra.mxu0 0.0
        %1253 = vmatprep.subr.mxu0 0.0
        %1254 = vmatpush1.msra.mxu0 0.0
        %1255 = vmatprep.subr.mxu0 0.0
        %1256 = vmatpush1.msra.mxu0 0.0
        %1257 = vmatprep.subr.mxu0 0.0
        %1258 = vmatpush1.msra.mxu0 0.0
        %1259 = vmatprep.subr.mxu0 0.0
        %1260 = vmatpush1.msra.mxu0 0.0
        %1261 = vmatprep.subr.mxu0 0.0
        %1262 = vmatpush1.msra.mxu0 0.0
        %1263 = vmatprep.subr.mxu0 0.0
        %1264 = vmatpush1.msra.mxu0 0.0
        %1265 = vmatprep.subr.mxu0 0.0
        %1266 = vmatpush1.msra.mxu0 0.0
        %1267 = vmatprep.subr.mxu0 0.0
        %1268 = vmatpush1.msra.mxu0 0.0
        %1269 = vmatprep.subr.mxu0 0.0
        %1270 = vmatpush1.msra.mxu0 0.0
        %1271 = vmatprep.subr.mxu0 0.0
        %1272 = vmatpush1.msra.mxu0 0.0
        %1273 = vmatprep.subr.mxu0 0.0
        %1274 = vmatpush1.msra.mxu0 0.0
        %1275 = vmatprep.subr.mxu0 0.0
        %1276 = vmatpush1.msra.mxu0 0.0
        %1277 = vmatprep.subr.mxu0 0.0
        %1278 = vmatpush1.msra.mxu0 0.0
        %1279 = vmatprep.subr.mxu0 0.0
        %1280 = vmatpush1.msra.mxu0 0.0
        %1281 = vmatprep.subr.mxu0 0.0
        %1282 = vmatpush1.msra.mxu0 0.0
        %1283 = vmatprep.mubr.f32.mxu0 0.0
        %v1284 = vand.u32 %v1202, 4294901760
        %v1285 = vsub.f32 %v1202, %v1284
        %v1286 = vand.u32 %v1285, 4294901760
        %v1287 = vsub.f32 %v1285, %v1286
        %v1288 = vand.u32 %v1287, 4294901760
        %1289 = vmatmul.mubr.f32.gmra.mrb[0].mxu0 %v1288
        %v1290 = vpop.f32.mrb[0].mxu0
        %v1291 = vadd.f32 %v1166, %v1290
        %v1292 = vpop.f32.mrb[0].mxu0
        %1293 = vmatprep.mubr.f32.mxu0 0.0
        %v1294 = vand.u32 %v1205, 4294901760
        %v1295 = vsub.f32 %v1205, %v1294
        %v1296 = vand.u32 %v1295, 4294901760
        %v1297 = vsub.f32 %v1295, %v1296
        %v1298 = vand.u32 %v1297, 4294901760
        %1299 = vmatmul.mubr.f32.gmra.mrb[0].mxu0 %v1298
        %v1300 = vpop.f32.mrb[0].mxu0
        %v1301 = vadd.f32 %v1166, %v1300
        %v1302 = vpop.f32.mrb[0].mxu0
        %1303 = vmatprep.mubr.f32.mxu0 0.0
        %v1304 = vand.u32 %v1208, 4294901760
        %v1305 = vsub.f32 %v1208, %v1304
        %v1306 = vand.u32 %v1305, 4294901760
        %v1307 = vsub.f32 %v1305, %v1306
        %v1308 = vand.u32 %v1307, 4294901760
        %1309 = vmatmul.mubr.f32.gmra.mrb[0].mxu0 %v1308
        %v1310 = vpop.f32.mrb[0].mxu0
        %v1311 = vadd.f32 %v1166, %v1310
        %v1312 = vpop.f32.mrb[0].mxu0
        %1313 = vmatprep.mubr.f32.mxu0 0.0
        %v1314 = vand.u32 %v1211, 4294901760
        %v1315 = vsub.f32 %v1211, %v1314
        %v1316 = vand.u32 %v1315, 4294901760
        %v1317 = vsub.f32 %v1315, %v1316
        %v1318 = vand.u32 %v1317, 4294901760
        %1319 = vmatmul.mubr.f32.gmra.mrb[0].mxu0 %v1318
        %v1320 = vpop.f32.mrb[0].mxu0
        %v1321 = vadd.f32 %v1166, %v1320
        %v1322 = vpop.f32.mrb[0].mxu0
        %1323 = vdwg.mxu0
        %1324 = vmatprep.subr.mxu0 0.0
        %v1325 = vand.u32 %v1155, 4294901760
        %v1326 = vsub.f32 %v1155, %v1325
        %v1327 = vand.u32 %v1326, 4294901760
        %v1328 = vsub.f32 %v1326, %v1327
        %v1329 = vand.u32 %v1328, 4294901760
        %1330 = vmatpush1.msra.mxu0 %v1329
        %1331 = vmatprep.subr.mxu0 0.0
        %v1332 = vand.u32 %v1156, 4294901760
        %v1333 = vsub.f32 %v1156, %v1332
        %v1334 = vand.u32 %v1333, 4294901760
        %v1335 = vsub.f32 %v1333, %v1334
        %v1336 = vand.u32 %v1335, 4294901760
        %1337 = vmatpush1.msra.mxu0 %v1336
        %1338 = vmatprep.subr.mxu0 0.0
        %v1339 = vand.u32 %v1157, 4294901760
        %v1340 = vsub.f32 %v1157, %v1339
        %v1341 = vand.u32 %v1340, 4294901760
        %v1342 = vsub.f32 %v1340, %v1341
        %v1343 = vand.u32 %v1342, 4294901760
        %1344 = vmatpush1.msra.mxu0 %v1343
        %1345 = vmatprep.subr.mxu0 0.0
        %v1346 = vand.u32 %v1158, 4294901760
        %v1347 = vsub.f32 %v1158, %v1346
        %v1348 = vand.u32 %v1347, 4294901760
        %v1349 = vsub.f32 %v1347, %v1348
        %v1350 = vand.u32 %v1349, 4294901760
        %1351 = vmatpush1.msra.mxu0 %v1350
        %1352 = vmatprep.subr.mxu0 0.0
        %v1353 = vand.u32 %v1159, 4294901760
        %v1354 = vsub.f32 %v1159, %v1353
        %v1355 = vand.u32 %v1354, 4294901760
        %v1356 = vsub.f32 %v1354, %v1355
        %v1357 = vand.u32 %v1356, 4294901760
        %1358 = vmatpush1.msra.mxu0 %v1357
        %1359 = vmatprep.subr.mxu0 0.0
        %v1360 = vand.u32 %v1160, 4294901760
        %v1361 = vsub.f32 %v1160, %v1360
        %v1362 = vand.u32 %v1361, 4294901760
        %v1363 = vsub.f32 %v1361, %v1362
        %v1364 = vand.u32 %v1363, 4294901760
        %1365 = vmatpush1.msra.mxu0 %v1364
        %1366 = vmatprep.subr.mxu0 0.0
        %1367 = vmatpush1.msra.mxu0 0.0
        %1368 = vmatprep.subr.mxu0 0.0
        %1369 = vmatpush1.msra.mxu0 0.0
        %1370 = vmatprep.subr.mxu0 0.0
        %1371 = vmatpush1.msra.mxu0 0.0
        %1372 = vmatprep.subr.mxu0 0.0
        %1373 = vmatpush1.msra.mxu0 0.0
        %1374 = vmatprep.subr.mxu0 0.0
        %1375 = vmatpush1.msra.mxu0 0.0
        %1376 = vmatprep.subr.mxu0 0.0
        %1377 = vmatpush1.msra.mxu0 0.0
        %1378 = vmatprep.subr.mxu0 0.0
        %1379 = vmatpush1.msra.mxu0 0.0
        %1380 = vmatprep.subr.mxu0 0.0
        %1381 = vmatpush1.msra.mxu0 0.0
        %1382 = vmatprep.subr.mxu0 0.0
        %1383 = vmatpush1.msra.mxu0 0.0
        %1384 = vmatprep.subr.mxu0 0.0
        %1385 = vmatpush1.msra.mxu0 0.0
        %1386 = vmatprep.subr.mxu0 0.0
        %1387 = vmatpush1.msra.mxu0 0.0
        %1388 = vmatprep.subr.mxu0 0.0
        %1389 = vmatpush1.msra.mxu0 0.0
        %1390 = vmatprep.subr.mxu0 0.0
        %1391 = vmatpush1.msra.mxu0 0.0
        %1392 = vmatprep.subr.mxu0 0.0
        %1393 = vmatpush1.msra.mxu0 0.0
        %1394 = vmatprep.subr.mxu0 0.0
        %1395 = vmatpush1.msra.mxu0 0.0
        %1396 = vmatprep.subr.mxu0 0.0
        %1397 = vmatpush1.msra.mxu0 0.0
        %1398 = vmatprep.subr.mxu0 0.0
        %1399 = vmatpush1.msra.mxu0 0.0
        %1400 = vmatprep.subr.mxu0 0.0
        %1401 = vmatpush1.msra.mxu0 0.0
        %1402 = vmatprep.subr.mxu0 0.0
        %1403 = vmatpush1.msra.mxu0 0.0
        %1404 = vmatprep.subr.mxu0 0.0
        %1405 = vmatpush1.msra.mxu0 0.0
        %1406 = vmatprep.subr.mxu0 0.0
        %1407 = vmatpush1.msra.mxu0 0.0
        %1408 = vmatprep.subr.mxu0 0.0
        %1409 = vmatpush1.msra.mxu0 0.0
        %1410 = vmatprep.subr.mxu0 0.0
        %1411 = vmatpush1.msra.mxu0 0.0
        %1412 = vmatprep.subr.mxu0 0.0
        %1413 = vmatpush1.msra.mxu0 0.0
        %1414 = vmatprep.subr.mxu0 0.0
        %1415 = vmatpush1.msra.mxu0 0.0
        %1416 = vmatprep.subr.mxu0 0.0
        %1417 = vmatpush1.msra.mxu0 0.0
        %1418 = vmatprep.mubr.f32.mxu0 0.0
        %v1419 = vand.u32 %v1202, 4294901760
        %1420 = vmatmul.mubr.f32.gmra.mrb[0].mxu0 %v1419
        %v1421 = vpop.f32.mrb[0].mxu0
        %v1422 = vadd.f32 %v1291, %v1421
        %v1423 = vpop.f32.mrb[0].mxu0
        %1424 = vmatprep.mubr.f32.mxu0 0.0
        %v1425 = vand.u32 %v1205, 4294901760
        %1426 = vmatmul.mubr.f32.gmra.mrb[0].mxu0 %v1425
        %v1427 = vpop.f32.mrb[0].mxu0
        %v1428 = vadd.f32 %v1301, %v1427
        %v1429 = vpop.f32.mrb[0].mxu0
        %1430 = vmatprep.mubr.f32.mxu0 0.0
        %v1431 = vand.u32 %v1208, 4294901760
        %1432 = vmatmul.mubr.f32.gmra.mrb[0].mxu0 %v1431
        %v1433 = vpop.f32.mrb[0].mxu0
        %v1434 = vadd.f32 %v1311, %v1433
        %v1435 = vpop.f32.mrb[0].mxu0
        %1436 = vmatprep.mubr.f32.mxu0 0.0
        %v1437 = vand.u32 %v1211, 4294901760
        %1438 = vmatmul.mubr.f32.gmra.mrb[0].mxu0 %v1437
        %v1439 = vpop.f32.mrb[0].mxu0
        %v1440 = vadd.f32 %v1321, %v1439
        %v1441 = vpop.f32.mrb[0].mxu0
        %1442 = vdwg.mxu0
        %1443 = vmatprep.subr.mxu0 0.0
        %v1444 = vand.u32 %v1155, 4294901760
        %v1445 = vsub.f32 %v1155, %v1444
        %1446 = vmatpush1.msra.mxu0 %v1445
        %1447 = vmatprep.subr.mxu0 0.0
        %v1448 = vand.u32 %v1156, 4294901760
        %v1449 = vsub.f32 %v1156, %v1448
        %1450 = vmatpush1.msra.mxu0 %v1449
        %1451 = vmatprep.subr.mxu0 0.0
        %v1452 = vand.u32 %v1157, 4294901760
        %v1453 = vsub.f32 %v1157, %v1452
        %1454 = vmatpush1.msra.mxu0 %v1453
        %1455 = vmatprep.subr.mxu0 0.0
        %v1456 = vand.u32 %v1158, 4294901760
        %v1457 = vsub.f32 %v1158, %v1456
        %1458 = vmatpush1.msra.mxu0 %v1457
        %1459 = vmatprep.subr.mxu0 0.0
        %v1460 = vand.u32 %v1159, 4294901760
        %v1461 = vsub.f32 %v1159, %v1460
        %1462 = vmatpush1.msra.mxu0 %v1461
        %1463 = vmatprep.subr.mxu0 0.0
        %v1464 = vand.u32 %v1160, 4294901760
        %v1465 = vsub.f32 %v1160, %v1464
        %1466 = vmatpush1.msra.mxu0 %v1465
        %1467 = vmatprep.subr.mxu0 0.0
        %1468 = vmatpush1.msra.mxu0 0.0
        %1469 = vmatprep.subr.mxu0 0.0
        %1470 = vmatpush1.msra.mxu0 0.0
        %1471 = vmatprep.subr.mxu0 0.0
        %1472 = vmatpush1.msra.mxu0 0.0
        %1473 = vmatprep.subr.mxu0 0.0
        %1474 = vmatpush1.msra.mxu0 0.0
        %1475 = vmatprep.subr.mxu0 0.0
        %1476 = vmatpush1.msra.mxu0 0.0
        %1477 = vmatprep.subr.mxu0 0.0
        %1478 = vmatpush1.msra.mxu0 0.0
        %1479 = vmatprep.subr.mxu0 0.0
        %1480 = vmatpush1.msra.mxu0 0.0
        %1481 = vmatprep.subr.mxu0 0.0
        %1482 = vmatpush1.msra.mxu0 0.0
        %1483 = vmatprep.subr.mxu0 0.0
        %1484 = vmatpush1.msra.mxu0 0.0
        %1485 = vmatprep.subr.mxu0 0.0
        %1486 = vmatpush1.msra.mxu0 0.0
        %1487 = vmatprep.subr.mxu0 0.0
        %1488 = vmatpush1.msra.mxu0 0.0
        %1489 = vmatprep.subr.mxu0 0.0
        %1490 = vmatpush1.msra.mxu0 0.0
        %1491 = vmatprep.subr.mxu0 0.0
        %1492 = vmatpush1.msra.mxu0 0.0
        %1493 = vmatprep.subr.mxu0 0.0
        %1494 = vmatpush1.msra.mxu0 0.0
        %1495 = vmatprep.subr.mxu0 0.0
        %1496 = vmatpush1.msra.mxu0 0.0
        %1497 = vmatprep.subr.mxu0 0.0
        %1498 = vmatpush1.msra.mxu0 0.0
        %1499 = vmatprep.subr.mxu0 0.0
        %1500 = vmatpush1.msra.mxu0 0.0
        %1501 = vmatprep.subr.mxu0 0.0
        %1502 = vmatpush1.msra.mxu0 0.0
        %1503 = vmatprep.subr.mxu0 0.0
        %1504 = vmatpush1.msra.mxu0 0.0
        %1505 = vmatprep.subr.mxu0 0.0
        %1506 = vmatpush1.msra.mxu0 0.0
        %1507 = vmatprep.subr.mxu0 0.0
        %1508 = vmatpush1.msra.mxu0 0.0
        %1509 = vmatprep.subr.mxu0 0.0
        %1510 = vmatpush1.msra.mxu0 0.0
        %1511 = vmatprep.subr.mxu0 0.0
        %1512 = vmatpush1.msra.mxu0 0.0
        %1513 = vmatprep.subr.mxu0 0.0
        %1514 = vmatpush1.msra.mxu0 0.0
        %1515 = vmatprep.subr.mxu0 0.0
        %1516 = vmatpush1.msra.mxu0 0.0
        %1517 = vmatprep.subr.mxu0 0.0
        %1518 = vmatpush1.msra.mxu0 0.0
        %1519 = vmatprep.mubr.f32.mxu0 0.0
        %v1520 = vand.u32 %v1202, 4294901760
        %v1521 = vsub.f32 %v1202, %v1520
        %1522 = vmatmul.mubr.f32.gmra.mrb[0].mxu0 %v1521
        %v1523 = vpop.f32.mrb[0].mxu0
        %v1524 = vadd.f32 %v1422, %v1523
        %v1525 = vpop.f32.mrb[0].mxu0
        %1526 = vmatprep.mubr.f32.mxu0 0.0
        %v1527 = vand.u32 %v1205, 4294901760
        %v1528 = vsub.f32 %v1205, %v1527
        %1529 = vmatmul.mubr.f32.gmra.mrb[0].mxu0 %v1528
        %v1530 = vpop.f32.mrb[0].mxu0
        %v1531 = vadd.f32 %v1428, %v1530
        %v1532 = vpop.f32.mrb[0].mxu0
        %1533 = vmatprep.mubr.f32.mxu0 0.0
        %v1534 = vand.u32 %v1208, 4294901760
        %v1535 = vsub.f32 %v1208, %v1534
        %1536 = vmatmul.mubr.f32.gmra.mrb[0].mxu0 %v1535
        %v1537 = vpop.f32.mrb[0].mxu0
        %v1538 = vadd.f32 %v1434, %v1537
        %v1539 = vpop.f32.mrb[0].mxu0
        %1540 = vmatprep.mubr.f32.mxu0 0.0
        %v1541 = vand.u32 %v1211, 4294901760
        %v1542 = vsub.f32 %v1211, %v1541
        %1543 = vmatmul.mubr.f32.gmra.mrb[0].mxu0 %v1542
        %v1544 = vpop.f32.mrb[0].mxu0
        %v1545 = vadd.f32 %v1440, %v1544
        %v1546 = vpop.f32.mrb[0].mxu0
        %1547 = vdwg.mxu0
        %1548 = vmatprep.subr.mxu0 0.0
        %v1549 = vand.u32 %v1155, 4294901760
        %1550 = vmatpush1.msra.mxu0 %v1549
        %1551 = vmatprep.subr.mxu0 0.0
        %v1552 = vand.u32 %v1156, 4294901760
        %1553 = vmatpush1.msra.mxu0 %v1552
        %1554 = vmatprep.subr.mxu0 0.0
        %v1555 = vand.u32 %v1157, 4294901760
        %1556 = vmatpush1.msra.mxu0 %v1555
        %1557 = vmatprep.subr.mxu0 0.0
        %v1558 = vand.u32 %v1158, 4294901760
        %1559 = vmatpush1.msra.mxu0 %v1558
        %1560 = vmatprep.subr.mxu0 0.0
        %v1561 = vand.u32 %v1159, 4294901760
        %1562 = vmatpush1.msra.mxu0 %v1561
        %1563 = vmatprep.subr.mxu0 0.0
        %v1564 = vand.u32 %v1160, 4294901760
        %1565 = vmatpush1.msra.mxu0 %v1564
        %1566 = vmatprep.subr.mxu0 0.0
        %1567 = vmatpush1.msra.mxu0 0.0
        %1568 = vmatprep.subr.mxu0 0.0
        %1569 = vmatpush1.msra.mxu0 0.0
        %1570 = vmatprep.subr.mxu0 0.0
        %1571 = vmatpush1.msra.mxu0 0.0
        %1572 = vmatprep.subr.mxu0 0.0
        %1573 = vmatpush1.msra.mxu0 0.0
        %1574 = vmatprep.subr.mxu0 0.0
        %1575 = vmatpush1.msra.mxu0 0.0
        %1576 = vmatprep.subr.mxu0 0.0
        %1577 = vmatpush1.msra.mxu0 0.0
        %1578 = vmatprep.subr.mxu0 0.0
        %1579 = vmatpush1.msra.mxu0 0.0
        %1580 = vmatprep.subr.mxu0 0.0
        %1581 = vmatpush1.msra.mxu0 0.0
        %1582 = vmatprep.subr.mxu0 0.0
        %1583 = vmatpush1.msra.mxu0 0.0
        %1584 = vmatprep.subr.mxu0 0.0
        %1585 = vmatpush1.msra.mxu0 0.0
        %1586 = vmatprep.subr.mxu0 0.0
        %1587 = vmatpush1.msra.mxu0 0.0
        %1588 = vmatprep.subr.mxu0 0.0
        %1589 = vmatpush1.msra.mxu0 0.0
        %1590 = vmatprep.subr.mxu0 0.0
        %1591 = vmatpush1.msra.mxu0 0.0
        %1592 = vmatprep.subr.mxu0 0.0
        %1593 = vmatpush1.msra.mxu0 0.0
        %1594 = vmatprep.subr.mxu0 0.0
        %1595 = vmatpush1.msra.mxu0 0.0
        %1596 = vmatprep.subr.mxu0 0.0
        %1597 = vmatpush1.msra.mxu0 0.0
        %1598 = vmatprep.subr.mxu0 0.0
        %1599 = vmatpush1.msra.mxu0 0.0
        %1600 = vmatprep.subr.mxu0 0.0
        %1601 = vmatpush1.msra.mxu0 0.0
        %1602 = vmatprep.subr.mxu0 0.0
        %1603 = vmatpush1.msra.mxu0 0.0
        %1604 = vmatprep.subr.mxu0 0.0
        %1605 = vmatpush1.msra.mxu0 0.0
        %1606 = vmatprep.subr.mxu0 0.0
        %1607 = vmatpush1.msra.mxu0 0.0
        %1608 = vmatprep.subr.mxu0 0.0
        %1609 = vmatpush1.msra.mxu0 0.0
        %1610 = vmatprep.subr.mxu0 0.0
        %1611 = vmatpush1.msra.mxu0 0.0
        %1612 = vmatprep.subr.mxu0 0.0
        %1613 = vmatpush1.msra.mxu0 0.0
        %1614 = vmatprep.subr.mxu0 0.0
        %1615 = vmatpush1.msra.mxu0 0.0
        %1616 = vmatprep.subr.mxu0 0.0
        %1617 = vmatpush1.msra.mxu0 0.0
        %1618 = vmatprep.mubr.f32.mxu0 0.0
        %v1619 = vand.u32 %v1202, 4294901760
        %v1620 = vsub.f32 %v1202, %v1619
        %v1621 = vand.u32 %v1620, 4294901760
        %1622 = vmatmul.mubr.f32.gmra.mrb[0].mxu0 %v1621
        %v1623 = vpop.f32.mrb[0].mxu0
        %v1624 = vadd.f32 %v1524, %v1623
        %v1625 = vpop.f32.mrb[0].mxu0
        %1626 = vmatprep.mubr.f32.mxu0 0.0
        %v1627 = vand.u32 %v1205, 4294901760
        %v1628 = vsub.f32 %v1205, %v1627
        %v1629 = vand.u32 %v1628, 4294901760
        %1630 = vmatmul.mubr.f32.gmra.mrb[0].mxu0 %v1629
        %v1631 = vpop.f32.mrb[0].mxu0
        %v1632 = vadd.f32 %v1531, %v1631
        %v1633 = vpop.f32.mrb[0].mxu0
        %1634 = vmatprep.mubr.f32.mxu0 0.0
        %v1635 = vand.u32 %v1208, 4294901760
        %v1636 = vsub.f32 %v1208, %v1635
        %v1637 = vand.u32 %v1636, 4294901760
        %1638 = vmatmul.mubr.f32.gmra.mrb[0].mxu0 %v1637
        %v1639 = vpop.f32.mrb[0].mxu0
        %v1640 = vadd.f32 %v1538, %v1639
        %v1641 = vpop.f32.mrb[0].mxu0
        %1642 = vmatprep.mubr.f32.mxu0 0.0
        %v1643 = vand.u32 %v1211, 4294901760
        %v1644 = vsub.f32 %v1211, %v1643
        %v1645 = vand.u32 %v1644, 4294901760
        %1646 = vmatmul.mubr.f32.gmra.mrb[0].mxu0 %v1645
        %v1647 = vpop.f32.mrb[0].mxu0
        %v1648 = vadd.f32 %v1545, %v1647
        %v1649 = vpop.f32.mrb[0].mxu0
        %1650 = vdwg.mxu0
        %1651 = vmatprep.subr.mxu0 0.0
        %v1652 = vand.u32 %v1155, 4294901760
        %v1653 = vsub.f32 %v1155, %v1652
        %v1654 = vand.u32 %v1653, 4294901760
        %1655 = vmatpush1.msra.mxu0 %v1654
        %1656 = vmatprep.subr.mxu0 0.0
        %v1657 = vand.u32 %v1156, 4294901760
        %v1658 = vsub.f32 %v1156, %v1657
        %v1659 = vand.u32 %v1658, 4294901760
        %1660 = vmatpush1.msra.mxu0 %v1659
        %1661 = vmatprep.subr.mxu0 0.0
        %v1662 = vand.u32 %v1157, 4294901760
        %v1663 = vsub.f32 %v1157, %v1662
        %v1664 = vand.u32 %v1663, 4294901760
        %1665 = vmatpush1.msra.mxu0 %v1664
        %1666 = vmatprep.subr.mxu0 0.0
        %v1667 = vand.u32 %v1158, 4294901760
        %v1668 = vsub.f32 %v1158, %v1667
        %v1669 = vand.u32 %v1668, 4294901760
        %1670 = vmatpush1.msra.mxu0 %v1669
        %1671 = vmatprep.subr.mxu0 0.0
        %v1672 = vand.u32 %v1159, 4294901760
        %v1673 = vsub.f32 %v1159, %v1672
        %v1674 = vand.u32 %v1673, 4294901760
        %1675 = vmatpush1.msra.mxu0 %v1674
        %1676 = vmatprep.subr.mxu0 0.0
        %v1677 = vand.u32 %v1160, 4294901760
        %v1678 = vsub.f32 %v1160, %v1677
        %v1679 = vand.u32 %v1678, 4294901760
        %1680 = vmatpush1.msra.mxu0 %v1679
        %1681 = vmatprep.subr.mxu0 0.0
        %1682 = vmatpush1.msra.mxu0 0.0
        %1683 = vmatprep.subr.mxu0 0.0
        %1684 = vmatpush1.msra.mxu0 0.0
        %1685 = vmatprep.subr.mxu0 0.0
        %1686 = vmatpush1.msra.mxu0 0.0
        %1687 = vmatprep.subr.mxu0 0.0
        %1688 = vmatpush1.msra.mxu0 0.0
        %1689 = vmatprep.subr.mxu0 0.0
        %1690 = vmatpush1.msra.mxu0 0.0
        %1691 = vmatprep.subr.mxu0 0.0
        %1692 = vmatpush1.msra.mxu0 0.0
        %1693 = vmatprep.subr.mxu0 0.0
        %1694 = vmatpush1.msra.mxu0 0.0
        %1695 = vmatprep.subr.mxu0 0.0
        %1696 = vmatpush1.msra.mxu0 0.0
        %1697 = vmatprep.subr.mxu0 0.0
        %1698 = vmatpush1.msra.mxu0 0.0
        %1699 = vmatprep.subr.mxu0 0.0
        %1700 = vmatpush1.msra.mxu0 0.0
        %1701 = vmatprep.subr.mxu0 0.0
        %1702 = vmatpush1.msra.mxu0 0.0
        %1703 = vmatprep.subr.mxu0 0.0
        %1704 = vmatpush1.msra.mxu0 0.0
        %1705 = vmatprep.subr.mxu0 0.0
        %1706 = vmatpush1.msra.mxu0 0.0
        %1707 = vmatprep.subr.mxu0 0.0
        %1708 = vmatpush1.msra.mxu0 0.0
        %1709 = vmatprep.subr.mxu0 0.0
        %1710 = vmatpush1.msra.mxu0 0.0
        %1711 = vmatprep.subr.mxu0 0.0
        %1712 = vmatpush1.msra.mxu0 0.0
        %1713 = vmatprep.subr.mxu0 0.0
        %1714 = vmatpush1.msra.mxu0 0.0
        %1715 = vmatprep.subr.mxu0 0.0
        %1716 = vmatpush1.msra.mxu0 0.0
        %1717 = vmatprep.subr.mxu0 0.0
        %1718 = vmatpush1.msra.mxu0 0.0
        %1719 = vmatprep.subr.mxu0 0.0
        %1720 = vmatpush1.msra.mxu0 0.0
        %1721 = vmatprep.subr.mxu0 0.0
        %1722 = vmatpush1.msra.mxu0 0.0
        %1723 = vmatprep.subr.mxu0 0.0
        %1724 = vmatpush1.msra.mxu0 0.0
        %1725 = vmatprep.subr.mxu0 0.0
        %1726 = vmatpush1.msra.mxu0 0.0
        %1727 = vmatprep.subr.mxu0 0.0
        %1728 = vmatpush1.msra.mxu0 0.0
        %1729 = vmatprep.subr.mxu0 0.0
        %1730 = vmatpush1.msra.mxu0 0.0
        %1731 = vmatprep.subr.mxu0 0.0
        %1732 = vmatpush1.msra.mxu0 0.0
        %1733 = vmatprep.mubr.f32.mxu0 0.0
        %v1734 = vand.u32 %v1202, 4294901760
        %1735 = vmatmul.mubr.f32.gmra.mrb[0].mxu0 %v1734
        %v1736 = vpop.f32.mrb[0].mxu0
        %v1737 = vadd.f32 %v1624, %v1736
        %v1738 = vpop.f32.mrb[0].mxu0
        %1739 = vmatprep.mubr.f32.mxu0 0.0
        %v1740 = vand.u32 %v1205, 4294901760
        %1741 = vmatmul.mubr.f32.gmra.mrb[0].mxu0 %v1740
        %v1742 = vpop.f32.mrb[0].mxu0
        %v1743 = vadd.f32 %v1632, %v1742
        %v1744 = vpop.f32.mrb[0].mxu0
        %1745 = vmatprep.mubr.f32.mxu0 0.0
        %v1746 = vand.u32 %v1208, 4294901760
        %1747 = vmatmul.mubr.f32.gmra.mrb[0].mxu0 %v1746
        %v1748 = vpop.f32.mrb[0].mxu0
        %v1749 = vadd.f32 %v1640, %v1748
        %v1750 = vpop.f32.mrb[0].mxu0
        %1751 = vmatprep.mubr.f32.mxu0 0.0
        %v1752 = vand.u32 %v1211, 4294901760
        %1753 = vmatmul.mubr.f32.gmra.mrb[0].mxu0 %v1752
        %v1754 = vpop.f32.mrb[0].mxu0
        %v1755 = vadd.f32 %v1648, %v1754
        %v1756 = vpop.f32.mrb[0].mxu0
        %1757 = vdwg.mxu0
        %1758 = vmatprep.subr.mxu0 0.0
        %v1759 = vand.u32 %v1155, 4294901760
        %1760 = vmatpush1.msra.mxu0 %v1759
        %1761 = vmatprep.subr.mxu0 0.0
        %v1762 = vand.u32 %v1156, 4294901760
        %1763 = vmatpush1.msra.mxu0 %v1762
        %1764 = vmatprep.subr.mxu0 0.0
        %v1765 = vand.u32 %v1157, 4294901760
        %1766 = vmatpush1.msra.mxu0 %v1765
        %1767 = vmatprep.subr.mxu0 0.0
        %v1768 = vand.u32 %v1158, 4294901760
        %1769 = vmatpush1.msra.mxu0 %v1768
        %1770 = vmatprep.subr.mxu0 0.0
        %v1771 = vand.u32 %v1159, 4294901760
        %1772 = vmatpush1.msra.mxu0 %v1771
        %1773 = vmatprep.subr.mxu0 0.0
        %v1774 = vand.u32 %v1160, 4294901760
        %1775 = vmatpush1.msra.mxu0 %v1774
        %1776 = vmatprep.subr.mxu0 0.0
        %1777 = vmatpush1.msra.mxu0 0.0
        %1778 = vmatprep.subr.mxu0 0.0
        %1779 = vmatpush1.msra.mxu0 0.0
        %1780 = vmatprep.subr.mxu0 0.0
        %1781 = vmatpush1.msra.mxu0 0.0
        %1782 = vmatprep.subr.mxu0 0.0
        %1783 = vmatpush1.msra.mxu0 0.0
        %1784 = vmatprep.subr.mxu0 0.0
        %1785 = vmatpush1.msra.mxu0 0.0
        %1786 = vmatprep.subr.mxu0 0.0
        %1787 = vmatpush1.msra.mxu0 0.0
        %1788 = vmatprep.subr.mxu0 0.0
        %1789 = vmatpush1.msra.mxu0 0.0
        %1790 = vmatprep.subr.mxu0 0.0
        %1791 = vmatpush1.msra.mxu0 0.0
        %1792 = vmatprep.subr.mxu0 0.0
        %1793 = vmatpush1.msra.mxu0 0.0
        %1794 = vmatprep.subr.mxu0 0.0
        %1795 = vmatpush1.msra.mxu0 0.0
        %1796 = vmatprep.subr.mxu0 0.0
        %1797 = vmatpush1.msra.mxu0 0.0
        %1798 = vmatprep.subr.mxu0 0.0
        %1799 = vmatpush1.msra.mxu0 0.0
        %1800 = vmatprep.subr.mxu0 0.0
        %1801 = vmatpush1.msra.mxu0 0.0
        %1802 = vmatprep.subr.mxu0 0.0
        %1803 = vmatpush1.msra.mxu0 0.0
        %1804 = vmatprep.subr.mxu0 0.0
        %1805 = vmatpush1.msra.mxu0 0.0
        %1806 = vmatprep.subr.mxu0 0.0
        %1807 = vmatpush1.msra.mxu0 0.0
        %1808 = vmatprep.subr.mxu0 0.0
        %1809 = vmatpush1.msra.mxu0 0.0
        %1810 = vmatprep.subr.mxu0 0.0
        %1811 = vmatpush1.msra.mxu0 0.0
        %1812 = vmatprep.subr.mxu0 0.0
        %1813 = vmatpush1.msra.mxu0 0.0
        %1814 = vmatprep.subr.mxu0 0.0
        %1815 = vmatpush1.msra.mxu0 0.0
        %1816 = vmatprep.subr.mxu0 0.0
        %1817 = vmatpush1.msra.mxu0 0.0
        %1818 = vmatprep.subr.mxu0 0.0
        %1819 = vmatpush1.msra.mxu0 0.0
        %1820 = vmatprep.subr.mxu0 0.0
        %1821 = vmatpush1.msra.mxu0 0.0
        %1822 = vmatprep.subr.mxu0 0.0
        %1823 = vmatpush1.msra.mxu0 0.0
        %1824 = vmatprep.subr.mxu0 0.0
        %1825 = vmatpush1.msra.mxu0 0.0
        %1826 = vmatprep.subr.mxu0 0.0
        %1827 = vmatpush1.msra.mxu0 0.0
        %1828 = vmatprep.mubr.f32.mxu0 0.0
        %v1829 = vand.u32 %v1202, 4294901760
        %1830 = vmatmul.mubr.f32.gmra.mrb[0].mxu0 %v1829
        %v1831 = vpop.f32.mrb[0].mxu0
        %v1832 = vadd.f32 %v1737, %v1831
        %v1833 = vpop.f32.mrb[0].mxu0
        %1834 = vmatprep.mubr.f32.mxu0 0.0
        %v1835 = vand.u32 %v1205, 4294901760
        %1836 = vmatmul.mubr.f32.gmra.mrb[0].mxu0 %v1835
        %v1837 = vpop.f32.mrb[0].mxu0
        %v1838 = vadd.f32 %v1743, %v1837
        %v1839 = vpop.f32.mrb[0].mxu0
        %1840 = vmatprep.mubr.f32.mxu0 0.0
        %v1841 = vand.u32 %v1208, 4294901760
        %1842 = vmatmul.mubr.f32.gmra.mrb[0].mxu0 %v1841
        %v1843 = vpop.f32.mrb[0].mxu0
        %v1844 = vadd.f32 %v1749, %v1843
        %v1845 = vpop.f32.mrb[0].mxu0
        %1846 = vmatprep.mubr.f32.mxu0 0.0
        %v1847 = vand.u32 %v1211, 4294901760
        %1848 = vmatmul.mubr.f32.gmra.mrb[0].mxu0 %v1847
        %v1849 = vpop.f32.mrb[0].mxu0
        %v1850 = vadd.f32 %v1755, %v1849
        %v1851 = vpop.f32.mrb[0].mxu0
        %1852 = vdwg.mxu0
        %1853 = vst [vmem:[%s287] sm:$0xff] %v1832
        %1854 = vst [vmem:[%s287 + $0x8] sm:$0xff] %v1838
        %1855 = vst [vmem:[%s287 + $0x10] sm:$0xff] %v1844
        %1856 = vst [vmem:[%s287 + $0x18] sm:$0xff] %v1850
        %s1857 = sand.u32 %s135, 1
        %s1858 = scalar_lea.sflag [#allocation5], %s1857
        %s1859 = sand.u32 %s135, 1
        %s1860 = smul.addr %s1859, 32
        %s1861 = scalar_lea.vmem [#allocation9], %s1860
        // Predicated region
        $region49: #{tpu_custom_call.1} parent=35 // pred_check
          %p1862 = pneg %p145
        $region50: #{tpu_custom_call.1} parent=35 // pred_check_branch
          %1864 = sbr.rel (%p1862) target = $region52
        $region51: #{tpu_custom_call.1} parent=35 // pred_region
          %s1865 = smul.u32 4, %s27
          %s1867 = ssub.s32 512, 512
          %1868 = vsyncadd %s1858, %s1867
          %s1869 = smul.addr %s26, 8
          %s1870 = sadd.s32 %s1865, %s1869
          %s1871 = smul.addr %s1870, 128
          %s1872 = scalar_lea.hbm %s4, %s1871
          %s1873 = sshll.u32 %s1861, 4
          %s1874 = int_to_ptr.vmem [resolvable:$true] %s1873
          %1879 = dma.vmem_to_hbm [thread:$0]  %s1874, 512, %s1872, %s1858, 128, 128, 8
        $region52: #{tpu_custom_call.1} parent=35 // pred_fallthru
          _
      $region36: #{tpu_custom_call.1} parent=5 // pred_fallthru
        _
      %p1880 = scmp.le.s32.totalorder 2, %s17
      // Predicated region
      $region53: #{tpu_custom_call.1} parent=5 // pred_check
        %p1881 = pneg %p1880
      $region54: #{tpu_custom_call.1} parent=5 // pred_check_branch
        %1883 = sbr.rel (%p1881) target = $region56
      $region55: #{tpu_custom_call.1} parent=5 // pred_region
        %s1884 = ssub.s32 %s17, 2
        // Predicated region
        $region57: #{tpu_custom_call.1} parent=55 // pred_check
          %p1885 = pneg %p151
        $region58: #{tpu_custom_call.1} parent=55 // pred_check_branch
          %1887 = sbr.rel (%p1885) target = $region60
        $region59: #{tpu_custom_call.1} parent=55 // pred_region
          %s1888 = sand.u32 %s136, 1
          %s1889 = scalar_lea.sflag [#allocation5], %s1888
          %s1890 = sand.u32 %s136, 1
          %s1891 = smul.addr %s1890, 32
          %s1892 = scalar_lea.vmem [#allocation9], %s1891
          %1893 = dma.done %s1889, 512
        $region60: #{tpu_custom_call.1} parent=55 // pred_fallthru
          _
      $region56: #{tpu_custom_call.1} parent=5 // pred_fallthru
        _
    $region6: #{tpu_custom_call.1} parent=1 // loop_footer
      %s21 = sadd.s32 1, %s17
    $region7: #{tpu_custom_call.1} parent=1 // loop_footer_branch
      %16 = sbr.rel target = $region3
    $region8: #{tpu_custom_call.1} parent=1 // loop_exit
      _
    %1894 = vsyncpa [#allocation4], 1
    %s1895 = scalar_lea.sflag [#allocation4], 1
    %1896 = vsyncpa %s1895, 1
    %1897 = vsyncpa [#allocation7], 1
    %1898 = vsyncpa [#allocation5], 1
    %s1899 = scalar_lea.sflag [#allocation5], 1
    %1900 = vsyncpa %s1899, 1

// kernel: tpu_custom_call.1
$region0: #{tpu_custom_call.1}
  #allocation0 [shape = 'u32[]', space=smem, size = 0x4, offset = 0x4, fixed_abs, tag = 'smem constant byte address 0x4 - core index']
  #allocation1 [shape = 'u32[144,128]{1,0:T(1,128)}', space=vmem, size = 0x12000, scoped, tag = 'internal scratch']
  #allocation2 [shape = 'f32[48,32]{1,0:T(8,128)}', space=vmem, size = 0x6000, scoped, tag = 'scratch operand']
  #allocation10 [shape = 's32[]', space=sflag, size = 0x4, offset = 0, fixed_abs, tag = 'sflag constant byte address 0x0 - dummy sync flag']
  %s0 = inlined_call_operand.hbm [shape: f32[2,3,32,32], index: 0, kind: input, shape index: {}]
  %s1 = inlined_call_operand.hbm [shape: f32[32,32], index: 1, kind: input, shape index: {}]
  %s2 = inlined_call_operand.hbm [shape: f32[48,128], index: 2, kind: input, shape index: {}]
  %s3 = inlined_call_operand.vmem [shape: f32[1,128], index: 3, kind: input, shape index: {}]
  %s4 = inlined_call_operand.hbm [shape: f32[2,64,128], index: 4, kind: output, shape index: {}]
  %s5 = sld [smem:[#allocation0]]
  $region61: #{tpu_custom_call.1} parent=0
    _
  %s7 = ssub.s32 1, %s5
  %s8 = scalar_select 0, %s7, %s5
  $region1: #{tpu_custom_call.1} parent=0
    #allocation3 [shape = 'u8[49152]{0}', space=vmem, size = 0xc000, scoped, tag = 'input window, operand 0']
    #allocation4 [shape = 's32[2]{0}', space=sflag, size = 0x8, scoped, tag = 'scoped memory for tpu_custom_call.1']
    #allocation5 [shape = 's32[2]{0}', space=sflag, size = 0x8, scoped, tag = 'scoped memory for tpu_custom_call.1']
    #allocation6 [shape = 'u8[16384]{0}', space=vmem, size = 0x4000, scoped, tag = 'input window, operand 1, single buffered']
    #allocation7 [shape = 's32[1]{0}', space=sflag, size = 0x4, scoped, tag = 'scoped memory for tpu_custom_call.1']
    #allocation8 [shape = 'u8[24576]{0}', space=vmem, size = 0x6000, scoped, tag = 'input window, operand 2, single buffered']
    #allocation9 [shape = 'u8[32768]{0}', space=vmem, size = 0x8000, scoped, tag = 'output window, operand 0']
    %9 = vsyncpa [#allocation4], 0
    %s10 = scalar_lea.sflag [#allocation4], 1
    %11 = vsyncpa %s10, 0
    %12 = vsyncpa [#allocation7], 0
    %13 = vsyncpa [#allocation5], 0
    %s14 = scalar_lea.sflag [#allocation5], 1
    %15 = vsyncpa %s14, 0
    loop: start=0, step=1, limit=6
    $region2: #{tpu_custom_call.1} parent=1 // loop_pre_header
      _
    $region3: #{tpu_custom_call.1} parent=1 // loop_header
      %s17 = sphi 0, %s21
      %p18 = scmp.ge.s32.totalorder %s17, 6
      %s24 = sphi 0, %s36
      %s25 = sphi 0, %s32
      %s26 = sphi 0, %s24
      %s27 = sphi 0, %s25
      %s28 = sphi 0, %s26
      %s29 = sphi 0, %s27
      %s41 = sphi 0, %s43
      %s44 = sphi 0, %s41
      %s45 = sphi 0, %s44
      %s61 = sphi 0, %s45
      %s65 = sphi 0, %s65
      %s67 = sphi 0, %s65
      %s68 = sphi 0, %s67
      %s82 = sphi 0, %s68
      %s86 = sphi 0, %s86
      %s88 = sphi 0, %s86
      %s89 = sphi 0, %s88
      %s103 = sphi 0, %s89
      %s107 = sphi 0, %s107
      %s109 = sphi 0, %s107
      %s110 = sphi 0, %s109
      %s124 = sphi 0, %s110
      %s132 = sphi 0, %s134
      %s135 = sphi 0, %s132
      %s136 = sphi 0, %s135
      %s152 = sphi 0, %s136
    $region4: #{tpu_custom_call.1} parent=1 // loop_header_branch
      %20 = sbr.rel (%p18) target = $region8
    $region5: #{tpu_custom_call.1} parent=1 // loop_body
      %s22 = ssub.s32 %s17, 1
      %s23 = ssub.s32 %s17, 2
      %s30 = sadd.s32 1, %s25
      %p31 = scmp.ge.s32.totalorder %s30, 2
      %s32 = scalar_select %p31, 0, %s30
      %s33 = sadd.s32 1, %s24
      %s34 = scalar_select %p31, %s33, %s24
      %p35 = scmp.ge.s32.totalorder %s34, 2
      %s36 = scalar_select %p35, 0, %s34
      %s37 = ssub.s32 %s24, %s36
      %s38 = ssub.s32 %s25, %s32
      %s39 = sor.u32 %s37, %s38
      %p40 = scmp.eq.s32.totalorder %s39, 0
      %s42 = sadd.s32 %s41, 1
      %s43 = scalar_select %p40, %s41, %s42
      %p46 = pneg %p40
      %p47 = scmp.eq.s32.totalorder %s17, 3
      %p48 = por %p46, %p47
      %p49 = scmp.ne.s32.totalorder %s41, %s44
      %p50 = scmp.eq.s32.totalorder %s17, 0
      %p51 = por %p49, %p50
      %p52 = scmp.ne.s32.totalorder %s41, %s44
      %p53 = scmp.eq.s32.totalorder %s22, 3
      %p54 = por %p52, %p53
      %p55 = scmp.ne.s32.totalorder %s44, %s45
      %p56 = scmp.eq.s32.totalorder %s22, 0
      %p57 = por %p55, %p56
      %p58 = scmp.ne.s32.totalorder %s44, %s45
      %p59 = scmp.eq.s32.totalorder %s23, 3
      %p60 = por %p58, %p59
      %p62 = scmp.ne.s32.totalorder %s45, %s61
      %p63 = scmp.eq.s32.totalorder %s23, 0
      %p64 = por %p62, %p63
      %s66 = sadd.s32 %s65, 1
      %p69 = scmp.eq.s32.totalorder %s17, 3
      %p70 = scmp.ne.s32.totalorder %s65, %s67
      %p71 = scmp.eq.s32.totalorder %s17, 0
      %p72 = por %p70, %p71
      %p73 = scmp.ne.s32.totalorder %s65, %s67
      %p74 = scmp.eq.s32.totalorder %s22, 3
      %p75 = por %p73, %p74
      %p76 = scmp.ne.s32.totalorder %s67, %s68
      %p77 = scmp.eq.s32.totalorder %s22, 0
      %p78 = por %p76, %p77
      %p79 = scmp.ne.s32.totalorder %s67, %s68
      %p80 = scmp.eq.s32.totalorder %s23, 3
      %p81 = por %p79, %p80
      %p83 = scmp.ne.s32.totalorder %s68, %s82
      %p84 = scmp.eq.s32.totalorder %s23, 0
      %p85 = por %p83, %p84
      %s87 = sadd.s32 %s86, 1
      %p90 = scmp.eq.s32.totalorder %s17, 3
      %p91 = scmp.ne.s32.totalorder %s86, %s88
      %p92 = scmp.eq.s32.totalorder %s17, 0
      %p93 = por %p91, %p92
      %p94 = scmp.ne.s32.totalorder %s86, %s88
      %p95 = scmp.eq.s32.totalorder %s22, 3
      %p96 = por %p94, %p95
      %p97 = scmp.ne.s32.totalorder %s88, %s89
      %p98 = scmp.eq.s32.totalorder %s22, 0
      %p99 = por %p97, %p98
      %p100 = scmp.ne.s32.totalorder %s88, %s89
      %p101 = scmp.eq.s32.totalorder %s23, 3
      %p102 = por %p100, %p101
      %p104 = scmp.ne.s32.totalorder %s89, %s103
      %p105 = scmp.eq.s32.totalorder %s23, 0
      %p106 = por %p104, %p105
      %s108 = sadd.s32 %s107, 1
      %p111 = scmp.eq.s32.totalorder %s17, 3
      %p112 = scmp.ne.s32.totalorder %s107, %s109
      %p113 = scmp.eq.s32.totalorder %s17, 0
      %p114 = por %p112, %p113
      %p115 = scmp.ne.s32.totalorder %s107, %s109
      %p116 = scmp.eq.s32.totalorder %s22, 3
      %p117 = por %p115, %p116
      %p118 = scmp.ne.s32.totalorder %s109, %s110
      %p119 = scmp.eq.s32.totalorder %s22, 0
      %p120 = por %p118, %p119
      %p121 = scmp.ne.s32.totalorder %s109, %s110
      %p122 = scmp.eq.s32.totalorder %s23, 3
      %p123 = por %p121, %p122
      %p125 = scmp.ne.s32.totalorder %s110, %s124
      %p126 = scmp.eq.s32.totalorder %s23, 0
      %p127 = por %p125, %p126
      %s128 = ssub.s32 %s24, %s36
      %s129 = ssub.s32 %s25, %s32
      %s130 = sor.u32 %s128, %s129
      %p131 = scmp.eq.s32.totalorder %s130, 0
      %s133 = sadd.s32 %s132, 1
      %s134 = scalar_select %p131, %s132, %s133
      %p137 = pneg %p131
      %p138 = scmp.eq.s32.totalorder %s17, 3
      %p139 = por %p137, %p138
      %p140 = scmp.ne.s32.totalorder %s132, %s135
      %p141 = scmp.eq.s32.totalorder %s17, 0
      %p142 = por %p140, %p141
      %p143 = scmp.ne.s32.totalorder %s132, %s135
      %p144 = scmp.eq.s32.totalorder %s22, 3
      %p145 = por %p143, %p144
      %p146 = scmp.ne.s32.totalorder %s135, %s136
      %p147 = scmp.eq.s32.totalorder %s22, 0
      %p148 = por %p146, %p147
      %p149 = scmp.ne.s32.totalorder %s135, %s136
      %p150 = scmp.eq.s32.totalorder %s23, 3
      %p151 = por %p149, %p150
      %p153 = scmp.ne.s32.totalorder %s136, %s152
      %p154 = scmp.eq.s32.totalorder %s23, 0
      %p155 = por %p153, %p154
      %p156 = scmp.le.s32.totalorder 1, %s17
      %p157 = scmp.lt.s32.totalorder %s17, 5
      %p158 = pnand %p156, %p157
      %p159 = pneg %p158
      // Predicated region
      $region9: #{tpu_custom_call.1} parent=5 // pred_check
        _
      $region10: #{tpu_custom_call.1} parent=5 // pred_check_branch
        %161 = sbr.rel (%p158) target = $region12
      $region11: #{tpu_custom_call.1} parent=5 // pred_region
        %s162 = ssub.s32 %s17, 1
        // Predicated region
        $region13: #{tpu_custom_call.1} parent=11 // pred_check
          %p163 = pneg %p78
        $region14: #{tpu_custom_call.1} parent=11 // pred_check_branch
          %165 = sbr.rel (%p163) target = $region16
        $region15: #{tpu_custom_call.1} parent=11 // pred_region
          %s167 = ssub.s32 512, 512
          %168 = vsyncadd [#allocation7], %s167
          %s169 = sshll.u32 [#allocation6], 4
          %s170 = int_to_ptr.vmem [resolvable:$true] %s169
          %175 = dma.hbm_to_vmem [thread:$0]  %s1, 512, %s170, [#allocation7], 128, 128, 8
        $region16: #{tpu_custom_call.1} parent=11 // pred_fallthru
          _
        // Predicated region
        $region17: #{tpu_custom_call.1} parent=11 // pred_check
          %p176 = pneg %p99
        $region18: #{tpu_custom_call.1} parent=11 // pred_check_branch
          %178 = sbr.rel (%p176) target = $region20
        $region19: #{tpu_custom_call.1} parent=11 // pred_region
          %s180 = ssub.s32 768, 768
          %181 = vsyncadd [#allocation7], %s180
          %s182 = sshll.u32 [#allocation8], 4
          %s183 = int_to_ptr.vmem [resolvable:$true] %s182
          %188 = dma.hbm_to_vmem [thread:$0]  %s2, 768, %s183, [#allocation7], 128, 128, 8
        $region20: #{tpu_custom_call.1} parent=11 // pred_fallthru
          _
        // Predicated region
        $region21: #{tpu_custom_call.1} parent=11 // pred_check
          %p189 = pneg %p120
        $region22: #{tpu_custom_call.1} parent=11 // pred_check_branch
          %191 = sbr.rel (%p189) target = $region24
        $region23: #{tpu_custom_call.1} parent=11 // pred_region
          _
        $region24: #{tpu_custom_call.1} parent=11 // pred_fallthru
          _
      $region12: #{tpu_custom_call.1} parent=5 // pred_fallthru
        _
      %p192 = scmp.lt.s32.totalorder %s17, 4
      // Predicated region
      $region25: #{tpu_custom_call.1} parent=5 // pred_check
        %p193 = pneg %p192
      $region26: #{tpu_custom_call.1} parent=5 // pred_check_branch
        %195 = sbr.rel (%p193) target = $region28
      $region27: #{tpu_custom_call.1} parent=5 // pred_region
        // Predicated region
        $region29: #{tpu_custom_call.1} parent=27 // pred_check
          %p196 = pneg %p51
        $region30: #{tpu_custom_call.1} parent=27 // pred_check_branch
          %198 = sbr.rel (%p196) target = $region32
        $region31: #{tpu_custom_call.1} parent=27 // pred_region
          #allocation11 [shape = 'u32[6]{0}', space=smem, size = 0x18, scoped, tag = 'DMA stride descriptor']
          %s199 = sand.u32 %s41, 1
          %s200 = scalar_lea.sflag [#allocation4], %s199
          %s201 = sand.u32 %s41, 1
          %s202 = smul.addr %s201, 48
          %s203 = scalar_lea.vmem [#allocation3], %s202
          %s204 = smul.u32 2, %s25
          %s206 = ssub.s32 768, 768
          %207 = vsyncadd %s200, %s206
          %s208 = smul.addr %s24, 12
          %s209 = sadd.s32 %s204, %s208
          %s210 = smul.addr %s209, 128
          %s211 = scalar_lea.hbm %s0, %s210
          %s213 = sshll.u32 1, 14
          %s214 = sxor.u32 4294967295, %s213
          %s216 = sld [smem:[#allocation0]]
          %s217 = sadd.s32 2, %s216
          %s219 = sshll.u32 7, 26
          %s220 = sxor.u32 4294967295, %s219
          %s221 = sand.u32 0, %s220
          %s222 = sshll.u32 %s217, 26
          %s223 = sor.u32 %s221, %s222
          %s224 = sshll.u32 %s203, 4
          %s225 = int_to_ptr.vmem [resolvable:$true] %s224
          %231 = sst [smem:[#allocation11]] 512
          %s232 = scalar_lea.smem [#allocation11], 1
          %233 = sst [smem:[%s232]] 256
          %s234 = scalar_lea.smem [#allocation11], 2
          %235 = sst [smem:[%s234]] 2
          %s236 = scalar_lea.smem [#allocation11], 3
          %237 = sst [smem:[%s236]] 128
          %s238 = scalar_lea.smem [#allocation11], 4
          %239 = sst [smem:[%s238]] 128
          %s240 = scalar_lea.smem [#allocation11], 5
          %241 = sst [smem:[%s240]] 8
          %243 = dma.general %s211, 768, %s225, %s200, [#allocation10], [#allocation11], %s223, 0
        $region32: #{tpu_custom_call.1} parent=27 // pred_fallthru
          _
      $region28: #{tpu_custom_call.1} parent=5 // pred_fallthru
        _
      %p244 = scmp.le.s32.totalorder 1, %s17
      %p245 = scmp.lt.s32.totalorder %s17, 5
      %p246 = pnand %p244, %p245
      %p247 = pneg %p246
      // Predicated region
      $region33: #{tpu_custom_call.1} parent=5 // pred_check
        _
      $region34: #{tpu_custom_call.1} parent=5 // pred_check_branch
        %249 = sbr.rel (%p246) target = $region36
      $region35: #{tpu_custom_call.1} parent=5 // pred_region
        %s250 = ssub.s32 %s17, 1
        %s251 = sand.u32 %s44, 1
        %s252 = scalar_lea.sflag [#allocation4], %s251
        %s253 = sand.u32 %s44, 1
        %s254 = smul.addr %s253, 48
        %s255 = scalar_lea.vmem [#allocation3], %s254
        // Predicated region
        $region37: #{tpu_custom_call.1} parent=35 // pred_check
          %p256 = pneg %p57
        $region38: #{tpu_custom_call.1} parent=35 // pred_check_branch
          %258 = sbr.rel (%p256) target = $region40
        $region39: #{tpu_custom_call.1} parent=35 // pred_region
          %259 = dma.done %s252, 768
        $region40: #{tpu_custom_call.1} parent=35 // pred_fallthru
          _
        // Predicated region
        $region41: #{tpu_custom_call.1} parent=35 // pred_check
          %p260 = pneg %p78
        $region42: #{tpu_custom_call.1} parent=35 // pred_check_branch
          %262 = sbr.rel (%p260) target = $region44
        $region43: #{tpu_custom_call.1} parent=35 // pred_region
          %263 = dma.done [#allocation7], 512
        $region44: #{tpu_custom_call.1} parent=35 // pred_fallthru
          _
        // Predicated region
        $region45: #{tpu_custom_call.1} parent=35 // pred_check
          %p264 = pneg %p99
        $region46: #{tpu_custom_call.1} parent=35 // pred_check_branch
          %266 = sbr.rel (%p264) target = $region48
        $region47: #{tpu_custom_call.1} parent=35 // pred_region
          %267 = dma.done [#allocation7], 768
        $region48: #{tpu_custom_call.1} parent=35 // pred_fallthru
          _
        %s268 = sand.u32 %s44, 1
        %s269 = scalar_lea.sflag [#allocation4], %s268
        %s270 = sand.u32 %s44, 1
        %s271 = smul.addr %s270, 48
        %s272 = scalar_lea.vmem [#allocation3], %s271
        %p273 = pneg %p57
        %p274 = pneg %p54
        %p275 = pneg %p78
        %p276 = pneg %p75
        %p277 = pneg %p99
        %p278 = pneg %p96
        %p279 = pneg %p120
        %p280 = pneg %p117
        %p281 = pneg %p148
        %p282 = pneg %p145
        %s283 = sand.u32 %s135, 1
        %s284 = scalar_lea.sflag [#allocation5], %s283
        %s285 = sand.u32 %s135, 1
        %s286 = smul.addr %s285, 32
        %s287 = scalar_lea.vmem [#allocation9], %s286
        %s288 = smul.u32 2, %s27
        %s289 = smul.u32 4, %s27
        %v290 = vld [vmem:[%s255] sm:$0xff]
        %v291 = vld [vmem:[%s255 + $0x8] sm:$0xff]
        %v292 = vld [vmem:[%s255 + $0x10] sm:$0xff]
        %v293 = vld [vmem:[%s255 + $0x18] sm:$0xff]
        %v294 = vld [vmem:[%s255 + $0x20] sm:$0xff]
        %v295 = vld [vmem:[%s255 + $0x28] sm:$0xff]
        %v296 = vld [vmem:[#allocation6] sm:$0xff]
        %v297 = vld [vmem:[#allocation6 + $0x8] sm:$0xff]
        %v298 = vld [vmem:[#allocation6 + $0x10] sm:$0xff]
        %v299 = vld [vmem:[#allocation6 + $0x18] sm:$0xff]
        %vm300 = vcmask 261120
        %v302 = vsel %vm300, %v290, 0
        %v305 = vsel %vm300, %v291, 0
        %v308 = vsel %vm300, %v292, 0
        %v311 = vsel %vm300, %v293, 0
        %v314 = vsel %vm300, %v294, 0
        %v317 = vsel %vm300, %v295, 0
        %319 = vmatprep.subr.mxu0 0.0
        %v320 = vand.u32 %v296, 4294901760
        %321 = vmatpush1.msra.mxu0 %v320
        %322 = vmatprep.subr.mxu0 0.0
        %v323 = vand.u32 %v297, 4294901760
        %324 = vmatpush1.msra.mxu0 %v323
        %325 = vmatprep.subr.mxu0 0.0
        %v326 = vand.u32 %v298, 4294901760
        %327 = vmatpush1.msra.mxu0 %v326
        %328 = vmatprep.subr.mxu0 0.0
        %v329 = vand.u32 %v299, 4294901760
        %330 = vmatpush1.msra.mxu0 %v329
        %331 = vmatprep.subr.mxu0 0.0
        %332 = vmatpush1.msra.mxu0 0.0
        %333 = vmatprep.subr.mxu0 0.0
        %334 = vmatpush1.msra.mxu0 0.0
        %335 = vmatprep.subr.mxu0 0.0
        %336 = vmatpush1.msra.mxu0 0.0
        %337 = vmatprep.subr.mxu0 0.0
        %338 = vmatpush1.msra.mxu0 0.0
        %339 = vmatprep.subr.mxu0 0.0
        %340 = vmatpush1.msra.mxu0 0.0
        %341 = vmatprep.subr.mxu0 0.0
        %342 = vmatpush1.msra.mxu0 0.0
        %343 = vmatprep.subr.mxu0 0.0
        %344 = vmatpush1.msra.mxu0 0.0
        %345 = vmatprep.subr.mxu0 0.0
        %346 = vmatpush1.msra.mxu0 0.0
        %347 = vmatprep.subr.mxu0 0.0
        %348 = vmatpush1.msra.mxu0 0.0
        %349 = vmatprep.subr.mxu0 0.0
        %350 = vmatpush1.msra.mxu0 0.0
        %351 = vmatprep.subr.mxu0 0.0
        %352 = vmatpush1.msra.mxu0 0.0
        %353 = vmatprep.subr.mxu0 0.0
        %354 = vmatpush1.msra.mxu0 0.0
        %355 = vmatprep.subr.mxu0 0.0
        %356 = vmatpush1.msra.mxu0 0.0
        %357 = vmatprep.subr.mxu0 0.0
        %358 = vmatpush1.msra.mxu0 0.0
        %359 = vmatprep.subr.mxu0 0.0
        %360 = vmatpush1.msra.mxu0 0.0
        %361 = vmatprep.subr.mxu0 0.0
        %362 = vmatpush1.msra.mxu0 0.0
        %363 = vmatprep.subr.mxu0 0.0
        %364 = vmatpush1.msra.mxu0 0.0
        %365 = vmatprep.subr.mxu0 0.0
        %366 = vmatpush1.msra.mxu0 0.0
        %367 = vmatprep.subr.mxu0 0.0
        %368 = vmatpush1.msra.mxu0 0.0
        %369 = vmatprep.subr.mxu0 0.0
        %370 = vmatpush1.msra.mxu0 0.0
        %371 = vmatprep.subr.mxu0 0.0
        %372 = vmatpush1.msra.mxu0 0.0
        %373 = vmatprep.subr.mxu0 0.0
        %374 = vmatpush1.msra.mxu0 0.0
        %375 = vmatprep.subr.mxu0 0.0
        %376 = vmatpush1.msra.mxu0 0.0
        %377 = vmatprep.subr.mxu0 0.0
        %378 = vmatpush1.msra.mxu0 0.0
        %379 = vmatprep.subr.mxu0 0.0
        %380 = vmatpush1.msra.mxu0 0.0
        %381 = vmatprep.subr.mxu0 0.0
        %382 = vmatpush1.msra.mxu0 0.0
        %383 = vmatprep.subr.mxu0 0.0
        %384 = vmatpush1.msra.mxu0 0.0
        %385 = vmatprep.subr.mxu0 0.0
        %386 = vmatpush1.msra.mxu0 0.0
        %387 = vmatprep.mubr.f32.mxu0 0.0
        %v388 = vand.u32 %v302, 4294901760
        %v389 = vsub.f32 %v302, %v388
        %v390 = vand.u32 %v389, 4294901760
        %v391 = vsub.f32 %v389, %v390
        %v392 = vand.u32 %v391, 4294901760
        %393 = vmatmul.mubr.f32.gmra.mrb[0].mxu0 %v392
        %v394 = vpop.f32.mrb[0].mxu0
        %v395 = vadd.f32 0.0, %v394
        %v396 = vpop.f32.mrb[0].mxu0
        %397 = vmatprep.mubr.f32.mxu0 0.0
        %v398 = vand.u32 %v305, 4294901760
        %v399 = vsub.f32 %v305, %v398
        %v400 = vand.u32 %v399, 4294901760
        %v401 = vsub.f32 %v399, %v400
        %v402 = vand.u32 %v401, 4294901760
        %403 = vmatmul.mubr.f32.gmra.mrb[0].mxu0 %v402
        %v404 = vpop.f32.mrb[0].mxu0
        %v405 = vadd.f32 0.0, %v404
        %v406 = vpop.f32.mrb[0].mxu0
        %407 = vmatprep.mubr.f32.mxu0 0.0
        %v408 = vand.u32 %v308, 4294901760
        %v409 = vsub.f32 %v308, %v408
        %v410 = vand.u32 %v409, 4294901760
        %v411 = vsub.f32 %v409, %v410
        %v412 = vand.u32 %v411, 4294901760
        %413 = vmatmul.mubr.f32.gmra.mrb[0].mxu0 %v412
        %v414 = vpop.f32.mrb[0].mxu0
        %v415 = vadd.f32 0.0, %v414
        %v416 = vpop.f32.mrb[0].mxu0
        %417 = vmatprep.mubr.f32.mxu0 0.0
        %v418 = vand.u32 %v311, 4294901760
        %v419 = vsub.f32 %v311, %v418
        %v420 = vand.u32 %v419, 4294901760
        %v421 = vsub.f32 %v419, %v420
        %v422 = vand.u32 %v421, 4294901760
        %423 = vmatmul.mubr.f32.gmra.mrb[0].mxu0 %v422
        %v424 = vpop.f32.mrb[0].mxu0
        %v425 = vadd.f32 0.0, %v424
        %v426 = vpop.f32.mrb[0].mxu0
        %427 = vmatprep.mubr.f32.mxu0 0.0
        %v428 = vand.u32 %v314, 4294901760
        %v429 = vsub.f32 %v314, %v428
        %v430 = vand.u32 %v429, 4294901760
        %v431 = vsub.f32 %v429, %v430
        %v432 = vand.u32 %v431, 4294901760
        %433 = vmatmul.mubr.f32.gmra.mrb[0].mxu0 %v432
        %v434 = vpop.f32.mrb[0].mxu0
        %v435 = vadd.f32 0.0, %v434
        %v436 = vpop.f32.mrb[0].mxu0
        %437 = vmatprep.mubr.f32.mxu0 0.0
        %v438 = vand.u32 %v317, 4294901760
        %v439 = vsub.f32 %v317, %v438
        %v440 = vand.u32 %v439, 4294901760
        %v441 = vsub.f32 %v439, %v440
        %v442 = vand.u32 %v441, 4294901760
        %443 = vmatmul.mubr.f32.gmra.mrb[0].mxu0 %v442
        %v444 = vpop.f32.mrb[0].mxu0
        %v445 = vadd.f32 0.0, %v444
        %v446 = vpop.f32.mrb[0].mxu0
        %447 = vdwg.mxu0
        %448 = vmatprep.subr.mxu0 0.0
        %v449 = vand.u32 %v296, 4294901760
        %v450 = vsub.f32 %v296, %v449
        %v451 = vand.u32 %v450, 4294901760
        %v452 = vsub.f32 %v450, %v451
        %v453 = vand.u32 %v452, 4294901760
        %454 = vmatpush1.msra.mxu0 %v453
        %455 = vmatprep.subr.mxu0 0.0
        %v456 = vand.u32 %v297, 4294901760
        %v457 = vsub.f32 %v297, %v456
        %v458 = vand.u32 %v457, 4294901760
        %v459 = vsub.f32 %v457, %v458
        %v460 = vand.u32 %v459, 4294901760
        %461 = vmatpush1.msra.mxu0 %v460
        %462 = vmatprep.subr.mxu0 0.0
        %v463 = vand.u32 %v298, 4294901760
        %v464 = vsub.f32 %v298, %v463
        %v465 = vand.u32 %v464, 4294901760
        %v466 = vsub.f32 %v464, %v465
        %v467 = vand.u32 %v466, 4294901760
        %468 = vmatpush1.msra.mxu0 %v467
        %469 = vmatprep.subr.mxu0 0.0
        %v470 = vand.u32 %v299, 4294901760
        %v471 = vsub.f32 %v299, %v470
        %v472 = vand.u32 %v471, 4294901760
        %v473 = vsub.f32 %v471, %v472
        %v474 = vand.u32 %v473, 4294901760
        %475 = vmatpush1.msra.mxu0 %v474
        %476 = vmatprep.subr.mxu0 0.0
        %477 = vmatpush1.msra.mxu0 0.0
        %478 = vmatprep.subr.mxu0 0.0
        %479 = vmatpush1.msra.mxu0 0.0
        %480 = vmatprep.subr.mxu0 0.0
        %481 = vmatpush1.msra.mxu0 0.0
        %482 = vmatprep.subr.mxu0 0.0
        %483 = vmatpush1.msra.mxu0 0.0
        %484 = vmatprep.subr.mxu0 0.0
        %485 = vmatpush1.msra.mxu0 0.0
        %486 = vmatprep.subr.mxu0 0.0
        %487 = vmatpush1.msra.mxu0 0.0
        %488 = vmatprep.subr.mxu0 0.0
        %489 = vmatpush1.msra.mxu0 0.0
        %490 = vmatprep.subr.mxu0 0.0
        %491 = vmatpush1.msra.mxu0 0.0
        %492 = vmatprep.subr.mxu0 0.0
        %493 = vmatpush1.msra.mxu0 0.0
        %494 = vmatprep.subr.mxu0 0.0
        %495 = vmatpush1.msra.mxu0 0.0
        %496 = vmatprep.subr.mxu0 0.0
        %497 = vmatpush1.msra.mxu0 0.0
        %498 = vmatprep.subr.mxu0 0.0
        %499 = vmatpush1.msra.mxu0 0.0
        %500 = vmatprep.subr.mxu0 0.0
        %501 = vmatpush1.msra.mxu0 0.0
        %502 = vmatprep.subr.mxu0 0.0
        %503 = vmatpush1.msra.mxu0 0.0
        %504 = vmatprep.subr.mxu0 0.0
        %505 = vmatpush1.msra.mxu0 0.0
        %506 = vmatprep.subr.mxu0 0.0
        %507 = vmatpush1.msra.mxu0 0.0
        %508 = vmatprep.subr.mxu0 0.0
        %509 = vmatpush1.msra.mxu0 0.0
        %510 = vmatprep.subr.mxu0 0.0
        %511 = vmatpush1.msra.mxu0 0.0
        %512 = vmatprep.subr.mxu0 0.0
        %513 = vmatpush1.msra.mxu0 0.0
        %514 = vmatprep.subr.mxu0 0.0
        %515 = vmatpush1.msra.mxu0 0.0
        %516 = vmatprep.subr.mxu0 0.0
        %517 = vmatpush1.msra.mxu0 0.0
        %518 = vmatprep.subr.mxu0 0.0
        %519 = vmatpush1.msra.mxu0 0.0
        %520 = vmatprep.subr.mxu0 0.0
        %521 = vmatpush1.msra.mxu0 0.0
        %522 = vmatprep.subr.mxu0 0.0
        %523 = vmatpush1.msra.mxu0 0.0
        %524 = vmatprep.subr.mxu0 0.0
        %525 = vmatpush1.msra.mxu0 0.0
        %526 = vmatprep.subr.mxu0 0.0
        %527 = vmatpush1.msra.mxu0 0.0
        %528 = vmatprep.subr.mxu0 0.0
        %529 = vmatpush1.msra.mxu0 0.0
        %530 = vmatprep.subr.mxu0 0.0
        %531 = vmatpush1.msra.mxu0 0.0
        %532 = vmatprep.mubr.f32.mxu0 0.0
        %v533 = vand.u32 %v302, 4294901760
        %534 = vmatmul.mubr.f32.gmra.mrb[0].mxu0 %v533
        %v535 = vpop.f32.mrb[0].mxu0
        %v536 = vadd.f32 %v395, %v535
        %v537 = vpop.f32.mrb[0].mxu0
        %538 = vmatprep.mubr.f32.mxu0 0.0
        %v539 = vand.u32 %v305, 4294901760
        %540 = vmatmul.mubr.f32.gmra.mrb[0].mxu0 %v539
        %v541 = vpop.f32.mrb[0].mxu0
        %v542 = vadd.f32 %v405, %v541
        %v543 = vpop.f32.mrb[0].mxu0
        %544 = vmatprep.mubr.f32.mxu0 0.0
        %v545 = vand.u32 %v308, 4294901760
        %546 = vmatmul.mubr.f32.gmra.mrb[0].mxu0 %v545
        %v547 = vpop.f32.mrb[0].mxu0
        %v548 = vadd.f32 %v415, %v547
        %v549 = vpop.f32.mrb[0].mxu0
        %550 = vmatprep.mubr.f32.mxu0 0.0
        %v551 = vand.u32 %v311, 4294901760
        %552 = vmatmul.mubr.f32.gmra.mrb[0].mxu0 %v551
        %v553 = vpop.f32.mrb[0].mxu0
        %v554 = vadd.f32 %v425, %v553
        %v555 = vpop.f32.mrb[0].mxu0
        %556 = vmatprep.mubr.f32.mxu0 0.0
        %v557 = vand.u32 %v314, 4294901760
        %558 = vmatmul.mubr.f32.gmra.mrb[0].mxu0 %v557
        %v559 = vpop.f32.mrb[0].mxu0
        %v560 = vadd.f32 %v435, %v559
        %v561 = vpop.f32.mrb[0].mxu0
        %562 = vmatprep.mubr.f32.mxu0 0.0
        %v563 = vand.u32 %v317, 4294901760
        %564 = vmatmul.mubr.f32.gmra.mrb[0].mxu0 %v563
        %v565 = vpop.f32.mrb[0].mxu0
        %v566 = vadd.f32 %v445, %v565
        %v567 = vpop.f32.mrb[0].mxu0
        %568 = vdwg.mxu0
        %569 = vmatprep.subr.mxu0 0.0
        %v570 = vand.u32 %v296, 4294901760
        %v571 = vsub.f32 %v296, %v570
        %572 = vmatpush1.msra.mxu0 %v571
        %573 = vmatprep.subr.mxu0 0.0
        %v574 = vand.u32 %v297, 4294901760
        %v575 = vsub.f32 %v297, %v574
        %576 = vmatpush1.msra.mxu0 %v575
        %577 = vmatprep.subr.mxu0 0.0
        %v578 = vand.u32 %v298, 4294901760
        %v579 = vsub.f32 %v298, %v578
        %580 = vmatpush1.msra.mxu0 %v579
        %581 = vmatprep.subr.mxu0 0.0
        %v582 = vand.u32 %v299, 4294901760
        %v583 = vsub.f32 %v299, %v582
        %584 = vmatpush1.msra.mxu0 %v583
        %585 = vmatprep.subr.mxu0 0.0
        %586 = vmatpush1.msra.mxu0 0.0
        %587 = vmatprep.subr.mxu0 0.0
        %588 = vmatpush1.msra.mxu0 0.0
        %589 = vmatprep.subr.mxu0 0.0
        %590 = vmatpush1.msra.mxu0 0.0
        %591 = vmatprep.subr.mxu0 0.0
        %592 = vmatpush1.msra.mxu0 0.0
        %593 = vmatprep.subr.mxu0 0.0
        %594 = vmatpush1.msra.mxu0 0.0
        %595 = vmatprep.subr.mxu0 0.0
        %596 = vmatpush1.msra.mxu0 0.0
        %597 = vmatprep.subr.mxu0 0.0
        %598 = vmatpush1.msra.mxu0 0.0
        %599 = vmatprep.subr.mxu0 0.0
        %600 = vmatpush1.msra.mxu0 0.0
        %601 = vmatprep.subr.mxu0 0.0
        %602 = vmatpush1.msra.mxu0 0.0
        %603 = vmatprep.subr.mxu0 0.0
        %604 = vmatpush1.msra.mxu0 0.0
        %605 = vmatprep.subr.mxu0 0.0
        %606 = vmatpush1.msra.mxu0 0.0
        %607 = vmatprep.subr.mxu0 0.0
        %608 = vmatpush1.msra.mxu0 0.0
        %609 = vmatprep.subr.mxu0 0.0
        %610 = vmatpush1.msra.mxu0 0.0
        %611 = vmatprep.subr.mxu0 0.0
        %612 = vmatpush1.msra.mxu0 0.0
        %613 = vmatprep.subr.mxu0 0.0
        %614 = vmatpush1.msra.mxu0 0.0
        %615 = vmatprep.subr.mxu0 0.0
        %616 = vmatpush1.msra.mxu0 0.0
        %617 = vmatprep.subr.mxu0 0.0
        %618 = vmatpush1.msra.mxu0 0.0
        %619 = vmatprep.subr.mxu0 0.0
        %620 = vmatpush1.msra.mxu0 0.0
        %621 = vmatprep.subr.mxu0 0.0
        %622 = vmatpush1.msra.mxu0 0.0
        %623 = vmatprep.subr.mxu0 0.0
        %624 = vmatpush1.msra.mxu0 0.0
        %625 = vmatprep.subr.mxu0 0.0
        %626 = vmatpush1.msra.mxu0 0.0
        %627 = vmatprep.subr.mxu0 0.0
        %628 = vmatpush1.msra.mxu0 0.0
        %629 = vmatprep.subr.mxu0 0.0
        %630 = vmatpush1.msra.mxu0 0.0
        %631 = vmatprep.subr.mxu0 0.0
        %632 = vmatpush1.msra.mxu0 0.0
        %633 = vmatprep.subr.mxu0 0.0
        %634 = vmatpush1.msra.mxu0 0.0
        %635 = vmatprep.subr.mxu0 0.0
        %636 = vmatpush1.msra.mxu0 0.0
        %637 = vmatprep.subr.mxu0 0.0
        %638 = vmatpush1.msra.mxu0 0.0
        %639 = vmatprep.subr.mxu0 0.0
        %640 = vmatpush1.msra.mxu0 0.0
        %641 = vmatprep.mubr.f32.mxu0 0.0
        %v642 = vand.u32 %v302, 4294901760
        %v643 = vsub.f32 %v302, %v642
        %644 = vmatmul.mubr.f32.gmra.mrb[0].mxu0 %v643
        %v645 = vpop.f32.mrb[0].mxu0
        %v646 = vadd.f32 %v536, %v645
        %v647 = vpop.f32.mrb[0].mxu0
        %648 = vmatprep.mubr.f32.mxu0 0.0
        %v649 = vand.u32 %v305, 4294901760
        %v650 = vsub.f32 %v305, %v649
        %651 = vmatmul.mubr.f32.gmra.mrb[0].mxu0 %v650
        %v652 = vpop.f32.mrb[0].mxu0
        %v653 = vadd.f32 %v542, %v652
        %v654 = vpop.f32.mrb[0].mxu0
        %655 = vmatprep.mubr.f32.mxu0 0.0
        %v656 = vand.u32 %v308, 4294901760
        %v657 = vsub.f32 %v308, %v656
        %658 = vmatmul.mubr.f32.gmra.mrb[0].mxu0 %v657
        %v659 = vpop.f32.mrb[0].mxu0
        %v660 = vadd.f32 %v548, %v659
        %v661 = vpop.f32.mrb[0].mxu0
        %662 = vmatprep.mubr.f32.mxu0 0.0
        %v663 = vand.u32 %v311, 4294901760
        %v664 = vsub.f32 %v311, %v663
        %665 = vmatmul.mubr.f32.gmra.mrb[0].mxu0 %v664
        %v666 = vpop.f32.mrb[0].mxu0
        %v667 = vadd.f32 %v554, %v666
        %v668 = vpop.f32.mrb[0].mxu0
        %669 = vmatprep.mubr.f32.mxu0 0.0
        %v670 = vand.u32 %v314, 4294901760
        %v671 = vsub.f32 %v314, %v670
        %672 = vmatmul.mubr.f32.gmra.mrb[0].mxu0 %v671
        %v673 = vpop.f32.mrb[0].mxu0
        %v674 = vadd.f32 %v560, %v673
        %v675 = vpop.f32.mrb[0].mxu0
        %676 = vmatprep.mubr.f32.mxu0 0.0
        %v677 = vand.u32 %v317, 4294901760
        %v678 = vsub.f32 %v317, %v677
        %679 = vmatmul.mubr.f32.gmra.mrb[0].mxu0 %v678
        %v680 = vpop.f32.mrb[0].mxu0
        %v681 = vadd.f32 %v566, %v680
        %v682 = vpop.f32.mrb[0].mxu0
        %683 = vdwg.mxu0
        %684 = vmatprep.subr.mxu0 0.0
        %v685 = vand.u32 %v296, 4294901760
        %686 = vmatpush1.msra.mxu0 %v685
        %687 = vmatprep.subr.mxu0 0.0
        %v688 = vand.u32 %v297, 4294901760
        %689 = vmatpush1.msra.mxu0 %v688
        %690 = vmatprep.subr.mxu0 0.0
        %v691 = vand.u32 %v298, 4294901760
        %692 = vmatpush1.msra.mxu0 %v691
        %693 = vmatprep.subr.mxu0 0.0
        %v694 = vand.u32 %v299, 4294901760
        %695 = vmatpush1.msra.mxu0 %v694
        %696 = vmatprep.subr.mxu0 0.0
        %697 = vmatpush1.msra.mxu0 0.0
        %698 = vmatprep.subr.mxu0 0.0
        %699 = vmatpush1.msra.mxu0 0.0
        %700 = vmatprep.subr.mxu0 0.0
        %701 = vmatpush1.msra.mxu0 0.0
        %702 = vmatprep.subr.mxu0 0.0
        %703 = vmatpush1.msra.mxu0 0.0
        %704 = vmatprep.subr.mxu0 0.0
        %705 = vmatpush1.msra.mxu0 0.0
        %706 = vmatprep.subr.mxu0 0.0
        %707 = vmatpush1.msra.mxu0 0.0
        %708 = vmatprep.subr.mxu0 0.0
        %709 = vmatpush1.msra.mxu0 0.0
        %710 = vmatprep.subr.mxu0 0.0
        %711 = vmatpush1.msra.mxu0 0.0
        %712 = vmatprep.subr.mxu0 0.0
        %713 = vmatpush1.msra.mxu0 0.0
        %714 = vmatprep.subr.mxu0 0.0
        %715 = vmatpush1.msra.mxu0 0.0
        %716 = vmatprep.subr.mxu0 0.0
        %717 = vmatpush1.msra.mxu0 0.0
        %718 = vmatprep.subr.mxu0 0.0
        %719 = vmatpush1.msra.mxu0 0.0
        %720 = vmatprep.subr.mxu0 0.0
        %721 = vmatpush1.msra.mxu0 0.0
        %722 = vmatprep.subr.mxu0 0.0
        %723 = vmatpush1.msra.mxu0 0.0
        %724 = vmatprep.subr.mxu0 0.0
        %725 = vmatpush1.msra.mxu0 0.0
        %726 = vmatprep.subr.mxu0 0.0
        %727 = vmatpush1.msra.mxu0 0.0
        %728 = vmatprep.subr.mxu0 0.0
        %729 = vmatpush1.msra.mxu0 0.0
        %730 = vmatprep.subr.mxu0 0.0
        %731 = vmatpush1.msra.mxu0 0.0
        %732 = vmatprep.subr.mxu0 0.0
        %733 = vmatpush1.msra.mxu0 0.0
        %734 = vmatprep.subr.mxu0 0.0
        %735 = vmatpush1.msra.mxu0 0.0
        %736 = vmatprep.subr.mxu0 0.0
        %737 = vmatpush1.msra.mxu0 0.0
        %738 = vmatprep.subr.mxu0 0.0
        %739 = vmatpush1.msra.mxu0 0.0
        %740 = vmatprep.subr.mxu0 0.0
        %741 = vmatpush1.msra.mxu0 0.0
        %742 = vmatprep.subr.mxu0 0.0
        %743 = vmatpush1.msra.mxu0 0.0
        %744 = vmatprep.subr.mxu0 0.0
        %745 = vmatpush1.msra.mxu0 0.0
        %746 = vmatprep.subr.mxu0 0.0
        %747 = vmatpush1.msra.mxu0 0.0
        %748 = vmatprep.subr.mxu0 0.0
        %749 = vmatpush1.msra.mxu0 0.0
        %750 = vmatprep.subr.mxu0 0.0
        %751 = vmatpush1.msra.mxu0 0.0
        %752 = vmatprep.mubr.f32.mxu0 0.0
        %v753 = vand.u32 %v302, 4294901760
        %v754 = vsub.f32 %v302, %v753
        %v755 = vand.u32 %v754, 4294901760
        %756 = vmatmul.mubr.f32.gmra.mrb[0].mxu0 %v755
        %v757 = vpop.f32.mrb[0].mxu0
        %v758 = vadd.f32 %v646, %v757
        %v759 = vpop.f32.mrb[0].mxu0
        %760 = vmatprep.mubr.f32.mxu0 0.0
        %v761 = vand.u32 %v305, 4294901760
        %v762 = vsub.f32 %v305, %v761
        %v763 = vand.u32 %v762, 4294901760
        %764 = vmatmul.mubr.f32.gmra.mrb[0].mxu0 %v763
        %v765 = vpop.f32.mrb[0].mxu0
        %v766 = vadd.f32 %v653, %v765
        %v767 = vpop.f32.mrb[0].mxu0
        %768 = vmatprep.mubr.f32.mxu0 0.0
        %v769 = vand.u32 %v308, 4294901760
        %v770 = vsub.f32 %v308, %v769
        %v771 = vand.u32 %v770, 4294901760
        %772 = vmatmul.mubr.f32.gmra.mrb[0].mxu0 %v771
        %v773 = vpop.f32.mrb[0].mxu0
        %v774 = vadd.f32 %v660, %v773
        %v775 = vpop.f32.mrb[0].mxu0
        %776 = vmatprep.mubr.f32.mxu0 0.0
        %v777 = vand.u32 %v311, 4294901760
        %v778 = vsub.f32 %v311, %v777
        %v779 = vand.u32 %v778, 4294901760
        %780 = vmatmul.mubr.f32.gmra.mrb[0].mxu0 %v779
        %v781 = vpop.f32.mrb[0].mxu0
        %v782 = vadd.f32 %v667, %v781
        %v783 = vpop.f32.mrb[0].mxu0
        %784 = vmatprep.mubr.f32.mxu0 0.0
        %v785 = vand.u32 %v314, 4294901760
        %v786 = vsub.f32 %v314, %v785
        %v787 = vand.u32 %v786, 4294901760
        %788 = vmatmul.mubr.f32.gmra.mrb[0].mxu0 %v787
        %v789 = vpop.f32.mrb[0].mxu0
        %v790 = vadd.f32 %v674, %v789
        %v791 = vpop.f32.mrb[0].mxu0
        %792 = vmatprep.mubr.f32.mxu0 0.0
        %v793 = vand.u32 %v317, 4294901760
        %v794 = vsub.f32 %v317, %v793
        %v795 = vand.u32 %v794, 4294901760
        %796 = vmatmul.mubr.f32.gmra.mrb[0].mxu0 %v795
        %v797 = vpop.f32.mrb[0].mxu0
        %v798 = vadd.f32 %v681, %v797
        %v799 = vpop.f32.mrb[0].mxu0
        %800 = vdwg.mxu0
        %801 = vmatprep.subr.mxu0 0.0
        %v802 = vand.u32 %v296, 4294901760
        %v803 = vsub.f32 %v296, %v802
        %v804 = vand.u32 %v803, 4294901760
        %805 = vmatpush1.msra.mxu0 %v804
        %806 = vmatprep.subr.mxu0 0.0
        %v807 = vand.u32 %v297, 4294901760
        %v808 = vsub.f32 %v297, %v807
        %v809 = vand.u32 %v808, 4294901760
        %810 = vmatpush1.msra.mxu0 %v809
        %811 = vmatprep.subr.mxu0 0.0
        %v812 = vand.u32 %v298, 4294901760
        %v813 = vsub.f32 %v298, %v812
        %v814 = vand.u32 %v813, 4294901760
        %815 = vmatpush1.msra.mxu0 %v814
        %816 = vmatprep.subr.mxu0 0.0
        %v817 = vand.u32 %v299, 4294901760
        %v818 = vsub.f32 %v299, %v817
        %v819 = vand.u32 %v818, 4294901760
        %820 = vmatpush1.msra.mxu0 %v819
        %821 = vmatprep.subr.mxu0 0.0
        %822 = vmatpush1.msra.mxu0 0.0
        %823 = vmatprep.subr.mxu0 0.0
        %824 = vmatpush1.msra.mxu0 0.0
        %825 = vmatprep.subr.mxu0 0.0
        %826 = vmatpush1.msra.mxu0 0.0
        %827 = vmatprep.subr.mxu0 0.0
        %828 = vmatpush1.msra.mxu0 0.0
        %829 = vmatprep.subr.mxu0 0.0
        %830 = vmatpush1.msra.mxu0 0.0
        %831 = vmatprep.subr.mxu0 0.0
        %832 = vmatpush1.msra.mxu0 0.0
        %833 = vmatprep.subr.mxu0 0.0
        %834 = vmatpush1.msra.mxu0 0.0
        %835 = vmatprep.subr.mxu0 0.0
        %836 = vmatpush1.msra.mxu0 0.0
        %837 = vmatprep.subr.mxu0 0.0
        %838 = vmatpush1.msra.mxu0 0.0
        %839 = vmatprep.subr.mxu0 0.0
        %840 = vmatpush1.msra.mxu0 0.0
        %841 = vmatprep.subr.mxu0 0.0
        %842 = vmatpush1.msra.mxu0 0.0
        %843 = vmatprep.subr.mxu0 0.0
        %844 = vmatpush1.msra.mxu0 0.0
        %845 = vmatprep.subr.mxu0 0.0
        %846 = vmatpush1.msra.mxu0 0.0
        %847 = vmatprep.subr.mxu0 0.0
        %848 = vmatpush1.msra.mxu0 0.0
        %849 = vmatprep.subr.mxu0 0.0
        %850 = vmatpush1.msra.mxu0 0.0
        %851 = vmatprep.subr.mxu0 0.0
        %852 = vmatpush1.msra.mxu0 0.0
        %853 = vmatprep.subr.mxu0 0.0
        %854 = vmatpush1.msra.mxu0 0.0
        %855 = vmatprep.subr.mxu0 0.0
        %856 = vmatpush1.msra.mxu0 0.0
        %857 = vmatprep.subr.mxu0 0.0
        %858 = vmatpush1.msra.mxu0 0.0
        %859 = vmatprep.subr.mxu0 0.0
        %860 = vmatpush1.msra.mxu0 0.0
        %861 = vmatprep.subr.mxu0 0.0
        %862 = vmatpush1.msra.mxu0 0.0
        %863 = vmatprep.subr.mxu0 0.0
        %864 = vmatpush1.msra.mxu0 0.0
        %865 = vmatprep.subr.mxu0 0.0
        %866 = vmatpush1.msra.mxu0 0.0
        %867 = vmatprep.subr.mxu0 0.0
        %868 = vmatpush1.msra.mxu0 0.0
        %869 = vmatprep.subr.mxu0 0.0
        %870 = vmatpush1.msra.mxu0 0.0
        %871 = vmatprep.subr.mxu0 0.0
        %872 = vmatpush1.msra.mxu0 0.0
        %873 = vmatprep.subr.mxu0 0.0
        %874 = vmatpush1.msra.mxu0 0.0
        %875 = vmatprep.subr.mxu0 0.0
        %876 = vmatpush1.msra.mxu0 0.0
        %877 = vmatprep.mubr.f32.mxu0 0.0
        %v878 = vand.u32 %v302, 4294901760
        %879 = vmatmul.mubr.f32.gmra.mrb[0].mxu0 %v878
        %v880 = vpop.f32.mrb[0].mxu0
        %v881 = vadd.f32 %v758, %v880
        %v882 = vpop.f32.mrb[0].mxu0
        %883 = vmatprep.mubr.f32.mxu0 0.0
        %v884 = vand.u32 %v305, 4294901760
        %885 = vmatmul.mubr.f32.gmra.mrb[0].mxu0 %v884
        %v886 = vpop.f32.mrb[0].mxu0
        %v887 = vadd.f32 %v766, %v886
        %v888 = vpop.f32.mrb[0].mxu0
        %889 = vmatprep.mubr.f32.mxu0 0.0
        %v890 = vand.u32 %v308, 4294901760
        %891 = vmatmul.mubr.f32.gmra.mrb[0].mxu0 %v890
        %v892 = vpop.f32.mrb[0].mxu0
        %v893 = vadd.f32 %v774, %v892
        %v894 = vpop.f32.mrb[0].mxu0
        %895 = vmatprep.mubr.f32.mxu0 0.0
        %v896 = vand.u32 %v311, 4294901760
        %897 = vmatmul.mubr.f32.gmra.mrb[0].mxu0 %v896
        %v898 = vpop.f32.mrb[0].mxu0
        %v899 = vadd.f32 %v782, %v898
        %v900 = vpop.f32.mrb[0].mxu0
        %901 = vmatprep.mubr.f32.mxu0 0.0
        %v902 = vand.u32 %v314, 4294901760
        %903 = vmatmul.mubr.f32.gmra.mrb[0].mxu0 %v902
        %v904 = vpop.f32.mrb[0].mxu0
        %v905 = vadd.f32 %v790, %v904
        %v906 = vpop.f32.mrb[0].mxu0
        %907 = vmatprep.mubr.f32.mxu0 0.0
        %v908 = vand.u32 %v317, 4294901760
        %909 = vmatmul.mubr.f32.gmra.mrb[0].mxu0 %v908
        %v910 = vpop.f32.mrb[0].mxu0
        %v911 = vadd.f32 %v798, %v910
        %v912 = vpop.f32.mrb[0].mxu0
        %913 = vdwg.mxu0
        %914 = vmatprep.subr.mxu0 0.0
        %v915 = vand.u32 %v296, 4294901760
        %916 = vmatpush1.msra.mxu0 %v915
        %917 = vmatprep.subr.mxu0 0.0
        %v918 = vand.u32 %v297, 4294901760
        %919 = vmatpush1.msra.mxu0 %v918
        %920 = vmatprep.subr.mxu0 0.0
        %v921 = vand.u32 %v298, 4294901760
        %922 = vmatpush1.msra.mxu0 %v921
        %923 = vmatprep.subr.mxu0 0.0
        %v924 = vand.u32 %v299, 4294901760
        %925 = vmatpush1.msra.mxu0 %v924
        %926 = vmatprep.subr.mxu0 0.0
        %927 = vmatpush1.msra.mxu0 0.0
        %928 = vmatprep.subr.mxu0 0.0
        %929 = vmatpush1.msra.mxu0 0.0
        %930 = vmatprep.subr.mxu0 0.0
        %931 = vmatpush1.msra.mxu0 0.0
        %932 = vmatprep.subr.mxu0 0.0
        %933 = vmatpush1.msra.mxu0 0.0
        %934 = vmatprep.subr.mxu0 0.0
        %935 = vmatpush1.msra.mxu0 0.0
        %936 = vmatprep.subr.mxu0 0.0
        %937 = vmatpush1.msra.mxu0 0.0
        %938 = vmatprep.subr.mxu0 0.0
        %939 = vmatpush1.msra.mxu0 0.0
        %940 = vmatprep.subr.mxu0 0.0
        %941 = vmatpush1.msra.mxu0 0.0
        %942 = vmatprep.subr.mxu0 0.0
        %943 = vmatpush1.msra.mxu0 0.0
        %944 = vmatprep.subr.mxu0 0.0
        %945 = vmatpush1.msra.mxu0 0.0
        %946 = vmatprep.subr.mxu0 0.0
        %947 = vmatpush1.msra.mxu0 0.0
        %948 = vmatprep.subr.mxu0 0.0
        %949 = vmatpush1.msra.mxu0 0.0
        %950 = vmatprep.subr.mxu0 0.0
        %951 = vmatpush1.msra.mxu0 0.0
        %952 = vmatprep.subr.mxu0 0.0
        %953 = vmatpush1.msra.mxu0 0.0
        %954 = vmatprep.subr.mxu0 0.0
        %955 = vmatpush1.msra.mxu0 0.0
        %956 = vmatprep.subr.mxu0 0.0
        %957 = vmatpush1.msra.mxu0 0.0
        %958 = vmatprep.subr.mxu0 0.0
        %959 = vmatpush1.msra.mxu0 0.0
        %960 = vmatprep.subr.mxu0 0.0
        %961 = vmatpush1.msra.mxu0 0.0
        %962 = vmatprep.subr.mxu0 0.0
        %963 = vmatpush1.msra.mxu0 0.0
        %964 = vmatprep.subr.mxu0 0.0
        %965 = vmatpush1.msra.mxu0 0.0
        %966 = vmatprep.subr.mxu0 0.0
        %967 = vmatpush1.msra.mxu0 0.0
        %968 = vmatprep.subr.mxu0 0.0
        %969 = vmatpush1.msra.mxu0 0.0
        %970 = vmatprep.subr.mxu0 0.0
        %971 = vmatpush1.msra.mxu0 0.0
        %972 = vmatprep.subr.mxu0 0.0
        %973 = vmatpush1.msra.mxu0 0.0
        %974 = vmatprep.subr.mxu0 0.0
        %975 = vmatpush1.msra.mxu0 0.0
        %976 = vmatprep.subr.mxu0 0.0
        %977 = vmatpush1.msra.mxu0 0.0
        %978 = vmatprep.subr.mxu0 0.0
        %979 = vmatpush1.msra.mxu0 0.0
        %980 = vmatprep.subr.mxu0 0.0
        %981 = vmatpush1.msra.mxu0 0.0
        %982 = vmatprep.mubr.f32.mxu0 0.0
        %v983 = vand.u32 %v302, 4294901760
        %984 = vmatmul.mubr.f32.gmra.mrb[0].mxu0 %v983
        %v985 = vpop.f32.mrb[0].mxu0
        %v986 = vadd.f32 %v881, %v985
        %v987 = vpop.f32.mrb[0].mxu0
        %988 = vmatprep.mubr.f32.mxu0 0.0
        %v989 = vand.u32 %v305, 4294901760
        %990 = vmatmul.mubr.f32.gmra.mrb[0].mxu0 %v989
        %v991 = vpop.f32.mrb[0].mxu0
        %v992 = vadd.f32 %v887, %v991
        %v993 = vpop.f32.mrb[0].mxu0
        %994 = vmatprep.mubr.f32.mxu0 0.0
        %v995 = vand.u32 %v308, 4294901760
        %996 = vmatmul.mubr.f32.gmra.mrb[0].mxu0 %v995
        %v997 = vpop.f32.mrb[0].mxu0
        %v998 = vadd.f32 %v893, %v997
        %v999 = vpop.f32.mrb[0].mxu0
        %1000 = vmatprep.mubr.f32.mxu0 0.0
        %v1001 = vand.u32 %v311, 4294901760
        %1002 = vmatmul.mubr.f32.gmra.mrb[0].mxu0 %v1001
        %v1003 = vpop.f32.mrb[0].mxu0
        %v1004 = vadd.f32 %v899, %v1003
        %v1005 = vpop.f32.mrb[0].mxu0
        %1006 = vmatprep.mubr.f32.mxu0 0.0
        %v1007 = vand.u32 %v314, 4294901760
        %1008 = vmatmul.mubr.f32.gmra.mrb[0].mxu0 %v1007
        %v1009 = vpop.f32.mrb[0].mxu0
        %v1010 = vadd.f32 %v905, %v1009
        %v1011 = vpop.f32.mrb[0].mxu0
        %1012 = vmatprep.mubr.f32.mxu0 0.0
        %v1013 = vand.u32 %v317, 4294901760
        %1014 = vmatmul.mubr.f32.gmra.mrb[0].mxu0 %v1013
        %v1015 = vpop.f32.mrb[0].mxu0
        %v1016 = vadd.f32 %v911, %v1015
        %v1017 = vpop.f32.mrb[0].mxu0
        %1018 = vdwg.mxu0
        %vm1019 = vcmask 60416
        %1020 = vst.msk [vmem:[#allocation2] sm:$0xf] %vm1019, %v986
        %1022 = vrot.lane.b32.xlu0 %v986, 8
        %v1023 = vpop.permute.xlu0 %1022
        %vm1025 = vcmask 130116
        %1026 = vst.msk [vmem:[#allocation2 - $0x4] sm:$0xf0] %vm1025, %v1023
        %1028 = vrot.lane.b32.xlu0 %v992, 16
        %v1029 = vpop.permute.xlu0 %1028
        %vm1031 = vcmask 191616
        %1032 = vst.msk [vmem:[#allocation2] sm:$0xf] %vm1031, %v1029
        %1033 = vrot.lane.b32.xlu0 %v992, 24
        %v1034 = vpop.permute.xlu0 %1033
        %vm1036 = vcmask 261316
        %1037 = vst.msk [vmem:[#allocation2 - $0x4] sm:$0xf0] %vm1036, %v1034
        %1038 = vst.msk [vmem:[#allocation2 + $0x4] sm:$0xf] %vm1019, %v998
        %1040 = vrot.lane.b32.xlu0 %v998, 8
        %v1041 = vpop.permute.xlu0 %1040
        %1043 = vst.msk [vmem:[#allocation2] sm:$0xf0] %vm1025, %v1041
        %1045 = vrot.lane.b32.xlu0 %v1004, 16
        %v1046 = vpop.permute.xlu0 %1045
        %1048 = vst.msk [vmem:[#allocation2 + $0x4] sm:$0xf] %vm1031, %v1046
        %1049 = vrot.lane.b32.xlu0 %v1004, 24
        %v1050 = vpop.permute.xlu0 %1049
        %1052 = vst.msk [vmem:[#allocation2] sm:$0xf0] %vm1036, %v1050
        %1053 = vst.msk [vmem:[#allocation2 + $0x8] sm:$0xf] %vm1019, %v1010
        %1055 = vrot.lane.b32.xlu0 %v1010, 8
        %v1056 = vpop.permute.xlu0 %1055
        %1058 = vst.msk [vmem:[#allocation2 + $0x4] sm:$0xf0] %vm1025, %v1056
        %1060 = vrot.lane.b32.xlu0 %v1016, 16
        %v1061 = vpop.permute.xlu0 %1060
        %1063 = vst.msk [vmem:[#allocation2 + $0x8] sm:$0xf] %vm1031, %v1061
        %1064 = vrot.lane.b32.xlu0 %v1016, 24
        %v1065 = vpop.permute.xlu0 %1064
        %1067 = vst.msk [vmem:[#allocation2 + $0x4] sm:$0xf0] %vm1036, %v1065
        %1068 = vrot.lane.b32.xlu0 %v986, 120
        %v1069 = vpop.permute.xlu0 %1068
        %1071 = vst.msk [vmem:[#allocation2 + $0xc] sm:$0xf] %vm1019, %v1069
        %1072 = vst.msk [vmem:[#allocation2 + $0x8] sm:$0xf0] %vm1025, %v986
        %1073 = vrot.lane.b32.xlu0 %v992, 8
        %v1074 = vpop.permute.xlu0 %1073
        %1076 = vst.msk [vmem:[#allocation2 + $0xc] sm:$0xf] %vm1031, %v1074
        %1077 = vst.msk [vmem:[#allocation2 + $0x8] sm:$0xf0] %vm1036, %v1029
        %1078 = vrot.lane.b32.xlu0 %v998, 120
        %v1079 = vpop.permute.xlu0 %1078
        %1081 = vst.msk [vmem:[#allocation2 + $0x10] sm:$0xf] %vm1019, %v1079
        %1082 = vst.msk [vmem:[#allocation2 + $0xc] sm:$0xf0] %vm1025, %v998
        %1083 = vrot.lane.b32.xlu0 %v1004, 8
        %v1084 = vpop.permute.xlu0 %1083
        %1086 = vst.msk [vmem:[#allocation2 + $0x10] sm:$0xf] %vm1031, %v1084
        %1087 = vst.msk [vmem:[#allocation2 + $0xc] sm:$0xf0] %vm1036, %v1046
        %1088 = vrot.lane.b32.xlu0 %v1010, 120
        %v1089 = vpop.permute.xlu0 %1088
        %1091 = vst.msk [vmem:[#allocation2 + $0x14] sm:$0xf] %vm1019, %v1089
        %1092 = vst.msk [vmem:[#allocation2 + $0x10] sm:$0xf0] %vm1025, %v1010
        %1093 = vrot.lane.b32.xlu0 %v1016, 8
        %v1094 = vpop.permute.xlu0 %1093
        %1096 = vst.msk [vmem:[#allocation2 + $0x14] sm:$0xf] %vm1031, %v1094
        %1097 = vst.msk [vmem:[#allocation2 + $0x10] sm:$0xf0] %vm1036, %v1061
        %1098 = vrot.lane.b32.xlu0 %v986, 112
        %v1099 = vpop.permute.xlu0 %1098
        %1101 = vst.msk [vmem:[#allocation2 + $0x18] sm:$0xf] %vm1019, %v1099
        %1102 = vst.msk [vmem:[#allocation2 + $0x14] sm:$0xf0] %vm1025, %v1069
        %1103 = vst.msk [vmem:[#allocation2 + $0x18] sm:$0xf] %vm1031, %v992
        %1104 = vst.msk [vmem:[#allocation2 + $0x14] sm:$0xf0] %vm1036, %v1074
        %1105 = vrot.lane.b32.xlu0 %v998, 112
        %v1106 = vpop.permute.xlu0 %1105
        %1108 = vst.msk [vmem:[#allocation2 + $0x1c] sm:$0xf] %vm1019, %v1106
        %1109 = vst.msk [vmem:[#allocation2 + $0x18] sm:$0xf0] %vm1025, %v1079
        %1110 = vst.msk [vmem:[#allocation2 + $0x1c] sm:$0xf] %vm1031, %v1004
        %1111 = vst.msk [vmem:[#allocation2 + $0x18] sm:$0xf0] %vm1036, %v1084
        %1112 = vrot.lane.b32.xlu0 %v1010, 112
        %v1113 = vpop.permute.xlu0 %1112
        %1115 = vst.msk [vmem:[#allocation2 + $0x20] sm:$0xf] %vm1019, %v1113
        %1116 = vst.msk [vmem:[#allocation2 + $0x1c] sm:$0xf0] %vm1025, %v1089
        %1117 = vst.msk [vmem:[#allocation2 + $0x20] sm:$0xf] %vm1031, %v1016
        %1118 = vst.msk [vmem:[#allocation2 + $0x1c] sm:$0xf0] %vm1036, %v1094
        %1119 = vrot.lane.b32.xlu0 %v986, 104
        %v1120 = vpop.permute.xlu0 %1119
        %1122 = vst.msk [vmem:[#allocation2 + $0x24] sm:$0xf] %vm1019, %v1120
        %1123 = vst.msk [vmem:[#allocation2 + $0x20] sm:$0xf0] %vm1025, %v1099
        %1124 = vrot.lane.b32.xlu0 %v992, 120
        %v1125 = vpop.permute.xlu0 %1124
        %1127 = vst.msk [vmem:[#allocation2 + $0x24] sm:$0xf] %vm1031, %v1125
        %1128 = vst.msk [vmem:[#allocation2 + $0x20] sm:$0xf0] %vm1036, %v992
        %1129 = vrot.lane.b32.xlu0 %v998, 104
        %v1130 = vpop.permute.xlu0 %1129
        %1132 = vst.msk [vmem:[#allocation2 + $0x28] sm:$0xf] %vm1019, %v1130
        %1133 = vst.msk [vmem:[#allocation2 + $0x24] sm:$0xf0] %vm1025, %v1106
        %1134 = vrot.lane.b32.xlu0 %v1004, 120
        %v1135 = vpop.permute.xlu0 %1134
        %1137 = vst.msk [vmem:[#allocation2 + $0x28] sm:$0xf] %vm1031, %v1135
        %1138 = vst.msk [vmem:[#allocation2 + $0x24] sm:$0xf0] %vm1036, %v1004
        %1139 = vrot.lane.b32.xlu0 %v1010, 104
        %v1140 = vpop.permute.xlu0 %1139
        %1142 = vst.msk [vmem:[#allocation2 + $0x2c] sm:$0xf] %vm1019, %v1140
        %1143 = vst.msk [vmem:[#allocation2 + $0x28] sm:$0xf0] %vm1025, %v1113
        %1144 = vrot.lane.b32.xlu0 %v1016, 120
        %v1145 = vpop.permute.xlu0 %1144
        %1147 = vst.msk [vmem:[#allocation2 + $0x2c] sm:$0xf] %vm1031, %v1145
        %1148 = vst.msk [vmem:[#allocation2 + $0x28] sm:$0xf0] %vm1036, %v1016
        %v1149 = vld [vmem:[#allocation2] sm:$0xff]
        %v1150 = vld [vmem:[#allocation2 + $0x8] sm:$0xff]
        %v1151 = vld [vmem:[#allocation2 + $0x10] sm:$0xff]
        %v1152 = vld [vmem:[#allocation2 + $0x18] sm:$0xff]
        %v1153 = vld [vmem:[#allocation2 + $0x20] sm:$0xff]
        %v1154 = vld [vmem:[#allocation2 + $0x28] sm:$0xff]
        %v1155 = vld [vmem:[#allocation8] sm:$0xff]
        %v1156 = vld [vmem:[#allocation8 + $0x8] sm:$0xff]
        %v1157 = vld [vmem:[#allocation8 + $0x10] sm:$0xff]
        %v1158 = vld [vmem:[#allocation8 + $0x18] sm:$0xff]
        %v1159 = vld [vmem:[#allocation8 + $0x20] sm:$0xff]
        %v1160 = vld [vmem:[#allocation8 + $0x28] sm:$0xff]
        %v1161 = vld [vmem:[%s3] sm:$0x1]
        %v1163 = vlaneseq
        %v1164 = vshrl.u32 %v1163, 7
        %v1165 = vsub.s32 0, %v1164
        %v1166 = vrot.slane %v1161, %v1165
        %1168 = vxpose.xlu0.b32.start [1/16] %v1149, 128
        %1169 = vxpose.xlu0.b32.cont [2/16] %v1150, 128
        %1170 = vxpose.xlu0.b32.cont [3/16] %v1151, 128
        %1171 = vxpose.xlu0.b32.cont [4/16] %v1152, 128
        %1172 = vxpose.xlu0.b32.cont [5/16] %v1153, 128
        %1173 = vxpose.xlu0.b32.cont [6/16] %v1154, 128
        %1174 = vxpose.xlu0.b32.cont [7/16] 0.0, 128
        %1175 = vxpose.xlu0.b32.cont [8/16] 0.0, 128
        %1176 = vxpose.xlu0.b32.cont [9/16] 0.0, 128
        %1177 = vxpose.xlu0.b32.cont [10/16] 0.0, 128
        %1178 = vxpose.xlu0.b32.cont [11/16] 0.0, 128
        %1179 = vxpose.xlu0.b32.cont [12/16] 0.0, 128
        %1180 = vxpose.xlu0.b32.cont [13/16] 0.0, 128
        %1181 = vxpose.xlu0.b32.cont [14/16] 0.0, 128
        %1182 = vxpose.xlu0.b32.cont [15/16] 0.0, 128
        %1183 = vxpose.xlu0.b32.end [16/16] 0.0, 128
        %v1184 = vpop.trf.xlu0
        %v1185 = vpop.trf.xlu0
        %v1186 = vpop.trf.xlu0
        %v1187 = vpop.trf.xlu0
        %v1188 = vpop.trf.xlu0
        %v1189 = vpop.trf.xlu0
        %v1190 = vpop.trf.xlu0
        %v1191 = vpop.trf.xlu0
        %v1192 = vpop.trf.xlu0
        %v1193 = vpop.trf.xlu0
        %v1194 = vpop.trf.xlu0
        %v1195 = vpop.trf.xlu0
        %v1196 = vpop.trf.xlu0
        %v1197 = vpop.trf.xlu0
        %v1198 = vpop.trf.xlu0
        %v1199 = vpop.trf.xlu0
        %vm1200 = vcmask 392192
        %v1202 = vsel %vm1200, %v1184, 0
        %v1205 = vsel %vm1200, %v1185, 0
        %v1208 = vsel %vm1200, %v1186, 0
        %v1211 = vsel %vm1200, %v1187, 0
        %1213 = vmatprep.subr.mxu0 0.0
        %v1214 = vand.u32 %v1155, 4294901760
        %1215 = vmatpush1.msra.mxu0 %v1214
        %1216 = vmatprep.subr.mxu0 0.0
        %v1217 = vand.u32 %v1156, 4294901760
        %1218 = vmatpush1.msra.mxu0 %v1217
        %1219 = vmatprep.subr.mxu0 0.0
        %v1220 = vand.u32 %v1157, 4294901760
        %1221 = vmatpush1.msra.mxu0 %v1220
        %1222 = vmatprep.subr.mxu0 0.0
        %v1223 = vand.u32 %v1158, 4294901760
        %1224 = vmatpush1.msra.mxu0 %v1223
        %1225 = vmatprep.subr.mxu0 0.0
        %v1226 = vand.u32 %v1159, 4294901760
        %1227 = vmatpush1.msra.mxu0 %v1226
        %1228 = vmatprep.subr.mxu0 0.0
        %v1229 = vand.u32 %v1160, 4294901760
        %1230 = vmatpush1.msra.mxu0 %v1229
        %1231 = vmatprep.subr.mxu0 0.0
        %1232 = vmatpush1.msra.mxu0 0.0
        %1233 = vmatprep.subr.mxu0 0.0
        %1234 = vmatpush1.msra.mxu0 0.0
        %1235 = vmatprep.subr.mxu0 0.0
        %1236 = vmatpush1.msra.mxu0 0.0
        %1237 = vmatprep.subr.mxu0 0.0
        %1238 = vmatpush1.msra.mxu0 0.0
        %1239 = vmatprep.subr.mxu0 0.0
        %1240 = vmatpush1.msra.mxu0 0.0
        %1241 = vmatprep.subr.mxu0 0.0
        %1242 = vmatpush1.msra.mxu0 0.0
        %1243 = vmatprep.subr.mxu0 0.0
        %1244 = vmatpush1.msra.mxu0 0.0
        %1245 = vmatprep.subr.mxu0 0.0
        %1246 = vmatpush1.msra.mxu0 0.0
        %1247 = vmatprep.subr.mxu0 0.0
        %1248 = vmatpush1.msra.mxu0 0.0
        %1249 = vmatprep.subr.mxu0 0.0
        %1250 = vmatpush1.msra.mxu0 0.0
        %1251 = vmatprep.subr.mxu0 0.0
        %1252 = vmatpush1.msra.mxu0 0.0
        %1253 = vmatprep.subr.mxu0 0.0
        %1254 = vmatpush1.msra.mxu0 0.0
        %1255 = vmatprep.subr.mxu0 0.0
        %1256 = vmatpush1.msra.mxu0 0.0
        %1257 = vmatprep.subr.mxu0 0.0
        %1258 = vmatpush1.msra.mxu0 0.0
        %1259 = vmatprep.subr.mxu0 0.0
        %1260 = vmatpush1.msra.mxu0 0.0
        %1261 = vmatprep.subr.mxu0 0.0
        %1262 = vmatpush1.msra.mxu0 0.0
        %1263 = vmatprep.subr.mxu0 0.0
        %1264 = vmatpush1.msra.mxu0 0.0
        %1265 = vmatprep.subr.mxu0 0.0
        %1266 = vmatpush1.msra.mxu0 0.0
        %1267 = vmatprep.subr.mxu0 0.0
        %1268 = vmatpush1.msra.mxu0 0.0
        %1269 = vmatprep.subr.mxu0 0.0
        %1270 = vmatpush1.msra.mxu0 0.0
        %1271 = vmatprep.subr.mxu0 0.0
        %1272 = vmatpush1.msra.mxu0 0.0
        %1273 = vmatprep.subr.mxu0 0.0
        %1274 = vmatpush1.msra.mxu0 0.0
        %1275 = vmatprep.subr.mxu0 0.0
        %1276 = vmatpush1.msra.mxu0 0.0
        %1277 = vmatprep.subr.mxu0 0.0
        %1278 = vmatpush1.msra.mxu0 0.0
        %1279 = vmatprep.subr.mxu0 0.0
        %1280 = vmatpush1.msra.mxu0 0.0
        %1281 = vmatprep.subr.mxu0 0.0
        %1282 = vmatpush1.msra.mxu0 0.0
        %1283 = vmatprep.mubr.f32.mxu0 0.0
        %v1284 = vand.u32 %v1202, 4294901760
        %v1285 = vsub.f32 %v1202, %v1284
        %v1286 = vand.u32 %v1285, 4294901760
        %v1287 = vsub.f32 %v1285, %v1286
        %v1288 = vand.u32 %v1287, 4294901760
        %1289 = vmatmul.mubr.f32.gmra.mrb[0].mxu0 %v1288
        %v1290 = vpop.f32.mrb[0].mxu0
        %v1291 = vadd.f32 %v1166, %v1290
        %v1292 = vpop.f32.mrb[0].mxu0
        %1293 = vmatprep.mubr.f32.mxu0 0.0
        %v1294 = vand.u32 %v1205, 4294901760
        %v1295 = vsub.f32 %v1205, %v1294
        %v1296 = vand.u32 %v1295, 4294901760
        %v1297 = vsub.f32 %v1295, %v1296
        %v1298 = vand.u32 %v1297, 4294901760
        %1299 = vmatmul.mubr.f32.gmra.mrb[0].mxu0 %v1298
        %v1300 = vpop.f32.mrb[0].mxu0
        %v1301 = vadd.f32 %v1166, %v1300
        %v1302 = vpop.f32.mrb[0].mxu0
        %1303 = vmatprep.mubr.f32.mxu0 0.0
        %v1304 = vand.u32 %v1208, 4294901760
        %v1305 = vsub.f32 %v1208, %v1304
        %v1306 = vand.u32 %v1305, 4294901760
        %v1307 = vsub.f32 %v1305, %v1306
        %v1308 = vand.u32 %v1307, 4294901760
        %1309 = vmatmul.mubr.f32.gmra.mrb[0].mxu0 %v1308
        %v1310 = vpop.f32.mrb[0].mxu0
        %v1311 = vadd.f32 %v1166, %v1310
        %v1312 = vpop.f32.mrb[0].mxu0
        %1313 = vmatprep.mubr.f32.mxu0 0.0
        %v1314 = vand.u32 %v1211, 4294901760
        %v1315 = vsub.f32 %v1211, %v1314
        %v1316 = vand.u32 %v1315, 4294901760
        %v1317 = vsub.f32 %v1315, %v1316
        %v1318 = vand.u32 %v1317, 4294901760
        %1319 = vmatmul.mubr.f32.gmra.mrb[0].mxu0 %v1318
        %v1320 = vpop.f32.mrb[0].mxu0
        %v1321 = vadd.f32 %v1166, %v1320
        %v1322 = vpop.f32.mrb[0].mxu0
        %1323 = vdwg.mxu0
        %1324 = vmatprep.subr.mxu0 0.0
        %v1325 = vand.u32 %v1155, 4294901760
        %v1326 = vsub.f32 %v1155, %v1325
        %v1327 = vand.u32 %v1326, 4294901760
        %v1328 = vsub.f32 %v1326, %v1327
        %v1329 = vand.u32 %v1328, 4294901760
        %1330 = vmatpush1.msra.mxu0 %v1329
        %1331 = vmatprep.subr.mxu0 0.0
        %v1332 = vand.u32 %v1156, 4294901760
        %v1333 = vsub.f32 %v1156, %v1332
        %v1334 = vand.u32 %v1333, 4294901760
        %v1335 = vsub.f32 %v1333, %v1334
        %v1336 = vand.u32 %v1335, 4294901760
        %1337 = vmatpush1.msra.mxu0 %v1336
        %1338 = vmatprep.subr.mxu0 0.0
        %v1339 = vand.u32 %v1157, 4294901760
        %v1340 = vsub.f32 %v1157, %v1339
        %v1341 = vand.u32 %v1340, 4294901760
        %v1342 = vsub.f32 %v1340, %v1341
        %v1343 = vand.u32 %v1342, 4294901760
        %1344 = vmatpush1.msra.mxu0 %v1343
        %1345 = vmatprep.subr.mxu0 0.0
        %v1346 = vand.u32 %v1158, 4294901760
        %v1347 = vsub.f32 %v1158, %v1346
        %v1348 = vand.u32 %v1347, 4294901760
        %v1349 = vsub.f32 %v1347, %v1348
        %v1350 = vand.u32 %v1349, 4294901760
        %1351 = vmatpush1.msra.mxu0 %v1350
        %1352 = vmatprep.subr.mxu0 0.0
        %v1353 = vand.u32 %v1159, 4294901760
        %v1354 = vsub.f32 %v1159, %v1353
        %v1355 = vand.u32 %v1354, 4294901760
        %v1356 = vsub.f32 %v1354, %v1355
        %v1357 = vand.u32 %v1356, 4294901760
        %1358 = vmatpush1.msra.mxu0 %v1357
        %1359 = vmatprep.subr.mxu0 0.0
        %v1360 = vand.u32 %v1160, 4294901760
        %v1361 = vsub.f32 %v1160, %v1360
        %v1362 = vand.u32 %v1361, 4294901760
        %v1363 = vsub.f32 %v1361, %v1362
        %v1364 = vand.u32 %v1363, 4294901760
        %1365 = vmatpush1.msra.mxu0 %v1364
        %1366 = vmatprep.subr.mxu0 0.0
        %1367 = vmatpush1.msra.mxu0 0.0
        %1368 = vmatprep.subr.mxu0 0.0
        %1369 = vmatpush1.msra.mxu0 0.0
        %1370 = vmatprep.subr.mxu0 0.0
        %1371 = vmatpush1.msra.mxu0 0.0
        %1372 = vmatprep.subr.mxu0 0.0
        %1373 = vmatpush1.msra.mxu0 0.0
        %1374 = vmatprep.subr.mxu0 0.0
        %1375 = vmatpush1.msra.mxu0 0.0
        %1376 = vmatprep.subr.mxu0 0.0
        %1377 = vmatpush1.msra.mxu0 0.0
        %1378 = vmatprep.subr.mxu0 0.0
        %1379 = vmatpush1.msra.mxu0 0.0
        %1380 = vmatprep.subr.mxu0 0.0
        %1381 = vmatpush1.msra.mxu0 0.0
        %1382 = vmatprep.subr.mxu0 0.0
        %1383 = vmatpush1.msra.mxu0 0.0
        %1384 = vmatprep.subr.mxu0 0.0
        %1385 = vmatpush1.msra.mxu0 0.0
        %1386 = vmatprep.subr.mxu0 0.0
        %1387 = vmatpush1.msra.mxu0 0.0
        %1388 = vmatprep.subr.mxu0 0.0
        %1389 = vmatpush1.msra.mxu0 0.0
        %1390 = vmatprep.subr.mxu0 0.0
        %1391 = vmatpush1.msra.mxu0 0.0
        %1392 = vmatprep.subr.mxu0 0.0
        %1393 = vmatpush1.msra.mxu0 0.0
        %1394 = vmatprep.subr.mxu0 0.0
        %1395 = vmatpush1.msra.mxu0 0.0
        %1396 = vmatprep.subr.mxu0 0.0
        %1397 = vmatpush1.msra.mxu0 0.0
        %1398 = vmatprep.subr.mxu0 0.0
        %1399 = vmatpush1.msra.mxu0 0.0
        %1400 = vmatprep.subr.mxu0 0.0
        %1401 = vmatpush1.msra.mxu0 0.0
        %1402 = vmatprep.subr.mxu0 0.0
        %1403 = vmatpush1.msra.mxu0 0.0
        %1404 = vmatprep.subr.mxu0 0.0
        %1405 = vmatpush1.msra.mxu0 0.0
        %1406 = vmatprep.subr.mxu0 0.0
        %1407 = vmatpush1.msra.mxu0 0.0
        %1408 = vmatprep.subr.mxu0 0.0
        %1409 = vmatpush1.msra.mxu0 0.0
        %1410 = vmatprep.subr.mxu0 0.0
        %1411 = vmatpush1.msra.mxu0 0.0
        %1412 = vmatprep.subr.mxu0 0.0
        %1413 = vmatpush1.msra.mxu0 0.0
        %1414 = vmatprep.subr.mxu0 0.0
        %1415 = vmatpush1.msra.mxu0 0.0
        %1416 = vmatprep.subr.mxu0 0.0
        %1417 = vmatpush1.msra.mxu0 0.0
        %1418 = vmatprep.mubr.f32.mxu0 0.0
        %v1419 = vand.u32 %v1202, 4294901760
        %1420 = vmatmul.mubr.f32.gmra.mrb[0].mxu0 %v1419
        %v1421 = vpop.f32.mrb[0].mxu0
        %v1422 = vadd.f32 %v1291, %v1421
        %v1423 = vpop.f32.mrb[0].mxu0
        %1424 = vmatprep.mubr.f32.mxu0 0.0
        %v1425 = vand.u32 %v1205, 4294901760
        %1426 = vmatmul.mubr.f32.gmra.mrb[0].mxu0 %v1425
        %v1427 = vpop.f32.mrb[0].mxu0
        %v1428 = vadd.f32 %v1301, %v1427
        %v1429 = vpop.f32.mrb[0].mxu0
        %1430 = vmatprep.mubr.f32.mxu0 0.0
        %v1431 = vand.u32 %v1208, 4294901760
        %1432 = vmatmul.mubr.f32.gmra.mrb[0].mxu0 %v1431
        %v1433 = vpop.f32.mrb[0].mxu0
        %v1434 = vadd.f32 %v1311, %v1433
        %v1435 = vpop.f32.mrb[0].mxu0
        %1436 = vmatprep.mubr.f32.mxu0 0.0
        %v1437 = vand.u32 %v1211, 4294901760
        %1438 = vmatmul.mubr.f32.gmra.mrb[0].mxu0 %v1437
        %v1439 = vpop.f32.mrb[0].mxu0
        %v1440 = vadd.f32 %v1321, %v1439
        %v1441 = vpop.f32.mrb[0].mxu0
        %1442 = vdwg.mxu0
        %1443 = vmatprep.subr.mxu0 0.0
        %v1444 = vand.u32 %v1155, 4294901760
        %v1445 = vsub.f32 %v1155, %v1444
        %1446 = vmatpush1.msra.mxu0 %v1445
        %1447 = vmatprep.subr.mxu0 0.0
        %v1448 = vand.u32 %v1156, 4294901760
        %v1449 = vsub.f32 %v1156, %v1448
        %1450 = vmatpush1.msra.mxu0 %v1449
        %1451 = vmatprep.subr.mxu0 0.0
        %v1452 = vand.u32 %v1157, 4294901760
        %v1453 = vsub.f32 %v1157, %v1452
        %1454 = vmatpush1.msra.mxu0 %v1453
        %1455 = vmatprep.subr.mxu0 0.0
        %v1456 = vand.u32 %v1158, 4294901760
        %v1457 = vsub.f32 %v1158, %v1456
        %1458 = vmatpush1.msra.mxu0 %v1457
        %1459 = vmatprep.subr.mxu0 0.0
        %v1460 = vand.u32 %v1159, 4294901760
        %v1461 = vsub.f32 %v1159, %v1460
        %1462 = vmatpush1.msra.mxu0 %v1461
        %1463 = vmatprep.subr.mxu0 0.0
        %v1464 = vand.u32 %v1160, 4294901760
        %v1465 = vsub.f32 %v1160, %v1464
        %1466 = vmatpush1.msra.mxu0 %v1465
        %1467 = vmatprep.subr.mxu0 0.0
        %1468 = vmatpush1.msra.mxu0 0.0
        %1469 = vmatprep.subr.mxu0 0.0
        %1470 = vmatpush1.msra.mxu0 0.0
        %1471 = vmatprep.subr.mxu0 0.0
        %1472 = vmatpush1.msra.mxu0 0.0
        %1473 = vmatprep.subr.mxu0 0.0
        %1474 = vmatpush1.msra.mxu0 0.0
        %1475 = vmatprep.subr.mxu0 0.0
        %1476 = vmatpush1.msra.mxu0 0.0
        %1477 = vmatprep.subr.mxu0 0.0
        %1478 = vmatpush1.msra.mxu0 0.0
        %1479 = vmatprep.subr.mxu0 0.0
        %1480 = vmatpush1.msra.mxu0 0.0
        %1481 = vmatprep.subr.mxu0 0.0
        %1482 = vmatpush1.msra.mxu0 0.0
        %1483 = vmatprep.subr.mxu0 0.0
        %1484 = vmatpush1.msra.mxu0 0.0
        %1485 = vmatprep.subr.mxu0 0.0
        %1486 = vmatpush1.msra.mxu0 0.0
        %1487 = vmatprep.subr.mxu0 0.0
        %1488 = vmatpush1.msra.mxu0 0.0
        %1489 = vmatprep.subr.mxu0 0.0
        %1490 = vmatpush1.msra.mxu0 0.0
        %1491 = vmatprep.subr.mxu0 0.0
        %1492 = vmatpush1.msra.mxu0 0.0
        %1493 = vmatprep.subr.mxu0 0.0
        %1494 = vmatpush1.msra.mxu0 0.0
        %1495 = vmatprep.subr.mxu0 0.0
        %1496 = vmatpush1.msra.mxu0 0.0
        %1497 = vmatprep.subr.mxu0 0.0
        %1498 = vmatpush1.msra.mxu0 0.0
        %1499 = vmatprep.subr.mxu0 0.0
        %1500 = vmatpush1.msra.mxu0 0.0
        %1501 = vmatprep.subr.mxu0 0.0
        %1502 = vmatpush1.msra.mxu0 0.0
        %1503 = vmatprep.subr.mxu0 0.0
        %1504 = vmatpush1.msra.mxu0 0.0
        %1505 = vmatprep.subr.mxu0 0.0
        %1506 = vmatpush1.msra.mxu0 0.0
        %1507 = vmatprep.subr.mxu0 0.0
        %1508 = vmatpush1.msra.mxu0 0.0
        %1509 = vmatprep.subr.mxu0 0.0
        %1510 = vmatpush1.msra.mxu0 0.0
        %1511 = vmatprep.subr.mxu0 0.0
        %1512 = vmatpush1.msra.mxu0 0.0
        %1513 = vmatprep.subr.mxu0 0.0
        %1514 = vmatpush1.msra.mxu0 0.0
        %1515 = vmatprep.subr.mxu0 0.0
        %1516 = vmatpush1.msra.mxu0 0.0
        %1517 = vmatprep.subr.mxu0 0.0
        %1518 = vmatpush1.msra.mxu0 0.0
        %1519 = vmatprep.mubr.f32.mxu0 0.0
        %v1520 = vand.u32 %v1202, 4294901760
        %v1521 = vsub.f32 %v1202, %v1520
        %1522 = vmatmul.mubr.f32.gmra.mrb[0].mxu0 %v1521
        %v1523 = vpop.f32.mrb[0].mxu0
        %v1524 = vadd.f32 %v1422, %v1523
        %v1525 = vpop.f32.mrb[0].mxu0
        %1526 = vmatprep.mubr.f32.mxu0 0.0
        %v1527 = vand.u32 %v1205, 4294901760
        %v1528 = vsub.f32 %v1205, %v1527
        %1529 = vmatmul.mubr.f32.gmra.mrb[0].mxu0 %v1528
        %v1530 = vpop.f32.mrb[0].mxu0
        %v1531 = vadd.f32 %v1428, %v1530
        %v1532 = vpop.f32.mrb[0].mxu0
        %1533 = vmatprep.mubr.f32.mxu0 0.0
        %v1534 = vand.u32 %v1208, 4294901760
        %v1535 = vsub.f32 %v1208, %v1534
        %1536 = vmatmul.mubr.f32.gmra.mrb[0].mxu0 %v1535
        %v1537 = vpop.f32.mrb[0].mxu0
        %v1538 = vadd.f32 %v1434, %v1537
        %v1539 = vpop.f32.mrb[0].mxu0
        %1540 = vmatprep.mubr.f32.mxu0 0.0
        %v1541 = vand.u32 %v1211, 4294901760
        %v1542 = vsub.f32 %v1211, %v1541
        %1543 = vmatmul.mubr.f32.gmra.mrb[0].mxu0 %v1542
        %v1544 = vpop.f32.mrb[0].mxu0
        %v1545 = vadd.f32 %v1440, %v1544
        %v1546 = vpop.f32.mrb[0].mxu0
        %1547 = vdwg.mxu0
        %1548 = vmatprep.subr.mxu0 0.0
        %v1549 = vand.u32 %v1155, 4294901760
        %1550 = vmatpush1.msra.mxu0 %v1549
        %1551 = vmatprep.subr.mxu0 0.0
        %v1552 = vand.u32 %v1156, 4294901760
        %1553 = vmatpush1.msra.mxu0 %v1552
        %1554 = vmatprep.subr.mxu0 0.0
        %v1555 = vand.u32 %v1157, 4294901760
        %1556 = vmatpush1.msra.mxu0 %v1555
        %1557 = vmatprep.subr.mxu0 0.0
        %v1558 = vand.u32 %v1158, 4294901760
        %1559 = vmatpush1.msra.mxu0 %v1558
        %1560 = vmatprep.subr.mxu0 0.0
        %v1561 = vand.u32 %v1159, 4294901760
        %1562 = vmatpush1.msra.mxu0 %v1561
        %1563 = vmatprep.subr.mxu0 0.0
        %v1564 = vand.u32 %v1160, 4294901760
        %1565 = vmatpush1.msra.mxu0 %v1564
        %1566 = vmatprep.subr.mxu0 0.0
        %1567 = vmatpush1.msra.mxu0 0.0
        %1568 = vmatprep.subr.mxu0 0.0
        %1569 = vmatpush1.msra.mxu0 0.0
        %1570 = vmatprep.subr.mxu0 0.0
        %1571 = vmatpush1.msra.mxu0 0.0
        %1572 = vmatprep.subr.mxu0 0.0
        %1573 = vmatpush1.msra.mxu0 0.0
        %1574 = vmatprep.subr.mxu0 0.0
        %1575 = vmatpush1.msra.mxu0 0.0
        %1576 = vmatprep.subr.mxu0 0.0
        %1577 = vmatpush1.msra.mxu0 0.0
        %1578 = vmatprep.subr.mxu0 0.0
        %1579 = vmatpush1.msra.mxu0 0.0
        %1580 = vmatprep.subr.mxu0 0.0
        %1581 = vmatpush1.msra.mxu0 0.0
        %1582 = vmatprep.subr.mxu0 0.0
        %1583 = vmatpush1.msra.mxu0 0.0
        %1584 = vmatprep.subr.mxu0 0.0
        %1585 = vmatpush1.msra.mxu0 0.0
        %1586 = vmatprep.subr.mxu0 0.0
        %1587 = vmatpush1.msra.mxu0 0.0
        %1588 = vmatprep.subr.mxu0 0.0
        %1589 = vmatpush1.msra.mxu0 0.0
        %1590 = vmatprep.subr.mxu0 0.0
        %1591 = vmatpush1.msra.mxu0 0.0
        %1592 = vmatprep.subr.mxu0 0.0
        %1593 = vmatpush1.msra.mxu0 0.0
        %1594 = vmatprep.subr.mxu0 0.0
        %1595 = vmatpush1.msra.mxu0 0.0
        %1596 = vmatprep.subr.mxu0 0.0
        %1597 = vmatpush1.msra.mxu0 0.0
        %1598 = vmatprep.subr.mxu0 0.0
        %1599 = vmatpush1.msra.mxu0 0.0
        %1600 = vmatprep.subr.mxu0 0.0
        %1601 = vmatpush1.msra.mxu0 0.0
        %1602 = vmatprep.subr.mxu0 0.0
        %1603 = vmatpush1.msra.mxu0 0.0
        %1604 = vmatprep.subr.mxu0 0.0
        %1605 = vmatpush1.msra.mxu0 0.0
        %1606 = vmatprep.subr.mxu0 0.0
        %1607 = vmatpush1.msra.mxu0 0.0
        %1608 = vmatprep.subr.mxu0 0.0
        %1609 = vmatpush1.msra.mxu0 0.0
        %1610 = vmatprep.subr.mxu0 0.0
        %1611 = vmatpush1.msra.mxu0 0.0
        %1612 = vmatprep.subr.mxu0 0.0
        %1613 = vmatpush1.msra.mxu0 0.0
        %1614 = vmatprep.subr.mxu0 0.0
        %1615 = vmatpush1.msra.mxu0 0.0
        %1616 = vmatprep.subr.mxu0 0.0
        %1617 = vmatpush1.msra.mxu0 0.0
        %1618 = vmatprep.mubr.f32.mxu0 0.0
        %v1619 = vand.u32 %v1202, 4294901760
        %v1620 = vsub.f32 %v1202, %v1619
        %v1621 = vand.u32 %v1620, 4294901760
        %1622 = vmatmul.mubr.f32.gmra.mrb[0].mxu0 %v1621
        %v1623 = vpop.f32.mrb[0].mxu0
        %v1624 = vadd.f32 %v1524, %v1623
        %v1625 = vpop.f32.mrb[0].mxu0
        %1626 = vmatprep.mubr.f32.mxu0 0.0
        %v1627 = vand.u32 %v1205, 4294901760
        %v1628 = vsub.f32 %v1205, %v1627
        %v1629 = vand.u32 %v1628, 4294901760
        %1630 = vmatmul.mubr.f32.gmra.mrb[0].mxu0 %v1629
        %v1631 = vpop.f32.mrb[0].mxu0
        %v1632 = vadd.f32 %v1531, %v1631
        %v1633 = vpop.f32.mrb[0].mxu0
        %1634 = vmatprep.mubr.f32.mxu0 0.0
        %v1635 = vand.u32 %v1208, 4294901760
        %v1636 = vsub.f32 %v1208, %v1635
        %v1637 = vand.u32 %v1636, 4294901760
        %1638 = vmatmul.mubr.f32.gmra.mrb[0].mxu0 %v1637
        %v1639 = vpop.f32.mrb[0].mxu0
        %v1640 = vadd.f32 %v1538, %v1639
        %v1641 = vpop.f32.mrb[0].mxu0
        %1642 = vmatprep.mubr.f32.mxu0 0.0
        %v1643 = vand.u32 %v1211, 4294901760
        %v1644 = vsub.f32 %v1211, %v1643
        %v1645 = vand.u32 %v1644, 4294901760
        %1646 = vmatmul.mubr.f32.gmra.mrb[0].mxu0 %v1645
        %v1647 = vpop.f32.mrb[0].mxu0
        %v1648 = vadd.f32 %v1545, %v1647
        %v1649 = vpop.f32.mrb[0].mxu0
        %1650 = vdwg.mxu0
        %1651 = vmatprep.subr.mxu0 0.0
        %v1652 = vand.u32 %v1155, 4294901760
        %v1653 = vsub.f32 %v1155, %v1652
        %v1654 = vand.u32 %v1653, 4294901760
        %1655 = vmatpush1.msra.mxu0 %v1654
        %1656 = vmatprep.subr.mxu0 0.0
        %v1657 = vand.u32 %v1156, 4294901760
        %v1658 = vsub.f32 %v1156, %v1657
        %v1659 = vand.u32 %v1658, 4294901760
        %1660 = vmatpush1.msra.mxu0 %v1659
        %1661 = vmatprep.subr.mxu0 0.0
        %v1662 = vand.u32 %v1157, 4294901760
        %v1663 = vsub.f32 %v1157, %v1662
        %v1664 = vand.u32 %v1663, 4294901760
        %1665 = vmatpush1.msra.mxu0 %v1664
        %1666 = vmatprep.subr.mxu0 0.0
        %v1667 = vand.u32 %v1158, 4294901760
        %v1668 = vsub.f32 %v1158, %v1667
        %v1669 = vand.u32 %v1668, 4294901760
        %1670 = vmatpush1.msra.mxu0 %v1669
        %1671 = vmatprep.subr.mxu0 0.0
        %v1672 = vand.u32 %v1159, 4294901760
        %v1673 = vsub.f32 %v1159, %v1672
        %v1674 = vand.u32 %v1673, 4294901760
        %1675 = vmatpush1.msra.mxu0 %v1674
        %1676 = vmatprep.subr.mxu0 0.0
        %v1677 = vand.u32 %v1160, 4294901760
        %v1678 = vsub.f32 %v1160, %v1677
        %v1679 = vand.u32 %v1678, 4294901760
        %1680 = vmatpush1.msra.mxu0 %v1679
        %1681 = vmatprep.subr.mxu0 0.0
        %1682 = vmatpush1.msra.mxu0 0.0
        %1683 = vmatprep.subr.mxu0 0.0
        %1684 = vmatpush1.msra.mxu0 0.0
        %1685 = vmatprep.subr.mxu0 0.0
        %1686 = vmatpush1.msra.mxu0 0.0
        %1687 = vmatprep.subr.mxu0 0.0
        %1688 = vmatpush1.msra.mxu0 0.0
        %1689 = vmatprep.subr.mxu0 0.0
        %1690 = vmatpush1.msra.mxu0 0.0
        %1691 = vmatprep.subr.mxu0 0.0
        %1692 = vmatpush1.msra.mxu0 0.0
        %1693 = vmatprep.subr.mxu0 0.0
        %1694 = vmatpush1.msra.mxu0 0.0
        %1695 = vmatprep.subr.mxu0 0.0
        %1696 = vmatpush1.msra.mxu0 0.0
        %1697 = vmatprep.subr.mxu0 0.0
        %1698 = vmatpush1.msra.mxu0 0.0
        %1699 = vmatprep.subr.mxu0 0.0
        %1700 = vmatpush1.msra.mxu0 0.0
        %1701 = vmatprep.subr.mxu0 0.0
        %1702 = vmatpush1.msra.mxu0 0.0
        %1703 = vmatprep.subr.mxu0 0.0
        %1704 = vmatpush1.msra.mxu0 0.0
        %1705 = vmatprep.subr.mxu0 0.0
        %1706 = vmatpush1.msra.mxu0 0.0
        %1707 = vmatprep.subr.mxu0 0.0
        %1708 = vmatpush1.msra.mxu0 0.0
        %1709 = vmatprep.subr.mxu0 0.0
        %1710 = vmatpush1.msra.mxu0 0.0
        %1711 = vmatprep.subr.mxu0 0.0
        %1712 = vmatpush1.msra.mxu0 0.0
        %1713 = vmatprep.subr.mxu0 0.0
        %1714 = vmatpush1.msra.mxu0 0.0
        %1715 = vmatprep.subr.mxu0 0.0
        %1716 = vmatpush1.msra.mxu0 0.0
        %1717 = vmatprep.subr.mxu0 0.0
        %1718 = vmatpush1.msra.mxu0 0.0
        %1719 = vmatprep.subr.mxu0 0.0
        %1720 = vmatpush1.msra.mxu0 0.0
        %1721 = vmatprep.subr.mxu0 0.0
        %1722 = vmatpush1.msra.mxu0 0.0
        %1723 = vmatprep.subr.mxu0 0.0
        %1724 = vmatpush1.msra.mxu0 0.0
        %1725 = vmatprep.subr.mxu0 0.0
        %1726 = vmatpush1.msra.mxu0 0.0
        %1727 = vmatprep.subr.mxu0 0.0
        %1728 = vmatpush1.msra.mxu0 0.0
        %1729 = vmatprep.subr.mxu0 0.0
        %1730 = vmatpush1.msra.mxu0 0.0
        %1731 = vmatprep.subr.mxu0 0.0
        %1732 = vmatpush1.msra.mxu0 0.0
        %1733 = vmatprep.mubr.f32.mxu0 0.0
        %v1734 = vand.u32 %v1202, 4294901760
        %1735 = vmatmul.mubr.f32.gmra.mrb[0].mxu0 %v1734
        %v1736 = vpop.f32.mrb[0].mxu0
        %v1737 = vadd.f32 %v1624, %v1736
        %v1738 = vpop.f32.mrb[0].mxu0
        %1739 = vmatprep.mubr.f32.mxu0 0.0
        %v1740 = vand.u32 %v1205, 4294901760
        %1741 = vmatmul.mubr.f32.gmra.mrb[0].mxu0 %v1740
        %v1742 = vpop.f32.mrb[0].mxu0
        %v1743 = vadd.f32 %v1632, %v1742
        %v1744 = vpop.f32.mrb[0].mxu0
        %1745 = vmatprep.mubr.f32.mxu0 0.0
        %v1746 = vand.u32 %v1208, 4294901760
        %1747 = vmatmul.mubr.f32.gmra.mrb[0].mxu0 %v1746
        %v1748 = vpop.f32.mrb[0].mxu0
        %v1749 = vadd.f32 %v1640, %v1748
        %v1750 = vpop.f32.mrb[0].mxu0
        %1751 = vmatprep.mubr.f32.mxu0 0.0
        %v1752 = vand.u32 %v1211, 4294901760
        %1753 = vmatmul.mubr.f32.gmra.mrb[0].mxu0 %v1752
        %v1754 = vpop.f32.mrb[0].mxu0
        %v1755 = vadd.f32 %v1648, %v1754
        %v1756 = vpop.f32.mrb[0].mxu0
        %1757 = vdwg.mxu0
        %1758 = vmatprep.subr.mxu0 0.0
        %v1759 = vand.u32 %v1155, 4294901760
        %1760 = vmatpush1.msra.mxu0 %v1759
        %1761 = vmatprep.subr.mxu0 0.0
        %v1762 = vand.u32 %v1156, 4294901760
        %1763 = vmatpush1.msra.mxu0 %v1762
        %1764 = vmatprep.subr.mxu0 0.0
        %v1765 = vand.u32 %v1157, 4294901760
        %1766 = vmatpush1.msra.mxu0 %v1765
        %1767 = vmatprep.subr.mxu0 0.0
        %v1768 = vand.u32 %v1158, 4294901760
        %1769 = vmatpush1.msra.mxu0 %v1768
        %1770 = vmatprep.subr.mxu0 0.0
        %v1771 = vand.u32 %v1159, 4294901760
        %1772 = vmatpush1.msra.mxu0 %v1771
        %1773 = vmatprep.subr.mxu0 0.0
        %v1774 = vand.u32 %v1160, 4294901760
        %1775 = vmatpush1.msra.mxu0 %v1774
        %1776 = vmatprep.subr.mxu0 0.0
        %1777 = vmatpush1.msra.mxu0 0.0
        %1778 = vmatprep.subr.mxu0 0.0
        %1779 = vmatpush1.msra.mxu0 0.0
        %1780 = vmatprep.subr.mxu0 0.0
        %1781 = vmatpush1.msra.mxu0 0.0
        %1782 = vmatprep.subr.mxu0 0.0
        %1783 = vmatpush1.msra.mxu0 0.0
        %1784 = vmatprep.subr.mxu0 0.0
        %1785 = vmatpush1.msra.mxu0 0.0
        %1786 = vmatprep.subr.mxu0 0.0
        %1787 = vmatpush1.msra.mxu0 0.0
        %1788 = vmatprep.subr.mxu0 0.0
        %1789 = vmatpush1.msra.mxu0 0.0
        %1790 = vmatprep.subr.mxu0 0.0
        %1791 = vmatpush1.msra.mxu0 0.0
        %1792 = vmatprep.subr.mxu0 0.0
        %1793 = vmatpush1.msra.mxu0 0.0
        %1794 = vmatprep.subr.mxu0 0.0
        %1795 = vmatpush1.msra.mxu0 0.0
        %1796 = vmatprep.subr.mxu0 0.0
        %1797 = vmatpush1.msra.mxu0 0.0
        %1798 = vmatprep.subr.mxu0 0.0
        %1799 = vmatpush1.msra.mxu0 0.0
        %1800 = vmatprep.subr.mxu0 0.0
        %1801 = vmatpush1.msra.mxu0 0.0
        %1802 = vmatprep.subr.mxu0 0.0
        %1803 = vmatpush1.msra.mxu0 0.0
        %1804 = vmatprep.subr.mxu0 0.0
        %1805 = vmatpush1.msra.mxu0 0.0
        %1806 = vmatprep.subr.mxu0 0.0
        %1807 = vmatpush1.msra.mxu0 0.0
        %1808 = vmatprep.subr.mxu0 0.0
        %1809 = vmatpush1.msra.mxu0 0.0
        %1810 = vmatprep.subr.mxu0 0.0
        %1811 = vmatpush1.msra.mxu0 0.0
        %1812 = vmatprep.subr.mxu0 0.0
        %1813 = vmatpush1.msra.mxu0 0.0
        %1814 = vmatprep.subr.mxu0 0.0
        %1815 = vmatpush1.msra.mxu0 0.0
        %1816 = vmatprep.subr.mxu0 0.0
        %1817 = vmatpush1.msra.mxu0 0.0
        %1818 = vmatprep.subr.mxu0 0.0
        %1819 = vmatpush1.msra.mxu0 0.0
        %1820 = vmatprep.subr.mxu0 0.0
        %1821 = vmatpush1.msra.mxu0 0.0
        %1822 = vmatprep.subr.mxu0 0.0
        %1823 = vmatpush1.msra.mxu0 0.0
        %1824 = vmatprep.subr.mxu0 0.0
        %1825 = vmatpush1.msra.mxu0 0.0
        %1826 = vmatprep.subr.mxu0 0.0
        %1827 = vmatpush1.msra.mxu0 0.0
        %1828 = vmatprep.mubr.f32.mxu0 0.0
        %v1829 = vand.u32 %v1202, 4294901760
        %1830 = vmatmul.mubr.f32.gmra.mrb[0].mxu0 %v1829
        %v1831 = vpop.f32.mrb[0].mxu0
        %v1832 = vadd.f32 %v1737, %v1831
        %v1833 = vpop.f32.mrb[0].mxu0
        %1834 = vmatprep.mubr.f32.mxu0 0.0
        %v1835 = vand.u32 %v1205, 4294901760
        %1836 = vmatmul.mubr.f32.gmra.mrb[0].mxu0 %v1835
        %v1837 = vpop.f32.mrb[0].mxu0
        %v1838 = vadd.f32 %v1743, %v1837
        %v1839 = vpop.f32.mrb[0].mxu0
        %1840 = vmatprep.mubr.f32.mxu0 0.0
        %v1841 = vand.u32 %v1208, 4294901760
        %1842 = vmatmul.mubr.f32.gmra.mrb[0].mxu0 %v1841
        %v1843 = vpop.f32.mrb[0].mxu0
        %v1844 = vadd.f32 %v1749, %v1843
        %v1845 = vpop.f32.mrb[0].mxu0
        %1846 = vmatprep.mubr.f32.mxu0 0.0
        %v1847 = vand.u32 %v1211, 4294901760
        %1848 = vmatmul.mubr.f32.gmra.mrb[0].mxu0 %v1847
        %v1849 = vpop.f32.mrb[0].mxu0
        %v1850 = vadd.f32 %v1755, %v1849
        %v1851 = vpop.f32.mrb[0].mxu0
        %1852 = vdwg.mxu0
        %1853 = vst [vmem:[%s287] sm:$0xff] %v1832
        %1854 = vst [vmem:[%s287 + $0x8] sm:$0xff] %v1838
        %1855 = vst [vmem:[%s287 + $0x10] sm:$0xff] %v1844
        %1856 = vst [vmem:[%s287 + $0x18] sm:$0xff] %v1850
        %s1857 = sand.u32 %s135, 1
        %s1858 = scalar_lea.sflag [#allocation5], %s1857
        %s1859 = sand.u32 %s135, 1
        %s1860 = smul.addr %s1859, 32
        %s1861 = scalar_lea.vmem [#allocation9], %s1860
        // Predicated region
        $region49: #{tpu_custom_call.1} parent=35 // pred_check
          %p1862 = pneg %p145
        $region50: #{tpu_custom_call.1} parent=35 // pred_check_branch
          %1864 = sbr.rel (%p1862) target = $region52
        $region51: #{tpu_custom_call.1} parent=35 // pred_region
          %s1865 = smul.u32 4, %s27
          %s1867 = ssub.s32 512, 512
          %1868 = vsyncadd %s1858, %s1867
          %s1869 = smul.addr %s26, 8
          %s1870 = sadd.s32 %s1865, %s1869
          %s1871 = smul.addr %s1870, 128
          %s1872 = scalar_lea.hbm %s4, %s1871
          %s1873 = sshll.u32 %s1861, 4
          %s1874 = int_to_ptr.vmem [resolvable:$true] %s1873
          %1879 = dma.vmem_to_hbm [thread:$0]  %s1874, 512, %s1872, %s1858, 128, 128, 8
        $region52: #{tpu_custom_call.1} parent=35 // pred_fallthru
          _
      $region36: #{tpu_custom_call.1} parent=5 // pred_fallthru
        _
      %p1880 = scmp.le.s32.totalorder 2, %s17
      // Predicated region
      $region53: #{tpu_custom_call.1} parent=5 // pred_check
        %p1881 = pneg %p1880
      $region54: #{tpu_custom_call.1} parent=5 // pred_check_branch
        %1883 = sbr.rel (%p1881) target = $region56
      $region55: #{tpu_custom_call.1} parent=5 // pred_region
        %s1884 = ssub.s32 %s17, 2
        // Predicated region
        $region57: #{tpu_custom_call.1} parent=55 // pred_check
          %p1885 = pneg %p151
        $region58: #{tpu_custom_call.1} parent=55 // pred_check_branch
          %1887 = sbr.rel (%p1885) target = $region60
        $region59: #{tpu_custom_call.1} parent=55 // pred_region
          %s1888 = sand.u32 %s136, 1
          %s1889 = scalar_lea.sflag [#allocation5], %s1888
          %s1890 = sand.u32 %s136, 1
          %s1891 = smul.addr %s1890, 32
          %s1892 = scalar_lea.vmem [#allocation9], %s1891
          %1893 = dma.done %s1889, 512
        $region60: #{tpu_custom_call.1} parent=55 // pred_fallthru
          _
      $region56: #{tpu_custom_call.1} parent=5 // pred_fallthru
        _
    $region6: #{tpu_custom_call.1} parent=1 // loop_footer
      %s21 = sadd.s32 1, %s17
    $region7: #{tpu_custom_call.1} parent=1 // loop_footer_branch
      %16 = sbr.rel target = $region3
    $region8: #{tpu_custom_call.1} parent=1 // loop_exit
      _
    %1894 = vsyncpa [#allocation4], 1
    %s1895 = scalar_lea.sflag [#allocation4], 1
    %1896 = vsyncpa %s1895, 1
    %1897 = vsyncpa [#allocation7], 1
    %1898 = vsyncpa [#allocation5], 1
    %s1899 = scalar_lea.sflag [#allocation5], 1
    %1900 = vsyncpa %s1899, 1

</llo_original>
